<compile_context>
chip_gen: v5e
topology: v5e:2x2
jax: 0.10.0
libtpu: 0.0.40
codegen_flags: <defaults>
</compile_context>

<pallas_src>
import functools

import jax
import jax.numpy as jnp
from jax import lax
from jax.experimental import pallas as pl
from jax.experimental.pallas import tpu as pltpu

LOG_FACTOR = 100.0   # log_factor
COS_EPS = 1e-8       # torch F.cosine_similarity eps

# TODO(synk): optional `frequency_weighting` re-weighting is skipped (module default is None).


def _round_up(n, m):
    return ((n + m - 1) // m) * m


def _perceptual_kernel(w_ref, zc_ref, zn_ref, out_ref, patch_ref, acc_ref,
                       *, lap, r_taps, tile_n):
    """One grid step = (batch element b, frame tile j).

    Builds the (K, 2*tile_n) im2col block in VMEM from the polyphase signal
    blocks (rows k = r*lap + p keep the ORIGINAL tap order, columns =
    [input frames | target frames]), runs a single MXU matmul against the
    resident filter bank, applies relu + log1p, and accumulates the three
    reduction slabs.  Finalizes to a lane-dense (1, 8, 128) output block on
    the last tile of each batch element.
    """
    j = pl.program_id(1)
    cp = w_ref.shape[0]

    @pl.when(j == 0)
    def _init():
        acc_ref[...] = jnp.zeros_like(acc_ref)

    zc = zc_ref[0]                                          # (2*lap, tile_n) current block
    zn = zn_ref[0]                                          # (2*lap, tile_n) next block (overlap)
    zw = jnp.concatenate([zc, zn[:, :r_taps]], axis=-1)     # (2*lap, tile_n + R)
    zwx = zw[:lap]                                          # input-signal polyphase rows
    zwy = zw[lap:]                                          # target-signal polyphase rows

    # Implicit im2col into VMEM scratch: patch[k, l] = x_pad[(l0 + l)*lap + k]
    # with k = r*lap + p.  Static slices / static-offset stores only.
    for r in range(r_taps):
        slab = jnp.concatenate([zwx[:, r:r + tile_n], zwy[:, r:r + tile_n]], axis=-1)
        patch_ref[r * lap:(r + 1) * lap, :] = slab          # (lap, 2*tile_n)

    # One MXU call for both signals; relu + log amplitude (F.relu, log(1+100x)).
    feat = jnp.dot(w_ref[...], patch_ref[...], preferred_element_type=jnp.float32)
    feat = jnp.log1p(jnp.maximum(feat, 0.0) * LOG_FACTOR)   # (Cp, 2*tile_n)
    fi = feat[:, :tile_n]                                   # input features
    ft = feat[:, tile_n:]                                   # target features

    def lane_fold(p):                                       # (Cp, tile_n) -> (Cp, 128), VPU only
        out = p[:, 0:128]
        for c in range(128, tile_n, 128):
            out = out + p[:, c:c + 128]
        return out

    acc_ref[0 * cp:1 * cp, :] = acc_ref[0 * cp:1 * cp, :] + lane_fold(fi * ft)
    acc_ref[1 * cp:2 * cp, :] = acc_ref[1 * cp:2 * cp, :] + lane_fold(fi * fi)
    acc_ref[2 * cp:3 * cp, :] = acc_ref[2 * cp:3 * cp, :] + lane_fold(ft * ft)

    @pl.when(j == pl.num_programs(1) - 1)
    def _finalize():
        dot = jnp.sum(acc_ref[0 * cp:1 * cp, :])
        nin = jnp.sum(acc_ref[1 * cp:2 * cp, :])
        ntt = jnp.sum(acc_ref[2 * cp:3 * cp, :])
        lane = lax.broadcasted_iota(jnp.int32, out_ref.shape, 2)
        out_ref[...] = jnp.where(lane == 0, dot,
                                 jnp.where(lane == 1, nin,
                                           jnp.where(lane == 2, ntt, 0.0)))


def perceptual_loss(x, y, weights, *, lap, basis_size, cosine_similarity=True,
                    tile_frames=512):
    """x, y: (B, T) f32 signals; weights: (C, K) FIR bank (conv weight (C,1,K) squeezed)."""
    B, T = x.shape
    C, K = weights.shape
    assert K == basis_size
    assert K % lap == 0, "basis_size must be divisible by lap"
    R = K // lap                                   # taps per polyphase branch
    pad = basis_size                               # F.conv1d(..., padding=basis_size)
    L = (T + 2 * pad - K) // lap + 1               # conv output frames per signal

    # Frame-tile size: multiple of 128, >= R so the tap overlap fits in one "next" block.
    # Default 512 keeps the per-tile VMEM footprint (patch = K * 2*tile_n * 4B) small
    # enough for v7x's 32 MiB scoped default; raise tile_frames on v5e/v6e if desired.
    tile_n = min(_round_up(tile_frames, 128), _round_up(L, 128))
    tile_n = max(tile_n, _round_up(R, 128), 128)
    n_tiles = pl.cdiv(L, tile_n)
    z_len = (n_tiles + 1) * tile_n                 # +1 zero tile so the "next" view never goes OOB
    t_pad = z_len * lap
    Cp = _round_up(C, 8)

    # Polyphase split (cheap, NO duplication): z[b, p, m] = x_padded[b, m*lap + p].
    def poly(sig):                                 # (B, T) -> (B, lap, z_len)
        sp = jnp.pad(sig.astype(jnp.float32), ((0, 0), (pad, t_pad - T - pad)))
        return sp.reshape(B, z_len, lap).transpose(0, 2, 1)

    zz = jnp.concatenate([poly(x), poly(y)], axis=1)                  # (B, 2*lap, z_len)
    w = jnp.pad(weights.astype(jnp.float32), ((0, Cp - C), (0, 0)))   # (Cp, K)
    # NOTE: MXU at Cp=16 is under-filled but is not the bottleneck; don't pad C further.

    kernel = functools.partial(_perceptual_kernel, lap=lap, r_taps=R, tile_n=tile_n)
    res = pl.pallas_call(
        kernel,
        out_shape=jax.ShapeDtypeStruct((B, 8, 128), jnp.float32),
        grid_spec=pltpu.PrefetchScalarGridSpec(
            num_scalar_prefetch=0,
            grid=(B, n_tiles),                     # (parallel batch, arbitrary frame tiles)
            in_specs=[
                pl.BlockSpec((Cp, K), lambda b, j: (0, 0)),                      # resident bank
                pl.BlockSpec((1, 2 * lap, tile_n), lambda b, j: (b, 0, j)),      # current block
                pl.BlockSpec((1, 2 * lap, tile_n), lambda b, j: (b, 0, j + 1)),  # next (overlap)
            ],
            out_specs=pl.BlockSpec((1, 8, 128), lambda b, j: (b, 0, 0)),
            scratch_shapes=[
                pltpu.VMEM((K, 2 * tile_n), jnp.float32),      # im2col patch block
                pltpu.VMEM((3 * Cp, 128), jnp.float32),        # dot / |in|^2 / |tgt|^2 partials
            ],
        ),
        compiler_params=pltpu.CompilerParams(
            dimension_semantics=("parallel", "arbitrary"),
            vmem_limit_bytes=32 * 1024 * 1024,
        ),
    )(w, zz, zz)

    dot = res[:, 0, 0]
    nin = res[:, 0, 1]
    ntt = res[:, 0, 2]

    if cosine_similarity:
        cos = dot / (jnp.maximum(jnp.sqrt(nin), COS_EPS) *
                     jnp.maximum(jnp.sqrt(ntt), COS_EPS))
        return -jnp.mean(cos)
    # mean((fi - ft)^2) over the unpadded B*C*L features
    return jnp.sum(nin + ntt - 2.0 * dot) / (B * C * L)


def make_filter_bank(n_filters, basis_size):
    """Deterministic synthetic stand-in for fir_filter_bank(scale, ...):
    gaussian-windowed sinusoids on a geometric frequency scale, shape (C, K)."""
    t = jnp.arange(basis_size, dtype=jnp.float32)
    center = (basis_size - 1) / 2.0
    window = jnp.exp(-0.5 * ((t - center) / (basis_size / 6.0)) ** 2)
    freqs = 0.01 * (2.0 ** jnp.linspace(0.0, 4.0, n_filters))          # cycles/sample
    phase = 2.0 * jnp.pi * freqs[:, None] * t[None, :]
    bank = jnp.sin(phase) * window[None, :]
    bank = bank / jnp.maximum(jnp.linalg.norm(bank, axis=1, keepdims=True), 1e-8)
    return bank.astype(jnp.float32)


def reference_loss(x, y, weights, *, lap, basis_size, cosine_similarity=True):
    """Pure-JAX reference reproducing the PyTorch forward (NCW conv1d)."""
    def transform(sig):
        s = sig[:, None, :].astype(jnp.float32)            # (B, 1, T)
        w = weights[:, None, :].astype(jnp.float32)        # (C, 1, K)
        f = lax.conv_general_dilated(
            s, w, window_strides=(lap,), padding=[(basis_size, basis_size)],
            dimension_numbers=("NCH", "OIH", "NCH"),
            precision=lax.Precision.HIGHEST)               # (B, C, L)
        f = jnp.maximum(f, 0.0)
        f = jnp.log1p(f * LOG_FACTOR)
        return f.reshape(f.shape[0], -1)

    fi = transform(x)
    ft = transform(y)
    if cosine_similarity:
        dot = jnp.sum(fi * ft, axis=1)
        ni = jnp.maximum(jnp.linalg.norm(fi, axis=1), COS_EPS)
        nt = jnp.maximum(jnp.linalg.norm(ft, axis=1), COS_EPS)
        return -jnp.mean(dot / (ni * nt))
    return jnp.mean((fi - ft) ** 2)


if __name__ == "__main__":
    B, T = 2, 256          # batch, raw audio samples
    C, K = 16, 128         # number of FIR filters (len(scale)), basis_size
    LAP = 2                # filter stride

    key = jax.random.PRNGKey(0)
    kx, ky = jax.random.split(key)
    x = jax.random.normal(kx, (B, T), dtype=jnp.float32)
    y = jax.random.normal(ky, (B, T), dtype=jnp.float32)
    weights = make_filter_bank(C, K)

    loss = perceptual_loss(x, y, weights, lap=LAP, basis_size=K, cosine_similarity=True)
    loss = jax.block_until_ready(loss)
    ref = reference_loss(x, y, weights, lap=LAP, basis_size=K, cosine_similarity=True)
    assert jnp.allclose(loss, ref, rtol=1e-4, atol=1e-4), (float(loss), float(ref))

    # MSE path exercises the same kernel reductions.
    mse = perceptual_loss(x, y, weights, lap=LAP, basis_size=K, cosine_similarity=False)
    mse = jax.block_until_ready(mse)
    mse_ref = reference_loss(x, y, weights, lap=LAP, basis_size=K, cosine_similarity=False)
    assert jnp.allclose(mse, mse_ref, rtol=1e-4, atol=1e-4), (float(mse), float(mse_ref))

    print("KERNEL_OK")
</pallas_src>

<mosaic_0001>
module attributes {stable_mosaic.version = 11 : i64} {
  func.func @_perceptual_kernel(%arg0: i32, %arg1: i32, %arg2: memref<16x128xf32, #tpu.memory_space<vmem>>, %arg3: memref<1x4x256xf32, #tpu.memory_space<vmem>>, %arg4: memref<1x4x256xf32, #tpu.memory_space<vmem>>, %arg5: memref<1x8x128xf32, #tpu.memory_space<vmem>>, %arg6: memref<128x512xf32, #tpu.memory_space<vmem>>, %arg7: memref<48x128xf32, #tpu.memory_space<vmem>>) attributes {dimension_semantics = [#tpu.dimension_semantics<parallel>, #tpu.dimension_semantics<arbitrary>], iteration_bounds = array<i64: 2, 1>, scalar_prefetch = 0 : i64, scratch_operands = 2 : i64, tpu.core_type = #tpu.core_type<tc>, window_params = [{pipeline_mode = #tpu.pipeline_mode<synchronous>, transform_indices = @transform_0, window_bounds = array<i64: 16, 128>}, {transform_indices = @transform_1, window_bounds = array<i64: 1, 4, 256>}, {transform_indices = @transform_2, window_bounds = array<i64: 1, 4, 256>}, {transform_indices = @transform_3, window_bounds = array<i64: 1, 8, 128>}]} {
    %c0_i32 = arith.constant 0 : i32
    %0 = arith.cmpi eq, %arg1, %c0_i32 : i32
    %1 = arith.extui %0 : i1 to i32
    %c0_i32_0 = arith.constant 0 : i32
    %2 = arith.cmpi ne, %1, %c0_i32_0 : i32
    scf.if %2 {
      %cst_91 = arith.constant 0.000000e+00 : f32
      %301 = vector.broadcast %cst_91 : f32 to vector<48x128xf32>
      %c0_92 = arith.constant 0 : index
      %c0_93 = arith.constant 0 : index
      %302 = vector.load %arg7[%c0_92, %c0_93] : memref<48x128xf32, #tpu.memory_space<vmem>>, vector<48x128xf32>
      tpu.vector_store %arg7[%c0_92, %c0_93], %301 {strides = array<i32>} : memref<48x128xf32, #tpu.memory_space<vmem>>, vector<48x128xf32>,
    } else {
    }
    %c0 = arith.constant 0 : index
    %c0_1 = arith.constant 0 : index
    %c0_2 = arith.constant 0 : index
    %3 = vector.load %arg3[%c0, %c0_1, %c0_2] : memref<1x4x256xf32, #tpu.memory_space<vmem>>, vector<1x4x256xf32>
    %4 = vector.shape_cast %3 : vector<1x4x256xf32> to vector<4x256xf32>
    %c0_3 = arith.constant 0 : index
    %c0_4 = arith.constant 0 : index
    %c0_5 = arith.constant 0 : index
    %5 = vector.load %arg4[%c0_3, %c0_4, %c0_5] : memref<1x4x256xf32, #tpu.memory_space<vmem>>, vector<1x4x256xf32>
    %6 = vector.shape_cast %5 : vector<1x4x256xf32> to vector<4x256xf32>
    %7 = vector.extract_strided_slice %6 {offsets = [0, 0], sizes = [4, 64], strides = [1, 1]} : vector<4x256xf32> to vector<4x64xf32>
    %8 = tpu.concatenate %4, %7 in 1 : vector<4x256xf32>, vector<4x64xf32> -> vector<4x320xf32>
    %9 = vector.extract_strided_slice %8 {offsets = [0, 0], sizes = [2, 320], strides = [1, 1]} : vector<4x320xf32> to vector<2x320xf32>
    %10 = vector.extract_strided_slice %8 {offsets = [2, 0], sizes = [2, 320], strides = [1, 1]} : vector<4x320xf32> to vector<2x320xf32>
    %11 = vector.extract_strided_slice %9 {offsets = [0, 0], sizes = [2, 256], strides = [1, 1]} : vector<2x320xf32> to vector<2x256xf32>
    %12 = vector.extract_strided_slice %10 {offsets = [0, 0], sizes = [2, 256], strides = [1, 1]} : vector<2x320xf32> to vector<2x256xf32>
    %13 = tpu.concatenate %11, %12 in 1 : vector<2x256xf32>, vector<2x256xf32> -> vector<2x512xf32>
    %c0_6 = arith.constant 0 : index
    %c0_7 = arith.constant 0 : index
    %14 = vector.load %arg6[%c0_6, %c0_7] : memref<128x512xf32, #tpu.memory_space<vmem>>, vector<2x512xf32>
    tpu.vector_store %arg6[%c0_6, %c0_7], %13 {strides = array<i32>} : memref<128x512xf32, #tpu.memory_space<vmem>>, vector<2x512xf32>,
    %15 = vector.extract_strided_slice %9 {offsets = [0, 1], sizes = [2, 256], strides = [1, 1]} : vector<2x320xf32> to vector<2x256xf32>
    %16 = vector.extract_strided_slice %10 {offsets = [0, 1], sizes = [2, 256], strides = [1, 1]} : vector<2x320xf32> to vector<2x256xf32>
    %17 = tpu.concatenate %15, %16 in 1 : vector<2x256xf32>, vector<2x256xf32> -> vector<2x512xf32>
    %c2 = arith.constant 2 : index
    %c0_8 = arith.constant 0 : index
    %18 = vector.load %arg6[%c2, %c0_8] : memref<128x512xf32, #tpu.memory_space<vmem>>, vector<2x512xf32>
    tpu.vector_store %arg6[%c2, %c0_8], %17 {strides = array<i32>} : memref<128x512xf32, #tpu.memory_space<vmem>>, vector<2x512xf32>,
    %19 = vector.extract_strided_slice %9 {offsets = [0, 2], sizes = [2, 256], strides = [1, 1]} : vector<2x320xf32> to vector<2x256xf32>
    %20 = vector.extract_strided_slice %10 {offsets = [0, 2], sizes = [2, 256], strides = [1, 1]} : vector<2x320xf32> to vector<2x256xf32>
    %21 = tpu.concatenate %19, %20 in 1 : vector<2x256xf32>, vector<2x256xf32> -> vector<2x512xf32>
    %c4 = arith.constant 4 : index
    %c0_9 = arith.constant 0 : index
    %22 = vector.load %arg6[%c4, %c0_9] : memref<128x512xf32, #tpu.memory_space<vmem>>, vector<2x512xf32>
    tpu.vector_store %arg6[%c4, %c0_9], %21 {strides = array<i32>} : memref<128x512xf32, #tpu.memory_space<vmem>>, vector<2x512xf32>,
    %23 = vector.extract_strided_slice %9 {offsets = [0, 3], sizes = [2, 256], strides = [1, 1]} : vector<2x320xf32> to vector<2x256xf32>
    %24 = vector.extract_strided_slice %10 {offsets = [0, 3], sizes = [2, 256], strides = [1, 1]} : vector<2x320xf32> to vector<2x256xf32>
    %25 = tpu.concatenate %23, %24 in 1 : vector<2x256xf32>, vector<2x256xf32> -> vector<2x512xf32>
    %c6 = arith.constant 6 : index
    %c0_10 = arith.constant 0 : index
    %26 = vector.load %arg6[%c6, %c0_10] : memref<128x512xf32, #tpu.memory_space<vmem>>, vector<2x512xf32>
    tpu.vector_store %arg6[%c6, %c0_10], %25 {strides = array<i32>} : memref<128x512xf32, #tpu.memory_space<vmem>>, vector<2x512xf32>,
    %27 = vector.extract_strided_slice %9 {offsets = [0, 4], sizes = [2, 256], strides = [1, 1]} : vector<2x320xf32> to vector<2x256xf32>
    %28 = vector.extract_strided_slice %10 {offsets = [0, 4], sizes = [2, 256], strides = [1, 1]} : vector<2x320xf32> to vector<2x256xf32>
    %29 = tpu.concatenate %27, %28 in 1 : vector<2x256xf32>, vector<2x256xf32> -> vector<2x512xf32>
    %c8 = arith.constant 8 : index
    %c0_11 = arith.constant 0 : index
    %30 = vector.load %arg6[%c8, %c0_11] : memref<128x512xf32, #tpu.memory_space<vmem>>, vector<2x512xf32>
    tpu.vector_store %arg6[%c8, %c0_11], %29 {strides = array<i32>} : memref<128x512xf32, #tpu.memory_space<vmem>>, vector<2x512xf32>,
    %31 = vector.extract_strided_slice %9 {offsets = [0, 5], sizes = [2, 256], strides = [1, 1]} : vector<2x320xf32> to vector<2x256xf32>
    %32 = vector.extract_strided_slice %10 {offsets = [0, 5], sizes = [2, 256], strides = [1, 1]} : vector<2x320xf32> to vector<2x256xf32>
    %33 = tpu.concatenate %31, %32 in 1 : vector<2x256xf32>, vector<2x256xf32> -> vector<2x512xf32>
    %c10 = arith.constant 10 : index
    %c0_12 = arith.constant 0 : index
    %34 = vector.load %arg6[%c10, %c0_12] : memref<128x512xf32, #tpu.memory_space<vmem>>, vector<2x512xf32>
    tpu.vector_store %arg6[%c10, %c0_12], %33 {strides = array<i32>} : memref<128x512xf32, #tpu.memory_space<vmem>>, vector<2x512xf32>,
    %35 = vector.extract_strided_slice %9 {offsets = [0, 6], sizes = [2, 256], strides = [1, 1]} : vector<2x320xf32> to vector<2x256xf32>
    %36 = vector.extract_strided_slice %10 {offsets = [0, 6], sizes = [2, 256], strides = [1, 1]} : vector<2x320xf32> to vector<2x256xf32>
    %37 = tpu.concatenate %35, %36 in 1 : vector<2x256xf32>, vector<2x256xf32> -> vector<2x512xf32>
    %c12 = arith.constant 12 : index
    %c0_13 = arith.constant 0 : index
    %38 = vector.load %arg6[%c12, %c0_13] : memref<128x512xf32, #tpu.memory_space<vmem>>, vector<2x512xf32>
    tpu.vector_store %arg6[%c12, %c0_13], %37 {strides = array<i32>} : memref<128x512xf32, #tpu.memory_space<vmem>>, vector<2x512xf32>,
    %39 = vector.extract_strided_slice %9 {offsets = [0, 7], sizes = [2, 256], strides = [1, 1]} : vector<2x320xf32> to vector<2x256xf32>
    %40 = vector.extract_strided_slice %10 {offsets = [0, 7], sizes = [2, 256], strides = [1, 1]} : vector<2x320xf32> to vector<2x256xf32>
    %41 = tpu.concatenate %39, %40 in 1 : vector<2x256xf32>, vector<2x256xf32> -> vector<2x512xf32>
    %c14 = arith.constant 14 : index
    %c0_14 = arith.constant 0 : index
    %42 = vector.load %arg6[%c14, %c0_14] : memref<128x512xf32, #tpu.memory_space<vmem>>, vector<2x512xf32>
    tpu.vector_store %arg6[%c14, %c0_14], %41 {strides = array<i32>} : memref<128x512xf32, #tpu.memory_space<vmem>>, vector<2x512xf32>,
    %43 = vector.extract_strided_slice %9 {offsets = [0, 8], sizes = [2, 256], strides = [1, 1]} : vector<2x320xf32> to vector<2x256xf32>
    %44 = vector.extract_strided_slice %10 {offsets = [0, 8], sizes = [2, 256], strides = [1, 1]} : vector<2x320xf32> to vector<2x256xf32>
    %45 = tpu.concatenate %43, %44 in 1 : vector<2x256xf32>, vector<2x256xf32> -> vector<2x512xf32>
    %c16 = arith.constant 16 : index
    %c0_15 = arith.constant 0 : index
    %46 = vector.load %arg6[%c16, %c0_15] : memref<128x512xf32, #tpu.memory_space<vmem>>, vector<2x512xf32>
    tpu.vector_store %arg6[%c16, %c0_15], %45 {strides = array<i32>} : memref<128x512xf32, #tpu.memory_space<vmem>>, vector<2x512xf32>,
    %47 = vector.extract_strided_slice %9 {offsets = [0, 9], sizes = [2, 256], strides = [1, 1]} : vector<2x320xf32> to vector<2x256xf32>
    %48 = vector.extract_strided_slice %10 {offsets = [0, 9], sizes = [2, 256], strides = [1, 1]} : vector<2x320xf32> to vector<2x256xf32>
    %49 = tpu.concatenate %47, %48 in 1 : vector<2x256xf32>, vector<2x256xf32> -> vector<2x512xf32>
    %c18 = arith.constant 18 : index
    %c0_16 = arith.constant 0 : index
    %50 = vector.load %arg6[%c18, %c0_16] : memref<128x512xf32, #tpu.memory_space<vmem>>, vector<2x512xf32>
    tpu.vector_store %arg6[%c18, %c0_16], %49 {strides = array<i32>} : memref<128x512xf32, #tpu.memory_space<vmem>>, vector<2x512xf32>,
    %51 = vector.extract_strided_slice %9 {offsets = [0, 10], sizes = [2, 256], strides = [1, 1]} : vector<2x320xf32> to vector<2x256xf32>
    %52 = vector.extract_strided_slice %10 {offsets = [0, 10], sizes = [2, 256], strides = [1, 1]} : vector<2x320xf32> to vector<2x256xf32>
    %53 = tpu.concatenate %51, %52 in 1 : vector<2x256xf32>, vector<2x256xf32> -> vector<2x512xf32>
    %c20 = arith.constant 20 : index
    %c0_17 = arith.constant 0 : index
    %54 = vector.load %arg6[%c20, %c0_17] : memref<128x512xf32, #tpu.memory_space<vmem>>, vector<2x512xf32>
    tpu.vector_store %arg6[%c20, %c0_17], %53 {strides = array<i32>} : memref<128x512xf32, #tpu.memory_space<vmem>>, vector<2x512xf32>,
    %55 = vector.extract_strided_slice %9 {offsets = [0, 11], sizes = [2, 256], strides = [1, 1]} : vector<2x320xf32> to vector<2x256xf32>
    %56 = vector.extract_strided_slice %10 {offsets = [0, 11], sizes = [2, 256], strides = [1, 1]} : vector<2x320xf32> to vector<2x256xf32>
    %57 = tpu.concatenate %55, %56 in 1 : vector<2x256xf32>, vector<2x256xf32> -> vector<2x512xf32>
    %c22 = arith.constant 22 : index
    %c0_18 = arith.constant 0 : index
    %58 = vector.load %arg6[%c22, %c0_18] : memref<128x512xf32, #tpu.memory_space<vmem>>, vector<2x512xf32>
    tpu.vector_store %arg6[%c22, %c0_18], %57 {strides = array<i32>} : memref<128x512xf32, #tpu.memory_space<vmem>>, vector<2x512xf32>,
    %59 = vector.extract_strided_slice %9 {offsets = [0, 12], sizes = [2, 256], strides = [1, 1]} : vector<2x320xf32> to vector<2x256xf32>
    %60 = vector.extract_strided_slice %10 {offsets = [0, 12], sizes = [2, 256], strides = [1, 1]} : vector<2x320xf32> to vector<2x256xf32>
    %61 = tpu.concatenate %59, %60 in 1 : vector<2x256xf32>, vector<2x256xf32> -> vector<2x512xf32>
    %c24 = arith.constant 24 : index
    %c0_19 = arith.constant 0 : index
    %62 = vector.load %arg6[%c24, %c0_19] : memref<128x512xf32, #tpu.memory_space<vmem>>, vector<2x512xf32>
    tpu.vector_store %arg6[%c24, %c0_19], %61 {strides = array<i32>} : memref<128x512xf32, #tpu.memory_space<vmem>>, vector<2x512xf32>,
    %63 = vector.extract_strided_slice %9 {offsets = [0, 13], sizes = [2, 256], strides = [1, 1]} : vector<2x320xf32> to vector<2x256xf32>
    %64 = vector.extract_strided_slice %10 {offsets = [0, 13], sizes = [2, 256], strides = [1, 1]} : vector<2x320xf32> to vector<2x256xf32>
    %65 = tpu.concatenate %63, %64 in 1 : vector<2x256xf32>, vector<2x256xf32> -> vector<2x512xf32>
    %c26 = arith.constant 26 : index
    %c0_20 = arith.constant 0 : index
    %66 = vector.load %arg6[%c26, %c0_20] : memref<128x512xf32, #tpu.memory_space<vmem>>, vector<2x512xf32>
    tpu.vector_store %arg6[%c26, %c0_20], %65 {strides = array<i32>} : memref<128x512xf32, #tpu.memory_space<vmem>>, vector<2x512xf32>,
    %67 = vector.extract_strided_slice %9 {offsets = [0, 14], sizes = [2, 256], strides = [1, 1]} : vector<2x320xf32> to vector<2x256xf32>
    %68 = vector.extract_strided_slice %10 {offsets = [0, 14], sizes = [2, 256], strides = [1, 1]} : vector<2x320xf32> to vector<2x256xf32>
    %69 = tpu.concatenate %67, %68 in 1 : vector<2x256xf32>, vector<2x256xf32> -> vector<2x512xf32>
    %c28 = arith.constant 28 : index
    %c0_21 = arith.constant 0 : index
    %70 = vector.load %arg6[%c28, %c0_21] : memref<128x512xf32, #tpu.memory_space<vmem>>, vector<2x512xf32>
    tpu.vector_store %arg6[%c28, %c0_21], %69 {strides = array<i32>} : memref<128x512xf32, #tpu.memory_space<vmem>>, vector<2x512xf32>,
    %71 = vector.extract_strided_slice %9 {offsets = [0, 15], sizes = [2, 256], strides = [1, 1]} : vector<2x320xf32> to vector<2x256xf32>
    %72 = vector.extract_strided_slice %10 {offsets = [0, 15], sizes = [2, 256], strides = [1, 1]} : vector<2x320xf32> to vector<2x256xf32>
    %73 = tpu.concatenate %71, %72 in 1 : vector<2x256xf32>, vector<2x256xf32> -> vector<2x512xf32>
    %c30 = arith.constant 30 : index
    %c0_22 = arith.constant 0 : index
    %74 = vector.load %arg6[%c30, %c0_22] : memref<128x512xf32, #tpu.memory_space<vmem>>, vector<2x512xf32>
    tpu.vector_store %arg6[%c30, %c0_22], %73 {strides = array<i32>} : memref<128x512xf32, #tpu.memory_space<vmem>>, vector<2x512xf32>,
    %75 = vector.extract_strided_slice %9 {offsets = [0, 16], sizes = [2, 256], strides = [1, 1]} : vector<2x320xf32> to vector<2x256xf32>
    %76 = vector.extract_strided_slice %10 {offsets = [0, 16], sizes = [2, 256], strides = [1, 1]} : vector<2x320xf32> to vector<2x256xf32>
    %77 = tpu.concatenate %75, %76 in 1 : vector<2x256xf32>, vector<2x256xf32> -> vector<2x512xf32>
    %c32 = arith.constant 32 : index
    %c0_23 = arith.constant 0 : index
    %78 = vector.load %arg6[%c32, %c0_23] : memref<128x512xf32, #tpu.memory_space<vmem>>, vector<2x512xf32>
    tpu.vector_store %arg6[%c32, %c0_23], %77 {strides = array<i32>} : memref<128x512xf32, #tpu.memory_space<vmem>>, vector<2x512xf32>,
    %79 = vector.extract_strided_slice %9 {offsets = [0, 17], sizes = [2, 256], strides = [1, 1]} : vector<2x320xf32> to vector<2x256xf32>
    %80 = vector.extract_strided_slice %10 {offsets = [0, 17], sizes = [2, 256], strides = [1, 1]} : vector<2x320xf32> to vector<2x256xf32>
    %81 = tpu.concatenate %79, %80 in 1 : vector<2x256xf32>, vector<2x256xf32> -> vector<2x512xf32>
    %c34 = arith.constant 34 : index
    %c0_24 = arith.constant 0 : index
    %82 = vector.load %arg6[%c34, %c0_24] : memref<128x512xf32, #tpu.memory_space<vmem>>, vector<2x512xf32>
    tpu.vector_store %arg6[%c34, %c0_24], %81 {strides = array<i32>} : memref<128x512xf32, #tpu.memory_space<vmem>>, vector<2x512xf32>,
    %83 = vector.extract_strided_slice %9 {offsets = [0, 18], sizes = [2, 256], strides = [1, 1]} : vector<2x320xf32> to vector<2x256xf32>
    %84 = vector.extract_strided_slice %10 {offsets = [0, 18], sizes = [2, 256], strides = [1, 1]} : vector<2x320xf32> to vector<2x256xf32>
    %85 = tpu.concatenate %83, %84 in 1 : vector<2x256xf32>, vector<2x256xf32> -> vector<2x512xf32>
    %c36 = arith.constant 36 : index
    %c0_25 = arith.constant 0 : index
    %86 = vector.load %arg6[%c36, %c0_25] : memref<128x512xf32, #tpu.memory_space<vmem>>, vector<2x512xf32>
    tpu.vector_store %arg6[%c36, %c0_25], %85 {strides = array<i32>} : memref<128x512xf32, #tpu.memory_space<vmem>>, vector<2x512xf32>,
    %87 = vector.extract_strided_slice %9 {offsets = [0, 19], sizes = [2, 256], strides = [1, 1]} : vector<2x320xf32> to vector<2x256xf32>
    %88 = vector.extract_strided_slice %10 {offsets = [0, 19], sizes = [2, 256], strides = [1, 1]} : vector<2x320xf32> to vector<2x256xf32>
    %89 = tpu.concatenate %87, %88 in 1 : vector<2x256xf32>, vector<2x256xf32> -> vector<2x512xf32>
    %c38 = arith.constant 38 : index
    %c0_26 = arith.constant 0 : index
    %90 = vector.load %arg6[%c38, %c0_26] : memref<128x512xf32, #tpu.memory_space<vmem>>, vector<2x512xf32>
    tpu.vector_store %arg6[%c38, %c0_26], %89 {strides = array<i32>} : memref<128x512xf32, #tpu.memory_space<vmem>>, vector<2x512xf32>,
    %91 = vector.extract_strided_slice %9 {offsets = [0, 20], sizes = [2, 256], strides = [1, 1]} : vector<2x320xf32> to vector<2x256xf32>
    %92 = vector.extract_strided_slice %10 {offsets = [0, 20], sizes = [2, 256], strides = [1, 1]} : vector<2x320xf32> to vector<2x256xf32>
    %93 = tpu.concatenate %91, %92 in 1 : vector<2x256xf32>, vector<2x256xf32> -> vector<2x512xf32>
    %c40 = arith.constant 40 : index
    %c0_27 = arith.constant 0 : index
    %94 = vector.load %arg6[%c40, %c0_27] : memref<128x512xf32, #tpu.memory_space<vmem>>, vector<2x512xf32>
    tpu.vector_store %arg6[%c40, %c0_27], %93 {strides = array<i32>} : memref<128x512xf32, #tpu.memory_space<vmem>>, vector<2x512xf32>,
    %95 = vector.extract_strided_slice %9 {offsets = [0, 21], sizes = [2, 256], strides = [1, 1]} : vector<2x320xf32> to vector<2x256xf32>
    %96 = vector.extract_strided_slice %10 {offsets = [0, 21], sizes = [2, 256], strides = [1, 1]} : vector<2x320xf32> to vector<2x256xf32>
    %97 = tpu.concatenate %95, %96 in 1 : vector<2x256xf32>, vector<2x256xf32> -> vector<2x512xf32>
    %c42 = arith.constant 42 : index
    %c0_28 = arith.constant 0 : index
    %98 = vector.load %arg6[%c42, %c0_28] : memref<128x512xf32, #tpu.memory_space<vmem>>, vector<2x512xf32>
    tpu.vector_store %arg6[%c42, %c0_28], %97 {strides = array<i32>} : memref<128x512xf32, #tpu.memory_space<vmem>>, vector<2x512xf32>,
    %99 = vector.extract_strided_slice %9 {offsets = [0, 22], sizes = [2, 256], strides = [1, 1]} : vector<2x320xf32> to vector<2x256xf32>
    %100 = vector.extract_strided_slice %10 {offsets = [0, 22], sizes = [2, 256], strides = [1, 1]} : vector<2x320xf32> to vector<2x256xf32>
    %101 = tpu.concatenate %99, %100 in 1 : vector<2x256xf32>, vector<2x256xf32> -> vector<2x512xf32>
    %c44 = arith.constant 44 : index
    %c0_29 = arith.constant 0 : index
    %102 = vector.load %arg6[%c44, %c0_29] : memref<128x512xf32, #tpu.memory_space<vmem>>, vector<2x512xf32>
    tpu.vector_store %arg6[%c44, %c0_29], %101 {strides = array<i32>} : memref<128x512xf32, #tpu.memory_space<vmem>>, vector<2x512xf32>,
    %103 = vector.extract_strided_slice %9 {offsets = [0, 23], sizes = [2, 256], strides = [1, 1]} : vector<2x320xf32> to vector<2x256xf32>
    %104 = vector.extract_strided_slice %10 {offsets = [0, 23], sizes = [2, 256], strides = [1, 1]} : vector<2x320xf32> to vector<2x256xf32>
    %105 = tpu.concatenate %103, %104 in 1 : vector<2x256xf32>, vector<2x256xf32> -> vector<2x512xf32>
    %c46 = arith.constant 46 : index
    %c0_30 = arith.constant 0 : index
    %106 = vector.load %arg6[%c46, %c0_30] : memref<128x512xf32, #tpu.memory_space<vmem>>, vector<2x512xf32>
    tpu.vector_store %arg6[%c46, %c0_30], %105 {strides = array<i32>} : memref<128x512xf32, #tpu.memory_space<vmem>>, vector<2x512xf32>,
    %107 = vector.extract_strided_slice %9 {offsets = [0, 24], sizes = [2, 256], strides = [1, 1]} : vector<2x320xf32> to vector<2x256xf32>
    %108 = vector.extract_strided_slice %10 {offsets = [0, 24], sizes = [2, 256], strides = [1, 1]} : vector<2x320xf32> to vector<2x256xf32>
    %109 = tpu.concatenate %107, %108 in 1 : vector<2x256xf32>, vector<2x256xf32> -> vector<2x512xf32>
    %c48 = arith.constant 48 : index
    %c0_31 = arith.constant 0 : index
    %110 = vector.load %arg6[%c48, %c0_31] : memref<128x512xf32, #tpu.memory_space<vmem>>, vector<2x512xf32>
    tpu.vector_store %arg6[%c48, %c0_31], %109 {strides = array<i32>} : memref<128x512xf32, #tpu.memory_space<vmem>>, vector<2x512xf32>,
    %111 = vector.extract_strided_slice %9 {offsets = [0, 25], sizes = [2, 256], strides = [1, 1]} : vector<2x320xf32> to vector<2x256xf32>
    %112 = vector.extract_strided_slice %10 {offsets = [0, 25], sizes = [2, 256], strides = [1, 1]} : vector<2x320xf32> to vector<2x256xf32>
    %113 = tpu.concatenate %111, %112 in 1 : vector<2x256xf32>, vector<2x256xf32> -> vector<2x512xf32>
    %c50 = arith.constant 50 : index
    %c0_32 = arith.constant 0 : index
    %114 = vector.load %arg6[%c50, %c0_32] : memref<128x512xf32, #tpu.memory_space<vmem>>, vector<2x512xf32>
    tpu.vector_store %arg6[%c50, %c0_32], %113 {strides = array<i32>} : memref<128x512xf32, #tpu.memory_space<vmem>>, vector<2x512xf32>,
    %115 = vector.extract_strided_slice %9 {offsets = [0, 26], sizes = [2, 256], strides = [1, 1]} : vector<2x320xf32> to vector<2x256xf32>
    %116 = vector.extract_strided_slice %10 {offsets = [0, 26], sizes = [2, 256], strides = [1, 1]} : vector<2x320xf32> to vector<2x256xf32>
    %117 = tpu.concatenate %115, %116 in 1 : vector<2x256xf32>, vector<2x256xf32> -> vector<2x512xf32>
    %c52 = arith.constant 52 : index
    %c0_33 = arith.constant 0 : index
    %118 = vector.load %arg6[%c52, %c0_33] : memref<128x512xf32, #tpu.memory_space<vmem>>, vector<2x512xf32>
    tpu.vector_store %arg6[%c52, %c0_33], %117 {strides = array<i32>} : memref<128x512xf32, #tpu.memory_space<vmem>>, vector<2x512xf32>,
    %119 = vector.extract_strided_slice %9 {offsets = [0, 27], sizes = [2, 256], strides = [1, 1]} : vector<2x320xf32> to vector<2x256xf32>
    %120 = vector.extract_strided_slice %10 {offsets = [0, 27], sizes = [2, 256], strides = [1, 1]} : vector<2x320xf32> to vector<2x256xf32>
    %121 = tpu.concatenate %119, %120 in 1 : vector<2x256xf32>, vector<2x256xf32> -> vector<2x512xf32>
    %c54 = arith.constant 54 : index
    %c0_34 = arith.constant 0 : index
    %122 = vector.load %arg6[%c54, %c0_34] : memref<128x512xf32, #tpu.memory_space<vmem>>, vector<2x512xf32>
    tpu.vector_store %arg6[%c54, %c0_34], %121 {strides = array<i32>} : memref<128x512xf32, #tpu.memory_space<vmem>>, vector<2x512xf32>,
    %123 = vector.extract_strided_slice %9 {offsets = [0, 28], sizes = [2, 256], strides = [1, 1]} : vector<2x320xf32> to vector<2x256xf32>
    %124 = vector.extract_strided_slice %10 {offsets = [0, 28], sizes = [2, 256], strides = [1, 1]} : vector<2x320xf32> to vector<2x256xf32>
    %125 = tpu.concatenate %123, %124 in 1 : vector<2x256xf32>, vector<2x256xf32> -> vector<2x512xf32>
    %c56 = arith.constant 56 : index
    %c0_35 = arith.constant 0 : index
    %126 = vector.load %arg6[%c56, %c0_35] : memref<128x512xf32, #tpu.memory_space<vmem>>, vector<2x512xf32>
    tpu.vector_store %arg6[%c56, %c0_35], %125 {strides = array<i32>} : memref<128x512xf32, #tpu.memory_space<vmem>>, vector<2x512xf32>,
    %127 = vector.extract_strided_slice %9 {offsets = [0, 29], sizes = [2, 256], strides = [1, 1]} : vector<2x320xf32> to vector<2x256xf32>
    %128 = vector.extract_strided_slice %10 {offsets = [0, 29], sizes = [2, 256], strides = [1, 1]} : vector<2x320xf32> to vector<2x256xf32>
    %129 = tpu.concatenate %127, %128 in 1 : vector<2x256xf32>, vector<2x256xf32> -> vector<2x512xf32>
    %c58 = arith.constant 58 : index
    %c0_36 = arith.constant 0 : index
    %130 = vector.load %arg6[%c58, %c0_36] : memref<128x512xf32, #tpu.memory_space<vmem>>, vector<2x512xf32>
    tpu.vector_store %arg6[%c58, %c0_36], %129 {strides = array<i32>} : memref<128x512xf32, #tpu.memory_space<vmem>>, vector<2x512xf32>,
    %131 = vector.extract_strided_slice %9 {offsets = [0, 30], sizes = [2, 256], strides = [1, 1]} : vector<2x320xf32> to vector<2x256xf32>
    %132 = vector.extract_strided_slice %10 {offsets = [0, 30], sizes = [2, 256], strides = [1, 1]} : vector<2x320xf32> to vector<2x256xf32>
    %133 = tpu.concatenate %131, %132 in 1 : vector<2x256xf32>, vector<2x256xf32> -> vector<2x512xf32>
    %c60 = arith.constant 60 : index
    %c0_37 = arith.constant 0 : index
    %134 = vector.load %arg6[%c60, %c0_37] : memref<128x512xf32, #tpu.memory_space<vmem>>, vector<2x512xf32>
    tpu.vector_store %arg6[%c60, %c0_37], %133 {strides = array<i32>} : memref<128x512xf32, #tpu.memory_space<vmem>>, vector<2x512xf32>,
    %135 = vector.extract_strided_slice %9 {offsets = [0, 31], sizes = [2, 256], strides = [1, 1]} : vector<2x320xf32> to vector<2x256xf32>
    %136 = vector.extract_strided_slice %10 {offsets = [0, 31], sizes = [2, 256], strides = [1, 1]} : vector<2x320xf32> to vector<2x256xf32>
    %137 = tpu.concatenate %135, %136 in 1 : vector<2x256xf32>, vector<2x256xf32> -> vector<2x512xf32>
    %c62 = arith.constant 62 : index
    %c0_38 = arith.constant 0 : index
    %138 = vector.load %arg6[%c62, %c0_38] : memref<128x512xf32, #tpu.memory_space<vmem>>, vector<2x512xf32>
    tpu.vector_store %arg6[%c62, %c0_38], %137 {strides = array<i32>} : memref<128x512xf32, #tpu.memory_space<vmem>>, vector<2x512xf32>,
    %139 = vector.extract_strided_slice %9 {offsets = [0, 32], sizes = [2, 256], strides = [1, 1]} : vector<2x320xf32> to vector<2x256xf32>
    %140 = vector.extract_strided_slice %10 {offsets = [0, 32], sizes = [2, 256], strides = [1, 1]} : vector<2x320xf32> to vector<2x256xf32>
    %141 = tpu.concatenate %139, %140 in 1 : vector<2x256xf32>, vector<2x256xf32> -> vector<2x512xf32>
    %c64 = arith.constant 64 : index
    %c0_39 = arith.constant 0 : index
    %142 = vector.load %arg6[%c64, %c0_39] : memref<128x512xf32, #tpu.memory_space<vmem>>, vector<2x512xf32>
    tpu.vector_store %arg6[%c64, %c0_39], %141 {strides = array<i32>} : memref<128x512xf32, #tpu.memory_space<vmem>>, vector<2x512xf32>,
    %143 = vector.extract_strided_slice %9 {offsets = [0, 33], sizes = [2, 256], strides = [1, 1]} : vector<2x320xf32> to vector<2x256xf32>
    %144 = vector.extract_strided_slice %10 {offsets = [0, 33], sizes = [2, 256], strides = [1, 1]} : vector<2x320xf32> to vector<2x256xf32>
    %145 = tpu.concatenate %143, %144 in 1 : vector<2x256xf32>, vector<2x256xf32> -> vector<2x512xf32>
    %c66 = arith.constant 66 : index
    %c0_40 = arith.constant 0 : index
    %146 = vector.load %arg6[%c66, %c0_40] : memref<128x512xf32, #tpu.memory_space<vmem>>, vector<2x512xf32>
    tpu.vector_store %arg6[%c66, %c0_40], %145 {strides = array<i32>} : memref<128x512xf32, #tpu.memory_space<vmem>>, vector<2x512xf32>,
    %147 = vector.extract_strided_slice %9 {offsets = [0, 34], sizes = [2, 256], strides = [1, 1]} : vector<2x320xf32> to vector<2x256xf32>
    %148 = vector.extract_strided_slice %10 {offsets = [0, 34], sizes = [2, 256], strides = [1, 1]} : vector<2x320xf32> to vector<2x256xf32>
    %149 = tpu.concatenate %147, %148 in 1 : vector<2x256xf32>, vector<2x256xf32> -> vector<2x512xf32>
    %c68 = arith.constant 68 : index
    %c0_41 = arith.constant 0 : index
    %150 = vector.load %arg6[%c68, %c0_41] : memref<128x512xf32, #tpu.memory_space<vmem>>, vector<2x512xf32>
    tpu.vector_store %arg6[%c68, %c0_41], %149 {strides = array<i32>} : memref<128x512xf32, #tpu.memory_space<vmem>>, vector<2x512xf32>,
    %151 = vector.extract_strided_slice %9 {offsets = [0, 35], sizes = [2, 256], strides = [1, 1]} : vector<2x320xf32> to vector<2x256xf32>
    %152 = vector.extract_strided_slice %10 {offsets = [0, 35], sizes = [2, 256], strides = [1, 1]} : vector<2x320xf32> to vector<2x256xf32>
    %153 = tpu.concatenate %151, %152 in 1 : vector<2x256xf32>, vector<2x256xf32> -> vector<2x512xf32>
    %c70 = arith.constant 70 : index
    %c0_42 = arith.constant 0 : index
    %154 = vector.load %arg6[%c70, %c0_42] : memref<128x512xf32, #tpu.memory_space<vmem>>, vector<2x512xf32>
    tpu.vector_store %arg6[%c70, %c0_42], %153 {strides = array<i32>} : memref<128x512xf32, #tpu.memory_space<vmem>>, vector<2x512xf32>,
    %155 = vector.extract_strided_slice %9 {offsets = [0, 36], sizes = [2, 256], strides = [1, 1]} : vector<2x320xf32> to vector<2x256xf32>
    %156 = vector.extract_strided_slice %10 {offsets = [0, 36], sizes = [2, 256], strides = [1, 1]} : vector<2x320xf32> to vector<2x256xf32>
    %157 = tpu.concatenate %155, %156 in 1 : vector<2x256xf32>, vector<2x256xf32> -> vector<2x512xf32>
    %c72 = arith.constant 72 : index
    %c0_43 = arith.constant 0 : index
    %158 = vector.load %arg6[%c72, %c0_43] : memref<128x512xf32, #tpu.memory_space<vmem>>, vector<2x512xf32>
    tpu.vector_store %arg6[%c72, %c0_43], %157 {strides = array<i32>} : memref<128x512xf32, #tpu.memory_space<vmem>>, vector<2x512xf32>,
    %159 = vector.extract_strided_slice %9 {offsets = [0, 37], sizes = [2, 256], strides = [1, 1]} : vector<2x320xf32> to vector<2x256xf32>
    %160 = vector.extract_strided_slice %10 {offsets = [0, 37], sizes = [2, 256], strides = [1, 1]} : vector<2x320xf32> to vector<2x256xf32>
    %161 = tpu.concatenate %159, %160 in 1 : vector<2x256xf32>, vector<2x256xf32> -> vector<2x512xf32>
    %c74 = arith.constant 74 : index
    %c0_44 = arith.constant 0 : index
    %162 = vector.load %arg6[%c74, %c0_44] : memref<128x512xf32, #tpu.memory_space<vmem>>, vector<2x512xf32>
    tpu.vector_store %arg6[%c74, %c0_44], %161 {strides = array<i32>} : memref<128x512xf32, #tpu.memory_space<vmem>>, vector<2x512xf32>,
    %163 = vector.extract_strided_slice %9 {offsets = [0, 38], sizes = [2, 256], strides = [1, 1]} : vector<2x320xf32> to vector<2x256xf32>
    %164 = vector.extract_strided_slice %10 {offsets = [0, 38], sizes = [2, 256], strides = [1, 1]} : vector<2x320xf32> to vector<2x256xf32>
    %165 = tpu.concatenate %163, %164 in 1 : vector<2x256xf32>, vector<2x256xf32> -> vector<2x512xf32>
    %c76 = arith.constant 76 : index
    %c0_45 = arith.constant 0 : index
    %166 = vector.load %arg6[%c76, %c0_45] : memref<128x512xf32, #tpu.memory_space<vmem>>, vector<2x512xf32>
    tpu.vector_store %arg6[%c76, %c0_45], %165 {strides = array<i32>} : memref<128x512xf32, #tpu.memory_space<vmem>>, vector<2x512xf32>,
    %167 = vector.extract_strided_slice %9 {offsets = [0, 39], sizes = [2, 256], strides = [1, 1]} : vector<2x320xf32> to vector<2x256xf32>
    %168 = vector.extract_strided_slice %10 {offsets = [0, 39], sizes = [2, 256], strides = [1, 1]} : vector<2x320xf32> to vector<2x256xf32>
    %169 = tpu.concatenate %167, %168 in 1 : vector<2x256xf32>, vector<2x256xf32> -> vector<2x512xf32>
    %c78 = arith.constant 78 : index
    %c0_46 = arith.constant 0 : index
    %170 = vector.load %arg6[%c78, %c0_46] : memref<128x512xf32, #tpu.memory_space<vmem>>, vector<2x512xf32>
    tpu.vector_store %arg6[%c78, %c0_46], %169 {strides = array<i32>} : memref<128x512xf32, #tpu.memory_space<vmem>>, vector<2x512xf32>,
    %171 = vector.extract_strided_slice %9 {offsets = [0, 40], sizes = [2, 256], strides = [1, 1]} : vector<2x320xf32> to vector<2x256xf32>
    %172 = vector.extract_strided_slice %10 {offsets = [0, 40], sizes = [2, 256], strides = [1, 1]} : vector<2x320xf32> to vector<2x256xf32>
    %173 = tpu.concatenate %171, %172 in 1 : vector<2x256xf32>, vector<2x256xf32> -> vector<2x512xf32>
    %c80 = arith.constant 80 : index
    %c0_47 = arith.constant 0 : index
    %174 = vector.load %arg6[%c80, %c0_47] : memref<128x512xf32, #tpu.memory_space<vmem>>, vector<2x512xf32>
    tpu.vector_store %arg6[%c80, %c0_47], %173 {strides = array<i32>} : memref<128x512xf32, #tpu.memory_space<vmem>>, vector<2x512xf32>,
    %175 = vector.extract_strided_slice %9 {offsets = [0, 41], sizes = [2, 256], strides = [1, 1]} : vector<2x320xf32> to vector<2x256xf32>
    %176 = vector.extract_strided_slice %10 {offsets = [0, 41], sizes = [2, 256], strides = [1, 1]} : vector<2x320xf32> to vector<2x256xf32>
    %177 = tpu.concatenate %175, %176 in 1 : vector<2x256xf32>, vector<2x256xf32> -> vector<2x512xf32>
    %c82 = arith.constant 82 : index
    %c0_48 = arith.constant 0 : index
    %178 = vector.load %arg6[%c82, %c0_48] : memref<128x512xf32, #tpu.memory_space<vmem>>, vector<2x512xf32>
    tpu.vector_store %arg6[%c82, %c0_48], %177 {strides = array<i32>} : memref<128x512xf32, #tpu.memory_space<vmem>>, vector<2x512xf32>,
    %179 = vector.extract_strided_slice %9 {offsets = [0, 42], sizes = [2, 256], strides = [1, 1]} : vector<2x320xf32> to vector<2x256xf32>
    %180 = vector.extract_strided_slice %10 {offsets = [0, 42], sizes = [2, 256], strides = [1, 1]} : vector<2x320xf32> to vector<2x256xf32>
    %181 = tpu.concatenate %179, %180 in 1 : vector<2x256xf32>, vector<2x256xf32> -> vector<2x512xf32>
    %c84 = arith.constant 84 : index
    %c0_49 = arith.constant 0 : index
    %182 = vector.load %arg6[%c84, %c0_49] : memref<128x512xf32, #tpu.memory_space<vmem>>, vector<2x512xf32>
    tpu.vector_store %arg6[%c84, %c0_49], %181 {strides = array<i32>} : memref<128x512xf32, #tpu.memory_space<vmem>>, vector<2x512xf32>,
    %183 = vector.extract_strided_slice %9 {offsets = [0, 43], sizes = [2, 256], strides = [1, 1]} : vector<2x320xf32> to vector<2x256xf32>
    %184 = vector.extract_strided_slice %10 {offsets = [0, 43], sizes = [2, 256], strides = [1, 1]} : vector<2x320xf32> to vector<2x256xf32>
    %185 = tpu.concatenate %183, %184 in 1 : vector<2x256xf32>, vector<2x256xf32> -> vector<2x512xf32>
    %c86 = arith.constant 86 : index
    %c0_50 = arith.constant 0 : index
    %186 = vector.load %arg6[%c86, %c0_50] : memref<128x512xf32, #tpu.memory_space<vmem>>, vector<2x512xf32>
    tpu.vector_store %arg6[%c86, %c0_50], %185 {strides = array<i32>} : memref<128x512xf32, #tpu.memory_space<vmem>>, vector<2x512xf32>,
    %187 = vector.extract_strided_slice %9 {offsets = [0, 44], sizes = [2, 256], strides = [1, 1]} : vector<2x320xf32> to vector<2x256xf32>
    %188 = vector.extract_strided_slice %10 {offsets = [0, 44], sizes = [2, 256], strides = [1, 1]} : vector<2x320xf32> to vector<2x256xf32>
    %189 = tpu.concatenate %187, %188 in 1 : vector<2x256xf32>, vector<2x256xf32> -> vector<2x512xf32>
    %c88 = arith.constant 88 : index
    %c0_51 = arith.constant 0 : index
    %190 = vector.load %arg6[%c88, %c0_51] : memref<128x512xf32, #tpu.memory_space<vmem>>, vector<2x512xf32>
    tpu.vector_store %arg6[%c88, %c0_51], %189 {strides = array<i32>} : memref<128x512xf32, #tpu.memory_space<vmem>>, vector<2x512xf32>,
    %191 = vector.extract_strided_slice %9 {offsets = [0, 45], sizes = [2, 256], strides = [1, 1]} : vector<2x320xf32> to vector<2x256xf32>
    %192 = vector.extract_strided_slice %10 {offsets = [0, 45], sizes = [2, 256], strides = [1, 1]} : vector<2x320xf32> to vector<2x256xf32>
    %193 = tpu.concatenate %191, %192 in 1 : vector<2x256xf32>, vector<2x256xf32> -> vector<2x512xf32>
    %c90 = arith.constant 90 : index
    %c0_52 = arith.constant 0 : index
    %194 = vector.load %arg6[%c90, %c0_52] : memref<128x512xf32, #tpu.memory_space<vmem>>, vector<2x512xf32>
    tpu.vector_store %arg6[%c90, %c0_52], %193 {strides = array<i32>} : memref<128x512xf32, #tpu.memory_space<vmem>>, vector<2x512xf32>,
    %195 = vector.extract_strided_slice %9 {offsets = [0, 46], sizes = [2, 256], strides = [1, 1]} : vector<2x320xf32> to vector<2x256xf32>
    %196 = vector.extract_strided_slice %10 {offsets = [0, 46], sizes = [2, 256], strides = [1, 1]} : vector<2x320xf32> to vector<2x256xf32>
    %197 = tpu.concatenate %195, %196 in 1 : vector<2x256xf32>, vector<2x256xf32> -> vector<2x512xf32>
    %c92 = arith.constant 92 : index
    %c0_53 = arith.constant 0 : index
    %198 = vector.load %arg6[%c92, %c0_53] : memref<128x512xf32, #tpu.memory_space<vmem>>, vector<2x512xf32>
    tpu.vector_store %arg6[%c92, %c0_53], %197 {strides = array<i32>} : memref<128x512xf32, #tpu.memory_space<vmem>>, vector<2x512xf32>,
    %199 = vector.extract_strided_slice %9 {offsets = [0, 47], sizes = [2, 256], strides = [1, 1]} : vector<2x320xf32> to vector<2x256xf32>
    %200 = vector.extract_strided_slice %10 {offsets = [0, 47], sizes = [2, 256], strides = [1, 1]} : vector<2x320xf32> to vector<2x256xf32>
    %201 = tpu.concatenate %199, %200 in 1 : vector<2x256xf32>, vector<2x256xf32> -> vector<2x512xf32>
    %c94 = arith.constant 94 : index
    %c0_54 = arith.constant 0 : index
    %202 = vector.load %arg6[%c94, %c0_54] : memref<128x512xf32, #tpu.memory_space<vmem>>, vector<2x512xf32>
    tpu.vector_store %arg6[%c94, %c0_54], %201 {strides = array<i32>} : memref<128x512xf32, #tpu.memory_space<vmem>>, vector<2x512xf32>,
    %203 = vector.extract_strided_slice %9 {offsets = [0, 48], sizes = [2, 256], strides = [1, 1]} : vector<2x320xf32> to vector<2x256xf32>
    %204 = vector.extract_strided_slice %10 {offsets = [0, 48], sizes = [2, 256], strides = [1, 1]} : vector<2x320xf32> to vector<2x256xf32>
    %205 = tpu.concatenate %203, %204 in 1 : vector<2x256xf32>, vector<2x256xf32> -> vector<2x512xf32>
    %c96 = arith.constant 96 : index
    %c0_55 = arith.constant 0 : index
    %206 = vector.load %arg6[%c96, %c0_55] : memref<128x512xf32, #tpu.memory_space<vmem>>, vector<2x512xf32>
    tpu.vector_store %arg6[%c96, %c0_55], %205 {strides = array<i32>} : memref<128x512xf32, #tpu.memory_space<vmem>>, vector<2x512xf32>,
    %207 = vector.extract_strided_slice %9 {offsets = [0, 49], sizes = [2, 256], strides = [1, 1]} : vector<2x320xf32> to vector<2x256xf32>
    %208 = vector.extract_strided_slice %10 {offsets = [0, 49], sizes = [2, 256], strides = [1, 1]} : vector<2x320xf32> to vector<2x256xf32>
    %209 = tpu.concatenate %207, %208 in 1 : vector<2x256xf32>, vector<2x256xf32> -> vector<2x512xf32>
    %c98 = arith.constant 98 : index
    %c0_56 = arith.constant 0 : index
    %210 = vector.load %arg6[%c98, %c0_56] : memref<128x512xf32, #tpu.memory_space<vmem>>, vector<2x512xf32>
    tpu.vector_store %arg6[%c98, %c0_56], %209 {strides = array<i32>} : memref<128x512xf32, #tpu.memory_space<vmem>>, vector<2x512xf32>,
    %211 = vector.extract_strided_slice %9 {offsets = [0, 50], sizes = [2, 256], strides = [1, 1]} : vector<2x320xf32> to vector<2x256xf32>
    %212 = vector.extract_strided_slice %10 {offsets = [0, 50], sizes = [2, 256], strides = [1, 1]} : vector<2x320xf32> to vector<2x256xf32>
    %213 = tpu.concatenate %211, %212 in 1 : vector<2x256xf32>, vector<2x256xf32> -> vector<2x512xf32>
    %c100 = arith.constant 100 : index
    %c0_57 = arith.constant 0 : index
    %214 = vector.load %arg6[%c100, %c0_57] : memref<128x512xf32, #tpu.memory_space<vmem>>, vector<2x512xf32>
    tpu.vector_store %arg6[%c100, %c0_57], %213 {strides = array<i32>} : memref<128x512xf32, #tpu.memory_space<vmem>>, vector<2x512xf32>,
    %215 = vector.extract_strided_slice %9 {offsets = [0, 51], sizes = [2, 256], strides = [1, 1]} : vector<2x320xf32> to vector<2x256xf32>
    %216 = vector.extract_strided_slice %10 {offsets = [0, 51], sizes = [2, 256], strides = [1, 1]} : vector<2x320xf32> to vector<2x256xf32>
    %217 = tpu.concatenate %215, %216 in 1 : vector<2x256xf32>, vector<2x256xf32> -> vector<2x512xf32>
    %c102 = arith.constant 102 : index
    %c0_58 = arith.constant 0 : index
    %218 = vector.load %arg6[%c102, %c0_58] : memref<128x512xf32, #tpu.memory_space<vmem>>, vector<2x512xf32>
    tpu.vector_store %arg6[%c102, %c0_58], %217 {strides = array<i32>} : memref<128x512xf32, #tpu.memory_space<vmem>>, vector<2x512xf32>,
    %219 = vector.extract_strided_slice %9 {offsets = [0, 52], sizes = [2, 256], strides = [1, 1]} : vector<2x320xf32> to vector<2x256xf32>
    %220 = vector.extract_strided_slice %10 {offsets = [0, 52], sizes = [2, 256], strides = [1, 1]} : vector<2x320xf32> to vector<2x256xf32>
    %221 = tpu.concatenate %219, %220 in 1 : vector<2x256xf32>, vector<2x256xf32> -> vector<2x512xf32>
    %c104 = arith.constant 104 : index
    %c0_59 = arith.constant 0 : index
    %222 = vector.load %arg6[%c104, %c0_59] : memref<128x512xf32, #tpu.memory_space<vmem>>, vector<2x512xf32>
    tpu.vector_store %arg6[%c104, %c0_59], %221 {strides = array<i32>} : memref<128x512xf32, #tpu.memory_space<vmem>>, vector<2x512xf32>,
    %223 = vector.extract_strided_slice %9 {offsets = [0, 53], sizes = [2, 256], strides = [1, 1]} : vector<2x320xf32> to vector<2x256xf32>
    %224 = vector.extract_strided_slice %10 {offsets = [0, 53], sizes = [2, 256], strides = [1, 1]} : vector<2x320xf32> to vector<2x256xf32>
    %225 = tpu.concatenate %223, %224 in 1 : vector<2x256xf32>, vector<2x256xf32> -> vector<2x512xf32>
    %c106 = arith.constant 106 : index
    %c0_60 = arith.constant 0 : index
    %226 = vector.load %arg6[%c106, %c0_60] : memref<128x512xf32, #tpu.memory_space<vmem>>, vector<2x512xf32>
    tpu.vector_store %arg6[%c106, %c0_60], %225 {strides = array<i32>} : memref<128x512xf32, #tpu.memory_space<vmem>>, vector<2x512xf32>,
    %227 = vector.extract_strided_slice %9 {offsets = [0, 54], sizes = [2, 256], strides = [1, 1]} : vector<2x320xf32> to vector<2x256xf32>
    %228 = vector.extract_strided_slice %10 {offsets = [0, 54], sizes = [2, 256], strides = [1, 1]} : vector<2x320xf32> to vector<2x256xf32>
    %229 = tpu.concatenate %227, %228 in 1 : vector<2x256xf32>, vector<2x256xf32> -> vector<2x512xf32>
    %c108 = arith.constant 108 : index
    %c0_61 = arith.constant 0 : index
    %230 = vector.load %arg6[%c108, %c0_61] : memref<128x512xf32, #tpu.memory_space<vmem>>, vector<2x512xf32>
    tpu.vector_store %arg6[%c108, %c0_61], %229 {strides = array<i32>} : memref<128x512xf32, #tpu.memory_space<vmem>>, vector<2x512xf32>,
    %231 = vector.extract_strided_slice %9 {offsets = [0, 55], sizes = [2, 256], strides = [1, 1]} : vector<2x320xf32> to vector<2x256xf32>
    %232 = vector.extract_strided_slice %10 {offsets = [0, 55], sizes = [2, 256], strides = [1, 1]} : vector<2x320xf32> to vector<2x256xf32>
    %233 = tpu.concatenate %231, %232 in 1 : vector<2x256xf32>, vector<2x256xf32> -> vector<2x512xf32>
    %c110 = arith.constant 110 : index
    %c0_62 = arith.constant 0 : index
    %234 = vector.load %arg6[%c110, %c0_62] : memref<128x512xf32, #tpu.memory_space<vmem>>, vector<2x512xf32>
    tpu.vector_store %arg6[%c110, %c0_62], %233 {strides = array<i32>} : memref<128x512xf32, #tpu.memory_space<vmem>>, vector<2x512xf32>,
    %235 = vector.extract_strided_slice %9 {offsets = [0, 56], sizes = [2, 256], strides = [1, 1]} : vector<2x320xf32> to vector<2x256xf32>
    %236 = vector.extract_strided_slice %10 {offsets = [0, 56], sizes = [2, 256], strides = [1, 1]} : vector<2x320xf32> to vector<2x256xf32>
    %237 = tpu.concatenate %235, %236 in 1 : vector<2x256xf32>, vector<2x256xf32> -> vector<2x512xf32>
    %c112 = arith.constant 112 : index
    %c0_63 = arith.constant 0 : index
    %238 = vector.load %arg6[%c112, %c0_63] : memref<128x512xf32, #tpu.memory_space<vmem>>, vector<2x512xf32>
    tpu.vector_store %arg6[%c112, %c0_63], %237 {strides = array<i32>} : memref<128x512xf32, #tpu.memory_space<vmem>>, vector<2x512xf32>,
    %239 = vector.extract_strided_slice %9 {offsets = [0, 57], sizes = [2, 256], strides = [1, 1]} : vector<2x320xf32> to vector<2x256xf32>
    %240 = vector.extract_strided_slice %10 {offsets = [0, 57], sizes = [2, 256], strides = [1, 1]} : vector<2x320xf32> to vector<2x256xf32>
    %241 = tpu.concatenate %239, %240 in 1 : vector<2x256xf32>, vector<2x256xf32> -> vector<2x512xf32>
    %c114 = arith.constant 114 : index
    %c0_64 = arith.constant 0 : index
    %242 = vector.load %arg6[%c114, %c0_64] : memref<128x512xf32, #tpu.memory_space<vmem>>, vector<2x512xf32>
    tpu.vector_store %arg6[%c114, %c0_64], %241 {strides = array<i32>} : memref<128x512xf32, #tpu.memory_space<vmem>>, vector<2x512xf32>,
    %243 = vector.extract_strided_slice %9 {offsets = [0, 58], sizes = [2, 256], strides = [1, 1]} : vector<2x320xf32> to vector<2x256xf32>
    %244 = vector.extract_strided_slice %10 {offsets = [0, 58], sizes = [2, 256], strides = [1, 1]} : vector<2x320xf32> to vector<2x256xf32>
    %245 = tpu.concatenate %243, %244 in 1 : vector<2x256xf32>, vector<2x256xf32> -> vector<2x512xf32>
    %c116 = arith.constant 116 : index
    %c0_65 = arith.constant 0 : index
    %246 = vector.load %arg6[%c116, %c0_65] : memref<128x512xf32, #tpu.memory_space<vmem>>, vector<2x512xf32>
    tpu.vector_store %arg6[%c116, %c0_65], %245 {strides = array<i32>} : memref<128x512xf32, #tpu.memory_space<vmem>>, vector<2x512xf32>,
    %247 = vector.extract_strided_slice %9 {offsets = [0, 59], sizes = [2, 256], strides = [1, 1]} : vector<2x320xf32> to vector<2x256xf32>
    %248 = vector.extract_strided_slice %10 {offsets = [0, 59], sizes = [2, 256], strides = [1, 1]} : vector<2x320xf32> to vector<2x256xf32>
    %249 = tpu.concatenate %247, %248 in 1 : vector<2x256xf32>, vector<2x256xf32> -> vector<2x512xf32>
    %c118 = arith.constant 118 : index
    %c0_66 = arith.constant 0 : index
    %250 = vector.load %arg6[%c118, %c0_66] : memref<128x512xf32, #tpu.memory_space<vmem>>, vector<2x512xf32>
    tpu.vector_store %arg6[%c118, %c0_66], %249 {strides = array<i32>} : memref<128x512xf32, #tpu.memory_space<vmem>>, vector<2x512xf32>,
    %251 = vector.extract_strided_slice %9 {offsets = [0, 60], sizes = [2, 256], strides = [1, 1]} : vector<2x320xf32> to vector<2x256xf32>
    %252 = vector.extract_strided_slice %10 {offsets = [0, 60], sizes = [2, 256], strides = [1, 1]} : vector<2x320xf32> to vector<2x256xf32>
    %253 = tpu.concatenate %251, %252 in 1 : vector<2x256xf32>, vector<2x256xf32> -> vector<2x512xf32>
    %c120 = arith.constant 120 : index
    %c0_67 = arith.constant 0 : index
    %254 = vector.load %arg6[%c120, %c0_67] : memref<128x512xf32, #tpu.memory_space<vmem>>, vector<2x512xf32>
    tpu.vector_store %arg6[%c120, %c0_67], %253 {strides = array<i32>} : memref<128x512xf32, #tpu.memory_space<vmem>>, vector<2x512xf32>,
    %255 = vector.extract_strided_slice %9 {offsets = [0, 61], sizes = [2, 256], strides = [1, 1]} : vector<2x320xf32> to vector<2x256xf32>
    %256 = vector.extract_strided_slice %10 {offsets = [0, 61], sizes = [2, 256], strides = [1, 1]} : vector<2x320xf32> to vector<2x256xf32>
    %257 = tpu.concatenate %255, %256 in 1 : vector<2x256xf32>, vector<2x256xf32> -> vector<2x512xf32>
    %c122 = arith.constant 122 : index
    %c0_68 = arith.constant 0 : index
    %258 = vector.load %arg6[%c122, %c0_68] : memref<128x512xf32, #tpu.memory_space<vmem>>, vector<2x512xf32>
    tpu.vector_store %arg6[%c122, %c0_68], %257 {strides = array<i32>} : memref<128x512xf32, #tpu.memory_space<vmem>>, vector<2x512xf32>,
    %259 = vector.extract_strided_slice %9 {offsets = [0, 62], sizes = [2, 256], strides = [1, 1]} : vector<2x320xf32> to vector<2x256xf32>
    %260 = vector.extract_strided_slice %10 {offsets = [0, 62], sizes = [2, 256], strides = [1, 1]} : vector<2x320xf32> to vector<2x256xf32>
    %261 = tpu.concatenate %259, %260 in 1 : vector<2x256xf32>, vector<2x256xf32> -> vector<2x512xf32>
    %c124 = arith.constant 124 : index
    %c0_69 = arith.constant 0 : index
    %262 = vector.load %arg6[%c124, %c0_69] : memref<128x512xf32, #tpu.memory_space<vmem>>, vector<2x512xf32>
    tpu.vector_store %arg6[%c124, %c0_69], %261 {strides = array<i32>} : memref<128x512xf32, #tpu.memory_space<vmem>>, vector<2x512xf32>,
    %263 = vector.extract_strided_slice %9 {offsets = [0, 63], sizes = [2, 256], strides = [1, 1]} : vector<2x320xf32> to vector<2x256xf32>
    %264 = vector.extract_strided_slice %10 {offsets = [0, 63], sizes = [2, 256], strides = [1, 1]} : vector<2x320xf32> to vector<2x256xf32>
    %265 = tpu.concatenate %263, %264 in 1 : vector<2x256xf32>, vector<2x256xf32> -> vector<2x512xf32>
    %c126 = arith.constant 126 : index
    %c0_70 = arith.constant 0 : index
    %266 = vector.load %arg6[%c126, %c0_70] : memref<128x512xf32, #tpu.memory_space<vmem>>, vector<2x512xf32>
    tpu.vector_store %arg6[%c126, %c0_70], %265 {strides = array<i32>} : memref<128x512xf32, #tpu.memory_space<vmem>>, vector<2x512xf32>,
    %c0_71 = arith.constant 0 : index
    %c0_72 = arith.constant 0 : index
    %267 = vector.load %arg2[%c0_71, %c0_72] : memref<16x128xf32, #tpu.memory_space<vmem>>, vector<16x128xf32>
    %c0_73 = arith.constant 0 : index
    %c0_74 = arith.constant 0 : index
    %268 = vector.load %arg6[%c0_73, %c0_74] : memref<128x512xf32, #tpu.memory_space<vmem>>, vector<128x512xf32>
    %cst = arith.constant dense<0.000000e+00> : vector<16x512xf32>
    %269 = tpu.matmul %267, %268, %cst {dimension_numbers = #tpu.dot_dimension_numbers<[1], [0], [0], [1], [0, 0, 1, 1], [], []>} : vector<16x128xf32>, vector<128x512xf32>, vector<16x512xf32> -> vector<16x512xf32>
    %cst_75 = arith.constant 0.000000e+00 : f32
    %270 = vector.broadcast %cst_75 : f32 to vector<16x512xf32>
    %271 = arith.maximumf %269, %270 : vector<16x512xf32>
    %cst_76 = arith.constant 1.000000e+02 : f32
    %272 = vector.broadcast %cst_76 : f32 to vector<16x512xf32>
    %273 = arith.mulf %271, %272 : vector<16x512xf32>
    %274 = math.log1p %273 : vector<16x512xf32>
    %275 = vector.extract_strided_slice %274 {offsets = [0, 0], sizes = [16, 256], strides = [1, 1]} : vector<16x512xf32> to vector<16x256xf32>
    %276 = vector.extract_strided_slice %274 {offsets = [0, 256], sizes = [16, 256], strides = [1, 1]} : vector<16x512xf32> to vector<16x256xf32>
    %c0_77 = arith.constant 0 : index
    %c0_78 = arith.constant 0 : index
    %277 = vector.load %arg7[%c0_77, %c0_78] : memref<48x128xf32, #tpu.memory_space<vmem>>, vector<16x128xf32>
    %278 = arith.mulf %275, %276 : vector<16x256xf32>
    %279 = vector.extract_strided_slice %278 {offsets = [0, 0], sizes = [16, 128], strides = [1, 1]} : vector<16x256xf32> to vector<16x128xf32>
    %280 = vector.extract_strided_slice %278 {offsets = [0, 128], sizes = [16, 128], strides = [1, 1]} : vector<16x256xf32> to vector<16x128xf32>
    %281 = arith.addf %279, %280 : vector<16x128xf32>
    %282 = arith.addf %277, %281 : vector<16x128xf32>
    %c0_79 = arith.constant 0 : index
    %c0_80 = arith.constant 0 : index
    %283 = vector.load %arg7[%c0_79, %c0_80] : memref<48x128xf32, #tpu.memory_space<vmem>>, vector<16x128xf32>
    tpu.vector_store %arg7[%c0_79, %c0_80], %282 {strides = array<i32>} : memref<48x128xf32, #tpu.memory_space<vmem>>, vector<16x128xf32>,
    %c16_81 = arith.constant 16 : index
    %c0_82 = arith.constant 0 : index
    %284 = vector.load %arg7[%c16_81, %c0_82] : memref<48x128xf32, #tpu.memory_space<vmem>>, vector<16x128xf32>
    %285 = arith.mulf %275, %275 : vector<16x256xf32>
    %286 = vector.extract_strided_slice %285 {offsets = [0, 0], sizes = [16, 128], strides = [1, 1]} : vector<16x256xf32> to vector<16x128xf32>
    %287 = vector.extract_strided_slice %285 {offsets = [0, 128], sizes = [16, 128], strides = [1, 1]} : vector<16x256xf32> to vector<16x128xf32>
    %288 = arith.addf %286, %287 : vector<16x128xf32>
    %289 = arith.addf %284, %288 : vector<16x128xf32>
    %c16_83 = arith.constant 16 : index
    %c0_84 = arith.constant 0 : index
    %290 = vector.load %arg7[%c16_83, %c0_84] : memref<48x128xf32, #tpu.memory_space<vmem>>, vector<16x128xf32>
    tpu.vector_store %arg7[%c16_83, %c0_84], %289 {strides = array<i32>} : memref<48x128xf32, #tpu.memory_space<vmem>>, vector<16x128xf32>,
    %c32_85 = arith.constant 32 : index
    %c0_86 = arith.constant 0 : index
    %291 = vector.load %arg7[%c32_85, %c0_86] : memref<48x128xf32, #tpu.memory_space<vmem>>, vector<16x128xf32>
    %292 = arith.mulf %276, %276 : vector<16x256xf32>
    %293 = vector.extract_strided_slice %292 {offsets = [0, 0], sizes = [16, 128], strides = [1, 1]} : vector<16x256xf32> to vector<16x128xf32>
    %294 = vector.extract_strided_slice %292 {offsets = [0, 128], sizes = [16, 128], strides = [1, 1]} : vector<16x256xf32> to vector<16x128xf32>
    %295 = arith.addf %293, %294 : vector<16x128xf32>
    %296 = arith.addf %291, %295 : vector<16x128xf32>
    %c32_87 = arith.constant 32 : index
    %c0_88 = arith.constant 0 : index
    %297 = vector.load %arg7[%c32_87, %c0_88] : memref<48x128xf32, #tpu.memory_space<vmem>>, vector<16x128xf32>
    tpu.vector_store %arg7[%c32_87, %c0_88], %296 {strides = array<i32>} : memref<48x128xf32, #tpu.memory_space<vmem>>, vector<16x128xf32>,
    %c0_i32_89 = arith.constant 0 : i32
    %298 = arith.cmpi eq, %arg1, %c0_i32_89 : i32
    %299 = arith.extui %298 : i1 to i32
    %c0_i32_90 = arith.constant 0 : i32
    %300 = arith.cmpi ne, %299, %c0_i32_90 : i32
    scf.if %300 {
      %c0_91 = arith.constant 0 : index
      %c0_92 = arith.constant 0 : index
      %301 = vector.load %arg7[%c0_91, %c0_92] : memref<48x128xf32, #tpu.memory_space<vmem>>, vector<16x128xf32>
      %302 = vector.shape_cast %301 : vector<16x128xf32> to vector<1x16x128xf32>
      %cst_93 = arith.constant dense<0.000000e+00> : vector<1xf32>
      %303 = vector.multi_reduction <add>, %302, %cst_93 [1, 2] : vector<1x16x128xf32> to vector<1xf32>
      %304 = vector.shape_cast %303 : vector<1xf32> to vector<1x1x1xf32>
      %305 = vector.extract %304[0, 0, 0] : f32 from vector<1x1x1xf32>
      %c16_94 = arith.constant 16 : index
      %c0_95 = arith.constant 0 : index
      %306 = vector.load %arg7[%c16_94, %c0_95] : memref<48x128xf32, #tpu.memory_space<vmem>>, vector<16x128xf32>
      %307 = vector.shape_cast %306 : vector<16x128xf32> to vector<1x16x128xf32>
      %cst_96 = arith.constant dense<0.000000e+00> : vector<1xf32>
      %308 = vector.multi_reduction <add>, %307, %cst_96 [1, 2] : vector<1x16x128xf32> to vector<1xf32>
      %309 = vector.shape_cast %308 : vector<1xf32> to vector<1x1x1xf32>
      %310 = vector.extract %309[0, 0, 0] : f32 from vector<1x1x1xf32>
      %c32_97 = arith.constant 32 : index
      %c0_98 = arith.constant 0 : index
      %311 = vector.load %arg7[%c32_97, %c0_98] : memref<48x128xf32, #tpu.memory_space<vmem>>, vector<16x128xf32>
      %312 = vector.shape_cast %311 : vector<16x128xf32> to vector<1x16x128xf32>
      %cst_99 = arith.constant dense<0.000000e+00> : vector<1xf32>
      %313 = vector.multi_reduction <add>, %312, %cst_99 [1, 2] : vector<1x16x128xf32> to vector<1xf32>
      %314 = vector.shape_cast %313 : vector<1xf32> to vector<1x1x1xf32>
      %315 = vector.extract %314[0, 0, 0] : f32 from vector<1x1x1xf32>
      %316 = tpu.iota {dimensions = array<i32: 2>} : vector<1x8x128xi32>
      %c0_i32_100 = arith.constant 0 : i32
      %317 = vector.broadcast %c0_i32_100 : i32 to vector<1x8x128xi32>
      %318 = arith.cmpi eq, %316, %317 : vector<1x8x128xi32>
      %c1_i32 = arith.constant 1 : i32
      %319 = vector.broadcast %c1_i32 : i32 to vector<1x8x128xi32>
      %320 = arith.cmpi eq, %316, %319 : vector<1x8x128xi32>
      %c2_i32 = arith.constant 2 : i32
      %321 = vector.broadcast %c2_i32 : i32 to vector<1x8x128xi32>
      %322 = arith.cmpi eq, %316, %321 : vector<1x8x128xi32>
      %cst_101 = arith.constant 0.000000e+00 : f32
      %323 = vector.broadcast %315 : f32 to vector<1x8x128xf32>
      %324 = vector.broadcast %cst_101 : f32 to vector<1x8x128xf32>
      %325 = arith.select %322, %323, %324 : vector<1x8x128xi1>, vector<1x8x128xf32>
      %326 = vector.broadcast %310 : f32 to vector<1x8x128xf32>
      %327 = arith.select %320, %326, %325 : vector<1x8x128xi1>, vector<1x8x128xf32>
      %328 = vector.broadcast %305 : f32 to vector<1x8x128xf32>
      %329 = arith.select %318, %328, %327 : vector<1x8x128xi1>, vector<1x8x128xf32>
      %c0_102 = arith.constant 0 : index
      %c0_103 = arith.constant 0 : index
      %c0_104 = arith.constant 0 : index
      %330 = vector.load %arg5[%c0_102, %c0_103, %c0_104] : memref<1x8x128xf32, #tpu.memory_space<vmem>>, vector<1x8x128xf32>
      tpu.vector_store %arg5[%c0_102, %c0_103, %c0_104], %329 {strides = array<i32>} : memref<1x8x128xf32, #tpu.memory_space<vmem>>, vector<1x8x128xf32>,
    } else {
    }
    return
  }
  func.func @transform_0(%arg0: i32, %arg1: i32) -> (i32, i32) {
    %c0_i32 = arith.constant 0 : i32
    %c0_i32_0 = arith.constant 0 : i32
    %c0_i32_1 = arith.constant 0 : i32
    return %c0_i32, %c0_i32_0 : i32, i32
  }
  func.func @transform_1(%arg0: i32, %arg1: i32) -> (i32, i32, i32) {
    %c0_i32 = arith.constant 0 : i32
    %c0_i32_0 = arith.constant 0 : i32
    return %arg0, %c0_i32, %arg1 : i32, i32, i32
  }
  func.func @transform_2(%arg0: i32, %arg1: i32) -> (i32, i32, i32) {
    %c1_i32 = arith.constant 1 : i32
    %0 = arith.addi %arg1, %c1_i32 : i32
    %c0_i32 = arith.constant 0 : i32
    %c0_i32_0 = arith.constant 0 : i32
    return %arg0, %c0_i32, %0 : i32, i32, i32
  }
  func.func @transform_3(%arg0: i32, %arg1: i32) -> (i32, i32, i32) {
    %c0_i32 = arith.constant 0 : i32
    %c0_i32_0 = arith.constant 0 : i32
    %c0_i32_1 = arith.constant 0 : i32
    return %arg0, %c0_i32, %c0_i32_0 : i32, i32, i32
  }
}

</mosaic_0001>

<llo_original>
// kernel: tpu_custom_call.1
$region0: #{tpu_custom_call.1}
  #allocation0 [shape = 'u32[]', space=smem, size = 0x4, offset = 0x4, fixed_abs, tag = 'smem constant byte address 0x4 - core index']
  #allocation1 [shape = 'u32[72,128]{1,0:T(1,128)}', space=vmem, size = 0x9000, scoped, tag = 'internal scratch']
  #allocation2 [shape = 'f32[128,512]{1,0:T(8,128)}', space=vmem, size = 0x40000, scoped, tag = 'scratch operand']
  #allocation3 [shape = 'f32[48,128]{1,0:T(8,128)}', space=vmem, size = 0x6000, scoped, tag = 'scratch operand']
  %s0 = inlined_call_operand.hbm [shape: f32[16,128], index: 0, kind: input, shape index: {}]
  %s1 = inlined_call_operand.hbm [shape: f32[2,4,512], index: 1, kind: input, shape index: {}]
  %s2 = inlined_call_operand.hbm [shape: f32[2,4,512], index: 2, kind: input, shape index: {}]
  %s3 = inlined_call_operand.hbm [shape: f32[2,8,128], index: 3, kind: output, shape index: {}]
  %s4 = sld [smem:[#allocation0]]
  $region65: #{tpu_custom_call.1} parent=0
    _
  %s6 = ssub.s32 1, %s4
  %s7 = scalar_select 0, %s6, %s4
  $region1: #{tpu_custom_call.1} parent=0
    #allocation4 [shape = 'u8[8192]{0}', space=vmem, size = 0x2000, scoped, tag = 'input window, operand 0, single buffered']
    #allocation5 [shape = 's32[2]{0}', space=sflag, size = 0x8, scoped, tag = 'scoped memory for tpu_custom_call.1']
    #allocation6 [shape = 's32[2]{0}', space=sflag, size = 0x8, scoped, tag = 'scoped memory for tpu_custom_call.1']
    #allocation7 [shape = 'u8[8192]{0}', space=vmem, size = 0x2000, scoped, tag = 'input window, operand 1']
    #allocation8 [shape = 's32[2]{0}', space=sflag, size = 0x8, scoped, tag = 'scoped memory for tpu_custom_call.1']
    #allocation9 [shape = 'u8[8192]{0}', space=vmem, size = 0x2000, scoped, tag = 'input window, operand 2']
    #allocation10 [shape = 'u8[8192]{0}', space=vmem, size = 0x2000, scoped, tag = 'output window, operand 0']
    %8 = vsyncpa [#allocation5], 0
    %9 = vsyncpa [#allocation8], 0
    %s10 = scalar_lea.sflag [#allocation8], 1
    %11 = vsyncpa %s10, 0
    %12 = vsyncpa [#allocation6], 0
    %s13 = scalar_lea.sflag [#allocation6], 1
    %14 = vsyncpa %s13, 0
    loop: start=0, step=1, limit=4
    $region2: #{tpu_custom_call.1} parent=1 // loop_pre_header
      _
    $region3: #{tpu_custom_call.1} parent=1 // loop_header
      %s16 = sphi 0, %s20
      %p17 = scmp.ge.s32.totalorder %s16, 4
      %s23 = sphi 0, %s35
      %s24 = sphi 0, %s31
      %s25 = sphi 0, %s23
      %s26 = sphi 0, %s24
      %s27 = sphi 0, %s25
      %s28 = sphi 0, %s26
      %s36 = sphi 0, %s36
      %s38 = sphi 0, %s36
      %s39 = sphi 0, %s38
      %s53 = sphi 0, %s39
      %s61 = sphi 0, %s63
      %s64 = sphi 0, %s61
      %s65 = sphi 0, %s64
      %s81 = sphi 0, %s65
      %s91 = sphi 0, %s93
      %s94 = sphi 0, %s91
      %s95 = sphi 0, %s94
      %s111 = sphi 0, %s95
      %s117 = sphi 0, %s119
      %s120 = sphi 0, %s117
      %s121 = sphi 0, %s120
      %s137 = sphi 0, %s121
    $region4: #{tpu_custom_call.1} parent=1 // loop_header_branch
      %19 = sbr.rel (%p17) target = $region8
    $region5: #{tpu_custom_call.1} parent=1 // loop_body
      %s21 = ssub.s32 %s16, 1
      %s22 = ssub.s32 %s16, 2
      %s29 = sadd.s32 1, %s24
      %p30 = scmp.ge.s32.totalorder %s29, 1
      %s31 = scalar_select %p30, 0, %s29
      %s32 = sadd.s32 1, %s23
      %s33 = scalar_select %p30, %s32, %s23
      %p34 = scmp.ge.s32.totalorder %s33, 2
      %s35 = scalar_select %p34, 0, %s33
      %s37 = sadd.s32 %s36, 1
      %p40 = scmp.eq.s32.totalorder %s16, 1
      %p41 = scmp.ne.s32.totalorder %s36, %s38
      %p42 = scmp.eq.s32.totalorder %s16, 0
      %p43 = por %p41, %p42
      %p44 = scmp.ne.s32.totalorder %s36, %s38
      %p45 = scmp.eq.s32.totalorder %s21, 1
      %p46 = por %p44, %p45
      %p47 = scmp.ne.s32.totalorder %s38, %s39
      %p48 = scmp.eq.s32.totalorder %s21, 0
      %p49 = por %p47, %p48
      %p50 = scmp.ne.s32.totalorder %s38, %s39
      %p51 = scmp.eq.s32.totalorder %s22, 1
      %p52 = por %p50, %p51
      %p54 = scmp.ne.s32.totalorder %s39, %s53
      %p55 = scmp.eq.s32.totalorder %s22, 0
      %p56 = por %p54, %p55
      %s57 = ssub.s32 %s23, %s35
      %s58 = ssub.s32 %s24, %s31
      %s59 = sor.u32 %s57, %s58
      %p60 = scmp.eq.s32.totalorder %s59, 0
      %s62 = sadd.s32 %s61, 1
      %s63 = scalar_select %p60, %s61, %s62
      %p66 = pneg %p60
      %p67 = scmp.eq.s32.totalorder %s16, 1
      %p68 = por %p66, %p67
      %p69 = scmp.ne.s32.totalorder %s61, %s64
      %p70 = scmp.eq.s32.totalorder %s16, 0
      %p71 = por %p69, %p70
      %p72 = scmp.ne.s32.totalorder %s61, %s64
      %p73 = scmp.eq.s32.totalorder %s21, 1
      %p74 = por %p72, %p73
      %p75 = scmp.ne.s32.totalorder %s64, %s65
      %p76 = scmp.eq.s32.totalorder %s21, 0
      %p77 = por %p75, %p76
      %p78 = scmp.ne.s32.totalorder %s64, %s65
      %p79 = scmp.eq.s32.totalorder %s22, 1
      %p80 = por %p78, %p79
      %p82 = scmp.ne.s32.totalorder %s65, %s81
      %p83 = scmp.eq.s32.totalorder %s22, 0
      %p84 = por %p82, %p83
      %s85 = sadd.s32 %s24, 1
      %s86 = sadd.s32 %s31, 1
      %s87 = ssub.s32 %s23, %s35
      %s88 = ssub.s32 %s85, %s86
      %s89 = sor.u32 %s87, %s88
      %p90 = scmp.eq.s32.totalorder %s89, 0
      %s92 = sadd.s32 %s91, 1
      %s93 = scalar_select %p90, %s91, %s92
      %p96 = pneg %p90
      %p97 = scmp.eq.s32.totalorder %s16, 1
      %p98 = por %p96, %p97
      %p99 = scmp.ne.s32.totalorder %s91, %s94
      %p100 = scmp.eq.s32.totalorder %s16, 0
      %p101 = por %p99, %p100
      %p102 = scmp.ne.s32.totalorder %s91, %s94
      %p103 = scmp.eq.s32.totalorder %s21, 1
      %p104 = por %p102, %p103
      %p105 = scmp.ne.s32.totalorder %s94, %s95
      %p106 = scmp.eq.s32.totalorder %s21, 0
      %p107 = por %p105, %p106
      %p108 = scmp.ne.s32.totalorder %s94, %s95
      %p109 = scmp.eq.s32.totalorder %s22, 1
      %p110 = por %p108, %p109
      %p112 = scmp.ne.s32.totalorder %s95, %s111
      %p113 = scmp.eq.s32.totalorder %s22, 0
      %p114 = por %p112, %p113
      %s115 = ssub.s32 %s23, %s35
      %p116 = scmp.eq.s32.totalorder %s115, 0
      %s118 = sadd.s32 %s117, 1
      %s119 = scalar_select %p116, %s117, %s118
      %p122 = pneg %p116
      %p123 = scmp.eq.s32.totalorder %s16, 1
      %p124 = por %p122, %p123
      %p125 = scmp.ne.s32.totalorder %s117, %s120
      %p126 = scmp.eq.s32.totalorder %s16, 0
      %p127 = por %p125, %p126
      %p128 = scmp.ne.s32.totalorder %s117, %s120
      %p129 = scmp.eq.s32.totalorder %s21, 1
      %p130 = por %p128, %p129
      %p131 = scmp.ne.s32.totalorder %s120, %s121
      %p132 = scmp.eq.s32.totalorder %s21, 0
      %p133 = por %p131, %p132
      %p134 = scmp.ne.s32.totalorder %s120, %s121
      %p135 = scmp.eq.s32.totalorder %s22, 1
      %p136 = por %p134, %p135
      %p138 = scmp.ne.s32.totalorder %s121, %s137
      %p139 = scmp.eq.s32.totalorder %s22, 0
      %p140 = por %p138, %p139
      %p141 = scmp.le.s32.totalorder 1, %s16
      %p142 = scmp.lt.s32.totalorder %s16, 3
      %p143 = pnand %p141, %p142
      %p144 = pneg %p143
      // Predicated region
      $region9: #{tpu_custom_call.1} parent=5 // pred_check
        _
      $region10: #{tpu_custom_call.1} parent=5 // pred_check_branch
        %146 = sbr.rel (%p143) target = $region12
      $region11: #{tpu_custom_call.1} parent=5 // pred_region
        %s147 = ssub.s32 %s16, 1
        // Predicated region
        $region13: #{tpu_custom_call.1} parent=11 // pred_check
          %p148 = pneg %p49
        $region14: #{tpu_custom_call.1} parent=11 // pred_check_branch
          %150 = sbr.rel (%p148) target = $region16
        $region15: #{tpu_custom_call.1} parent=11 // pred_region
          %152 = vsyncadd [#allocation5], 0
          %s153 = sshll.u32 %s0, 4
          %s154 = int_to_ptr.hbm [resolvable:$true] %s153
          %s155 = sshll.u32 [#allocation4], 4
          %s156 = int_to_ptr.vmem [resolvable:$true] %s155
          %161 = dma.hbm_to_vmem [thread:$0]  %s154, 256, %s156, [#allocation5], 128, 128, 8
        $region16: #{tpu_custom_call.1} parent=11 // pred_fallthru
          _
      $region12: #{tpu_custom_call.1} parent=5 // pred_fallthru
        _
      %p162 = scmp.lt.s32.totalorder %s16, 2
      // Predicated region
      $region17: #{tpu_custom_call.1} parent=5 // pred_check
        %p163 = pneg %p162
      $region18: #{tpu_custom_call.1} parent=5 // pred_check_branch
        %165 = sbr.rel (%p163) target = $region20
      $region19: #{tpu_custom_call.1} parent=5 // pred_region
        // Predicated region
        $region21: #{tpu_custom_call.1} parent=19 // pred_check
          %p166 = pneg %p71
        $region22: #{tpu_custom_call.1} parent=19 // pred_check_branch
          %168 = sbr.rel (%p166) target = $region24
        $region23: #{tpu_custom_call.1} parent=19 // pred_region
          %s169 = sand.u32 %s16, 1
          %s170 = scalar_lea.sflag [#allocation8], %s169
          %s171 = sand.u32 %s61, 1
          %s172 = smul.addr %s171, 8
          %s173 = scalar_lea.vmem [#allocation7], %s172
          %s174 = smul.u32 2, %s24
          %176 = vsyncadd %s170, 0
          %s177 = smul.addr %s23, 4
          %s178 = sadd.s32 %s174, %s177
          %s179 = smul.addr %s178, 4
          %s180 = scalar_lea.hbm %s1, %s179
          %s182 = sshll.u32 %s180, 4
          %s183 = int_to_ptr.hbm [resolvable:$true] %s182
          %s184 = sshll.u32 %s173, 4
          %s185 = int_to_ptr.vmem [resolvable:$true] %s184
          %187 = dma.hbm_to_vmem [thread:$0]  %s183, 128, %s185, %s170
        $region24: #{tpu_custom_call.1} parent=19 // pred_fallthru
          _
        // Predicated region
        $region25: #{tpu_custom_call.1} parent=19 // pred_check
          %p188 = pneg %p101
        $region26: #{tpu_custom_call.1} parent=19 // pred_check_branch
          %190 = sbr.rel (%p188) target = $region28
        $region27: #{tpu_custom_call.1} parent=19 // pred_region
          %s191 = sand.u32 %s16, 1
          %s192 = scalar_lea.sflag [#allocation8], %s191
          %s193 = sand.u32 %s91, 1
          %s194 = smul.addr %s193, 8
          %s195 = scalar_lea.vmem [#allocation9], %s194
          %s196 = sadd.s32 %s24, 1
          %s197 = smul.u32 2, %s196
          %199 = vsyncadd %s192, 0
          %s200 = smul.addr %s23, 4
          %s201 = sadd.s32 %s197, %s200
          %s202 = smul.addr %s201, 4
          %s203 = scalar_lea.hbm %s2, %s202
          %s205 = sshll.u32 %s203, 4
          %s206 = int_to_ptr.hbm [resolvable:$true] %s205
          %s207 = sshll.u32 %s195, 4
          %s208 = int_to_ptr.vmem [resolvable:$true] %s207
          %210 = dma.hbm_to_vmem [thread:$0]  %s206, 128, %s208, %s192
        $region28: #{tpu_custom_call.1} parent=19 // pred_fallthru
          _
      $region20: #{tpu_custom_call.1} parent=5 // pred_fallthru
        _
      %p211 = scmp.le.s32.totalorder 1, %s16
      %p212 = scmp.lt.s32.totalorder %s16, 3
      %p213 = pnand %p211, %p212
      %p214 = pneg %p213
      // Predicated region
      $region29: #{tpu_custom_call.1} parent=5 // pred_check
        _
      $region30: #{tpu_custom_call.1} parent=5 // pred_check_branch
        %216 = sbr.rel (%p213) target = $region32
      $region31: #{tpu_custom_call.1} parent=5 // pred_region
        %s217 = ssub.s32 %s16, 1
        // Predicated region
        $region33: #{tpu_custom_call.1} parent=31 // pred_check
          %p218 = pneg %p49
        $region34: #{tpu_custom_call.1} parent=31 // pred_check_branch
          %220 = sbr.rel (%p218) target = $region36
        $region35: #{tpu_custom_call.1} parent=31 // pred_region
          %222 = dma.done [#allocation5], 256
        $region36: #{tpu_custom_call.1} parent=31 // pred_fallthru
          _
        %s223 = sand.u32 %s21, 1
        %s224 = scalar_lea.sflag [#allocation8], %s223
        %s225 = sand.u32 %s64, 1
        %s226 = smul.addr %s225, 8
        %s227 = scalar_lea.vmem [#allocation7], %s226
        // Predicated region
        $region37: #{tpu_custom_call.1} parent=31 // pred_check
          %p228 = pneg %p77
        $region38: #{tpu_custom_call.1} parent=31 // pred_check_branch
          %230 = sbr.rel (%p228) target = $region40
        $region39: #{tpu_custom_call.1} parent=31 // pred_region
          %232 = dma.done %s224, 128
        $region40: #{tpu_custom_call.1} parent=31 // pred_fallthru
          _
        %s233 = sand.u32 %s21, 1
        %s234 = scalar_lea.sflag [#allocation8], %s233
        %s235 = sand.u32 %s94, 1
        %s236 = smul.addr %s235, 8
        %s237 = scalar_lea.vmem [#allocation9], %s236
        // Predicated region
        $region41: #{tpu_custom_call.1} parent=31 // pred_check
          %p238 = pneg %p107
        $region42: #{tpu_custom_call.1} parent=31 // pred_check_branch
          %240 = sbr.rel (%p238) target = $region44
        $region43: #{tpu_custom_call.1} parent=31 // pred_region
          %242 = dma.done %s234, 128
        $region44: #{tpu_custom_call.1} parent=31 // pred_fallthru
          _
        %p243 = pneg %p49
        %p244 = pneg %p46
        %s245 = sand.u32 %s21, 1
        %s246 = scalar_lea.sflag [#allocation8], %s245
        %s247 = sand.u32 %s64, 1
        %s248 = smul.addr %s247, 8
        %s249 = scalar_lea.vmem [#allocation7], %s248
        %p250 = pneg %p77
        %p251 = pneg %p74
        %s252 = sand.u32 %s21, 1
        %s253 = scalar_lea.sflag [#allocation8], %s252
        %s254 = sand.u32 %s94, 1
        %s255 = smul.addr %s254, 8
        %s256 = scalar_lea.vmem [#allocation9], %s255
        %p257 = pneg %p107
        %p258 = pneg %p104
        %p259 = pneg %p133
        %p260 = pneg %p130
        %s261 = sand.u32 %s120, 1
        %s262 = scalar_lea.sflag [#allocation6], %s261
        %s263 = sand.u32 %s120, 1
        %s264 = smul.addr %s263, 8
        %s265 = scalar_lea.vmem [#allocation10], %s264
        %s266 = smul.u32 2, %s26
        %s267 = sadd.s32 %s26, 1
        %s268 = smul.u32 2, %s267
        %p269 = scmp.eq.s32.totalorder %s26, 0
        // Predicated region
        $region45: #{tpu_custom_call.1} parent=31 // pred_check
          %p270 = pneg %p269
        $region46: #{tpu_custom_call.1} parent=31 // pred_check_branch
          %272 = sbr.rel (%p270) target = $region48
        $region47: #{tpu_custom_call.1} parent=31 // pred_region
          %273 = vst [vmem:[#allocation3] sm:$0xff] 0.0
          %274 = vst [vmem:[#allocation3 + $0x8] sm:$0xff] 0.0
          %275 = vst [vmem:[#allocation3 + $0x10] sm:$0xff] 0.0
          %276 = vst [vmem:[#allocation3 + $0x18] sm:$0xff] 0.0
          %277 = vst [vmem:[#allocation3 + $0x20] sm:$0xff] 0.0
          %278 = vst [vmem:[#allocation3 + $0x28] sm:$0xff] 0.0
        $region48: #{tpu_custom_call.1} parent=31 // pred_fallthru
          _
        %v279 = vld [vmem:[%s227] sm:$0xff]
        %v280 = vld [vmem:[%s237] sm:$0xff]
        %282 = vst [vmem:[#allocation1] ss:$2 sm:$0xff] %v279
        %v283 = vld.sshfl [vmem:[#allocation1] sm:$0xff pattern:$0x75316420]
        %v284 = vld.sshfl [vmem:[#allocation1 + $0x8] sm:$0xff pattern:$0x75316420]
        %v287 = vrot.slane %v283, 2
        %v288 = vrot.slane %v284, 2
        %291 = vst [vmem:[#allocation2] sm:$0x3] %v283
        %292 = vst [vmem:[#allocation2 + $0x8] sm:$0x3] %v284
        %293 = vst [vmem:[#allocation2 + $0x10] sm:$0x3] %v287
        %294 = vst [vmem:[#allocation2 + $0x18] sm:$0x3] %v288
        %296 = vrot.lane.b32.xlu0 %v283, 127
        %v297 = vpop.permute.xlu0 %296
        %298 = vrot.lane.b32.xlu0 %v284, 127
        %v299 = vpop.permute.xlu0 %298
        %300 = vrot.lane.b32.xlu0 %v280, 127
        %v301 = vpop.permute.xlu0 %300
        %vm302 = vcmask 1039360
        %v303 = vsel %vm302, %v297, %v299
        %v304 = vsel %vm302, %v299, %v301
        %v305 = vrot.slane %v280, 2
        %306 = vrot.lane.b32.xlu0 %v287, 127
        %v307 = vpop.permute.xlu0 %306
        %308 = vrot.lane.b32.xlu0 %v288, 127
        %v309 = vpop.permute.xlu0 %308
        %310 = vrot.lane.b32.xlu0 %v305, 127
        %v311 = vpop.permute.xlu0 %310
        %v312 = vsel %vm302, %v307, %v309
        %v313 = vsel %vm302, %v309, %v311
        %v314 = vrot.slane %v303, 6
        %v315 = vrot.slane %v304, 6
        %v316 = vrot.slane %v312, 6
        %v317 = vrot.slane %v313, 6
        %322 = vst [vmem:[#allocation2] sm:$0xc] %v314
        %323 = vst [vmem:[#allocation2 + $0x8] sm:$0xc] %v315
        %324 = vst [vmem:[#allocation2 + $0x10] sm:$0xc] %v316
        %325 = vst [vmem:[#allocation2 + $0x18] sm:$0xc] %v317
        %326 = vrot.lane.b32.xlu0 %v283, 126
        %v327 = vpop.permute.xlu0 %326
        %328 = vrot.lane.b32.xlu0 %v284, 126
        %v329 = vpop.permute.xlu0 %328
        %330 = vrot.lane.b32.xlu0 %v280, 126
        %v331 = vpop.permute.xlu0 %330
        %vm332 = vcmask 1031168
        %v333 = vsel %vm332, %v327, %v329
        %v334 = vsel %vm332, %v329, %v331
        %335 = vrot.lane.b32.xlu0 %v287, 126
        %v336 = vpop.permute.xlu0 %335
        %337 = vrot.lane.b32.xlu0 %v288, 126
        %v338 = vpop.permute.xlu0 %337
        %339 = vrot.lane.b32.xlu0 %v305, 126
        %v340 = vpop.permute.xlu0 %339
        %v341 = vsel %vm332, %v336, %v338
        %v342 = vsel %vm332, %v338, %v340
        %v343 = vrot.slane %v333, 4
        %v344 = vrot.slane %v334, 4
        %v345 = vrot.slane %v341, 4
        %v346 = vrot.slane %v342, 4
        %351 = vst [vmem:[#allocation2] sm:$0x30] %v343
        %352 = vst [vmem:[#allocation2 + $0x8] sm:$0x30] %v344
        %353 = vst [vmem:[#allocation2 + $0x10] sm:$0x30] %v345
        %354 = vst [vmem:[#allocation2 + $0x18] sm:$0x30] %v346
        %355 = vrot.lane.b32.xlu0 %v283, 125
        %v356 = vpop.permute.xlu0 %355
        %357 = vrot.lane.b32.xlu0 %v284, 125
        %v358 = vpop.permute.xlu0 %357
        %359 = vrot.lane.b32.xlu0 %v280, 125
        %v360 = vpop.permute.xlu0 %359
        %vm361 = vcmask 1022976
        %v362 = vsel %vm361, %v356, %v358
        %v363 = vsel %vm361, %v358, %v360
        %364 = vrot.lane.b32.xlu0 %v287, 125
        %v365 = vpop.permute.xlu0 %364
        %366 = vrot.lane.b32.xlu0 %v288, 125
        %v367 = vpop.permute.xlu0 %366
        %368 = vrot.lane.b32.xlu0 %v305, 125
        %v369 = vpop.permute.xlu0 %368
        %v370 = vsel %vm361, %v365, %v367
        %v371 = vsel %vm361, %v367, %v369
        %v372 = vrot.slane %v362, 2
        %v373 = vrot.slane %v363, 2
        %v374 = vrot.slane %v370, 2
        %v375 = vrot.slane %v371, 2
        %380 = vst [vmem:[#allocation2] sm:$0xc0] %v372
        %381 = vst [vmem:[#allocation2 + $0x8] sm:$0xc0] %v373
        %382 = vst [vmem:[#allocation2 + $0x10] sm:$0xc0] %v374
        %383 = vst [vmem:[#allocation2 + $0x18] sm:$0xc0] %v375
        %384 = vrot.lane.b32.xlu0 %v283, 124
        %v385 = vpop.permute.xlu0 %384
        %386 = vrot.lane.b32.xlu0 %v284, 124
        %v387 = vpop.permute.xlu0 %386
        %388 = vrot.lane.b32.xlu0 %v280, 124
        %v389 = vpop.permute.xlu0 %388
        %vm390 = vcmask 1014784
        %v391 = vsel %vm390, %v385, %v387
        %v392 = vsel %vm390, %v387, %v389
        %395 = vrot.lane.b32.xlu0 %v287, 124
        %v396 = vpop.permute.xlu0 %395
        %397 = vrot.lane.b32.xlu0 %v288, 124
        %v398 = vpop.permute.xlu0 %397
        %399 = vrot.lane.b32.xlu0 %v305, 124
        %v400 = vpop.permute.xlu0 %399
        %v401 = vsel %vm390, %v396, %v398
        %v402 = vsel %vm390, %v398, %v400
        %405 = vst [vmem:[#allocation2 + $0x20] sm:$0x3] %v391
        %406 = vst [vmem:[#allocation2 + $0x28] sm:$0x3] %v392
        %407 = vst [vmem:[#allocation2 + $0x30] sm:$0x3] %v401
        %408 = vst [vmem:[#allocation2 + $0x38] sm:$0x3] %v402
        %409 = vrot.lane.b32.xlu0 %v283, 123
        %v410 = vpop.permute.xlu0 %409
        %411 = vrot.lane.b32.xlu0 %v284, 123
        %v412 = vpop.permute.xlu0 %411
        %413 = vrot.lane.b32.xlu0 %v280, 123
        %v414 = vpop.permute.xlu0 %413
        %vm415 = vcmask 1006592
        %v416 = vsel %vm415, %v410, %v412
        %v417 = vsel %vm415, %v412, %v414
        %418 = vrot.lane.b32.xlu0 %v287, 123
        %v419 = vpop.permute.xlu0 %418
        %420 = vrot.lane.b32.xlu0 %v288, 123
        %v421 = vpop.permute.xlu0 %420
        %422 = vrot.lane.b32.xlu0 %v305, 123
        %v423 = vpop.permute.xlu0 %422
        %v424 = vsel %vm415, %v419, %v421
        %v425 = vsel %vm415, %v421, %v423
        %v426 = vrot.slane %v416, 6
        %v427 = vrot.slane %v417, 6
        %v428 = vrot.slane %v424, 6
        %v429 = vrot.slane %v425, 6
        %434 = vst [vmem:[#allocation2 + $0x20] sm:$0xc] %v426
        %435 = vst [vmem:[#allocation2 + $0x28] sm:$0xc] %v427
        %436 = vst [vmem:[#allocation2 + $0x30] sm:$0xc] %v428
        %437 = vst [vmem:[#allocation2 + $0x38] sm:$0xc] %v429
        %438 = vrot.lane.b32.xlu0 %v283, 122
        %v439 = vpop.permute.xlu0 %438
        %440 = vrot.lane.b32.xlu0 %v284, 122
        %v441 = vpop.permute.xlu0 %440
        %442 = vrot.lane.b32.xlu0 %v280, 122
        %v443 = vpop.permute.xlu0 %442
        %vm444 = vcmask 998400
        %v445 = vsel %vm444, %v439, %v441
        %v446 = vsel %vm444, %v441, %v443
        %447 = vrot.lane.b32.xlu0 %v287, 122
        %v448 = vpop.permute.xlu0 %447
        %449 = vrot.lane.b32.xlu0 %v288, 122
        %v450 = vpop.permute.xlu0 %449
        %451 = vrot.lane.b32.xlu0 %v305, 122
        %v452 = vpop.permute.xlu0 %451
        %v453 = vsel %vm444, %v448, %v450
        %v454 = vsel %vm444, %v450, %v452
        %v455 = vrot.slane %v445, 4
        %v456 = vrot.slane %v446, 4
        %v457 = vrot.slane %v453, 4
        %v458 = vrot.slane %v454, 4
        %463 = vst [vmem:[#allocation2 + $0x20] sm:$0x30] %v455
        %464 = vst [vmem:[#allocation2 + $0x28] sm:$0x30] %v456
        %465 = vst [vmem:[#allocation2 + $0x30] sm:$0x30] %v457
        %466 = vst [vmem:[#allocation2 + $0x38] sm:$0x30] %v458
        %467 = vrot.lane.b32.xlu0 %v283, 121
        %v468 = vpop.permute.xlu0 %467
        %469 = vrot.lane.b32.xlu0 %v284, 121
        %v470 = vpop.permute.xlu0 %469
        %471 = vrot.lane.b32.xlu0 %v280, 121
        %v472 = vpop.permute.xlu0 %471
        %vm473 = vcmask 990208
        %v474 = vsel %vm473, %v468, %v470
        %v475 = vsel %vm473, %v470, %v472
        %476 = vrot.lane.b32.xlu0 %v287, 121
        %v477 = vpop.permute.xlu0 %476
        %478 = vrot.lane.b32.xlu0 %v288, 121
        %v479 = vpop.permute.xlu0 %478
        %480 = vrot.lane.b32.xlu0 %v305, 121
        %v481 = vpop.permute.xlu0 %480
        %v482 = vsel %vm473, %v477, %v479
        %v483 = vsel %vm473, %v479, %v481
        %v484 = vrot.slane %v474, 2
        %v485 = vrot.slane %v475, 2
        %v486 = vrot.slane %v482, 2
        %v487 = vrot.slane %v483, 2
        %492 = vst [vmem:[#allocation2 + $0x20] sm:$0xc0] %v484
        %493 = vst [vmem:[#allocation2 + $0x28] sm:$0xc0] %v485
        %494 = vst [vmem:[#allocation2 + $0x30] sm:$0xc0] %v486
        %495 = vst [vmem:[#allocation2 + $0x38] sm:$0xc0] %v487
        %496 = vrot.lane.b32.xlu0 %v283, 120
        %v497 = vpop.permute.xlu0 %496
        %498 = vrot.lane.b32.xlu0 %v284, 120
        %v499 = vpop.permute.xlu0 %498
        %500 = vrot.lane.b32.xlu0 %v280, 120
        %v501 = vpop.permute.xlu0 %500
        %vm502 = vcmask 982016
        %v503 = vsel %vm502, %v497, %v499
        %v504 = vsel %vm502, %v499, %v501
        %507 = vrot.lane.b32.xlu0 %v287, 120
        %v508 = vpop.permute.xlu0 %507
        %509 = vrot.lane.b32.xlu0 %v288, 120
        %v510 = vpop.permute.xlu0 %509
        %511 = vrot.lane.b32.xlu0 %v305, 120
        %v512 = vpop.permute.xlu0 %511
        %v513 = vsel %vm502, %v508, %v510
        %v514 = vsel %vm502, %v510, %v512
        %517 = vst [vmem:[#allocation2 + $0x40] sm:$0x3] %v503
        %518 = vst [vmem:[#allocation2 + $0x48] sm:$0x3] %v504
        %519 = vst [vmem:[#allocation2 + $0x50] sm:$0x3] %v513
        %520 = vst [vmem:[#allocation2 + $0x58] sm:$0x3] %v514
        %521 = vrot.lane.b32.xlu0 %v283, 119
        %v522 = vpop.permute.xlu0 %521
        %523 = vrot.lane.b32.xlu0 %v284, 119
        %v524 = vpop.permute.xlu0 %523
        %525 = vrot.lane.b32.xlu0 %v280, 119
        %v526 = vpop.permute.xlu0 %525
        %vm527 = vcmask 973824
        %v528 = vsel %vm527, %v522, %v524
        %v529 = vsel %vm527, %v524, %v526
        %530 = vrot.lane.b32.xlu0 %v287, 119
        %v531 = vpop.permute.xlu0 %530
        %532 = vrot.lane.b32.xlu0 %v288, 119
        %v533 = vpop.permute.xlu0 %532
        %534 = vrot.lane.b32.xlu0 %v305, 119
        %v535 = vpop.permute.xlu0 %534
        %v536 = vsel %vm527, %v531, %v533
        %v537 = vsel %vm527, %v533, %v535
        %v538 = vrot.slane %v528, 6
        %v539 = vrot.slane %v529, 6
        %v540 = vrot.slane %v536, 6
        %v541 = vrot.slane %v537, 6
        %546 = vst [vmem:[#allocation2 + $0x40] sm:$0xc] %v538
        %547 = vst [vmem:[#allocation2 + $0x48] sm:$0xc] %v539
        %548 = vst [vmem:[#allocation2 + $0x50] sm:$0xc] %v540
        %549 = vst [vmem:[#allocation2 + $0x58] sm:$0xc] %v541
        %550 = vrot.lane.b32.xlu0 %v283, 118
        %v551 = vpop.permute.xlu0 %550
        %552 = vrot.lane.b32.xlu0 %v284, 118
        %v553 = vpop.permute.xlu0 %552
        %554 = vrot.lane.b32.xlu0 %v280, 118
        %v555 = vpop.permute.xlu0 %554
        %vm556 = vcmask 965632
        %v557 = vsel %vm556, %v551, %v553
        %v558 = vsel %vm556, %v553, %v555
        %559 = vrot.lane.b32.xlu0 %v287, 118
        %v560 = vpop.permute.xlu0 %559
        %561 = vrot.lane.b32.xlu0 %v288, 118
        %v562 = vpop.permute.xlu0 %561
        %563 = vrot.lane.b32.xlu0 %v305, 118
        %v564 = vpop.permute.xlu0 %563
        %v565 = vsel %vm556, %v560, %v562
        %v566 = vsel %vm556, %v562, %v564
        %v567 = vrot.slane %v557, 4
        %v568 = vrot.slane %v558, 4
        %v569 = vrot.slane %v565, 4
        %v570 = vrot.slane %v566, 4
        %575 = vst [vmem:[#allocation2 + $0x40] sm:$0x30] %v567
        %576 = vst [vmem:[#allocation2 + $0x48] sm:$0x30] %v568
        %577 = vst [vmem:[#allocation2 + $0x50] sm:$0x30] %v569
        %578 = vst [vmem:[#allocation2 + $0x58] sm:$0x30] %v570
        %579 = vrot.lane.b32.xlu0 %v283, 117
        %v580 = vpop.permute.xlu0 %579
        %581 = vrot.lane.b32.xlu0 %v284, 117
        %v582 = vpop.permute.xlu0 %581
        %583 = vrot.lane.b32.xlu0 %v280, 117
        %v584 = vpop.permute.xlu0 %583
        %vm585 = vcmask 957440
        %v586 = vsel %vm585, %v580, %v582
        %v587 = vsel %vm585, %v582, %v584
        %588 = vrot.lane.b32.xlu0 %v287, 117
        %v589 = vpop.permute.xlu0 %588
        %590 = vrot.lane.b32.xlu0 %v288, 117
        %v591 = vpop.permute.xlu0 %590
        %592 = vrot.lane.b32.xlu0 %v305, 117
        %v593 = vpop.permute.xlu0 %592
        %v594 = vsel %vm585, %v589, %v591
        %v595 = vsel %vm585, %v591, %v593
        %v596 = vrot.slane %v586, 2
        %v597 = vrot.slane %v587, 2
        %v598 = vrot.slane %v594, 2
        %v599 = vrot.slane %v595, 2
        %604 = vst [vmem:[#allocation2 + $0x40] sm:$0xc0] %v596
        %605 = vst [vmem:[#allocation2 + $0x48] sm:$0xc0] %v597
        %606 = vst [vmem:[#allocation2 + $0x50] sm:$0xc0] %v598
        %607 = vst [vmem:[#allocation2 + $0x58] sm:$0xc0] %v599
        %608 = vrot.lane.b32.xlu0 %v283, 116
        %v609 = vpop.permute.xlu0 %608
        %610 = vrot.lane.b32.xlu0 %v284, 116
        %v611 = vpop.permute.xlu0 %610
        %612 = vrot.lane.b32.xlu0 %v280, 116
        %v613 = vpop.permute.xlu0 %612
        %vm614 = vcmask 949248
        %v615 = vsel %vm614, %v609, %v611
        %v616 = vsel %vm614, %v611, %v613
        %619 = vrot.lane.b32.xlu0 %v287, 116
        %v620 = vpop.permute.xlu0 %619
        %621 = vrot.lane.b32.xlu0 %v288, 116
        %v622 = vpop.permute.xlu0 %621
        %623 = vrot.lane.b32.xlu0 %v305, 116
        %v624 = vpop.permute.xlu0 %623
        %v625 = vsel %vm614, %v620, %v622
        %v626 = vsel %vm614, %v622, %v624
        %629 = vst [vmem:[#allocation2 + $0x60] sm:$0x3] %v615
        %630 = vst [vmem:[#allocation2 + $0x68] sm:$0x3] %v616
        %631 = vst [vmem:[#allocation2 + $0x70] sm:$0x3] %v625
        %632 = vst [vmem:[#allocation2 + $0x78] sm:$0x3] %v626
        %633 = vrot.lane.b32.xlu0 %v283, 115
        %v634 = vpop.permute.xlu0 %633
        %635 = vrot.lane.b32.xlu0 %v284, 115
        %v636 = vpop.permute.xlu0 %635
        %637 = vrot.lane.b32.xlu0 %v280, 115
        %v638 = vpop.permute.xlu0 %637
        %vm639 = vcmask 941056
        %v640 = vsel %vm639, %v634, %v636
        %v641 = vsel %vm639, %v636, %v638
        %642 = vrot.lane.b32.xlu0 %v287, 115
        %v643 = vpop.permute.xlu0 %642
        %644 = vrot.lane.b32.xlu0 %v288, 115
        %v645 = vpop.permute.xlu0 %644
        %646 = vrot.lane.b32.xlu0 %v305, 115
        %v647 = vpop.permute.xlu0 %646
        %v648 = vsel %vm639, %v643, %v645
        %v649 = vsel %vm639, %v645, %v647
        %v650 = vrot.slane %v640, 6
        %v651 = vrot.slane %v641, 6
        %v652 = vrot.slane %v648, 6
        %v653 = vrot.slane %v649, 6
        %658 = vst [vmem:[#allocation2 + $0x60] sm:$0xc] %v650
        %659 = vst [vmem:[#allocation2 + $0x68] sm:$0xc] %v651
        %660 = vst [vmem:[#allocation2 + $0x70] sm:$0xc] %v652
        %661 = vst [vmem:[#allocation2 + $0x78] sm:$0xc] %v653
        %662 = vrot.lane.b32.xlu0 %v283, 114
        %v663 = vpop.permute.xlu0 %662
        %664 = vrot.lane.b32.xlu0 %v284, 114
        %v665 = vpop.permute.xlu0 %664
        %666 = vrot.lane.b32.xlu0 %v280, 114
        %v667 = vpop.permute.xlu0 %666
        %vm668 = vcmask 932864
        %v669 = vsel %vm668, %v663, %v665
        %v670 = vsel %vm668, %v665, %v667
        %671 = vrot.lane.b32.xlu0 %v287, 114
        %v672 = vpop.permute.xlu0 %671
        %673 = vrot.lane.b32.xlu0 %v288, 114
        %v674 = vpop.permute.xlu0 %673
        %675 = vrot.lane.b32.xlu0 %v305, 114
        %v676 = vpop.permute.xlu0 %675
        %v677 = vsel %vm668, %v672, %v674
        %v678 = vsel %vm668, %v674, %v676
        %v679 = vrot.slane %v669, 4
        %v680 = vrot.slane %v670, 4
        %v681 = vrot.slane %v677, 4
        %v682 = vrot.slane %v678, 4
        %687 = vst [vmem:[#allocation2 + $0x60] sm:$0x30] %v679
        %688 = vst [vmem:[#allocation2 + $0x68] sm:$0x30] %v680
        %689 = vst [vmem:[#allocation2 + $0x70] sm:$0x30] %v681
        %690 = vst [vmem:[#allocation2 + $0x78] sm:$0x30] %v682
        %691 = vrot.lane.b32.xlu0 %v283, 113
        %v692 = vpop.permute.xlu0 %691
        %693 = vrot.lane.b32.xlu0 %v284, 113
        %v694 = vpop.permute.xlu0 %693
        %695 = vrot.lane.b32.xlu0 %v280, 113
        %v696 = vpop.permute.xlu0 %695
        %vm697 = vcmask 924672
        %v698 = vsel %vm697, %v692, %v694
        %v699 = vsel %vm697, %v694, %v696
        %700 = vrot.lane.b32.xlu0 %v287, 113
        %v701 = vpop.permute.xlu0 %700
        %702 = vrot.lane.b32.xlu0 %v288, 113
        %v703 = vpop.permute.xlu0 %702
        %704 = vrot.lane.b32.xlu0 %v305, 113
        %v705 = vpop.permute.xlu0 %704
        %v706 = vsel %vm697, %v701, %v703
        %v707 = vsel %vm697, %v703, %v705
        %v708 = vrot.slane %v698, 2
        %v709 = vrot.slane %v699, 2
        %v710 = vrot.slane %v706, 2
        %v711 = vrot.slane %v707, 2
        %716 = vst [vmem:[#allocation2 + $0x60] sm:$0xc0] %v708
        %717 = vst [vmem:[#allocation2 + $0x68] sm:$0xc0] %v709
        %718 = vst [vmem:[#allocation2 + $0x70] sm:$0xc0] %v710
        %719 = vst [vmem:[#allocation2 + $0x78] sm:$0xc0] %v711
        %720 = vrot.lane.b32.xlu0 %v283, 112
        %v721 = vpop.permute.xlu0 %720
        %722 = vrot.lane.b32.xlu0 %v284, 112
        %v723 = vpop.permute.xlu0 %722
        %724 = vrot.lane.b32.xlu0 %v280, 112
        %v725 = vpop.permute.xlu0 %724
        %vm726 = vcmask 916480
        %v727 = vsel %vm726, %v721, %v723
        %v728 = vsel %vm726, %v723, %v725
        %731 = vrot.lane.b32.xlu0 %v287, 112
        %v732 = vpop.permute.xlu0 %731
        %733 = vrot.lane.b32.xlu0 %v288, 112
        %v734 = vpop.permute.xlu0 %733
        %735 = vrot.lane.b32.xlu0 %v305, 112
        %v736 = vpop.permute.xlu0 %735
        %v737 = vsel %vm726, %v732, %v734
        %v738 = vsel %vm726, %v734, %v736
        %741 = vst [vmem:[#allocation2 + $0x80] sm:$0x3] %v727
        %742 = vst [vmem:[#allocation2 + $0x88] sm:$0x3] %v728
        %743 = vst [vmem:[#allocation2 + $0x90] sm:$0x3] %v737
        %744 = vst [vmem:[#allocation2 + $0x98] sm:$0x3] %v738
        %745 = vrot.lane.b32.xlu0 %v283, 111
        %v746 = vpop.permute.xlu0 %745
        %747 = vrot.lane.b32.xlu0 %v284, 111
        %v748 = vpop.permute.xlu0 %747
        %749 = vrot.lane.b32.xlu0 %v280, 111
        %v750 = vpop.permute.xlu0 %749
        %vm751 = vcmask 908288
        %v752 = vsel %vm751, %v746, %v748
        %v753 = vsel %vm751, %v748, %v750
        %754 = vrot.lane.b32.xlu0 %v287, 111
        %v755 = vpop.permute.xlu0 %754
        %756 = vrot.lane.b32.xlu0 %v288, 111
        %v757 = vpop.permute.xlu0 %756
        %758 = vrot.lane.b32.xlu0 %v305, 111
        %v759 = vpop.permute.xlu0 %758
        %v760 = vsel %vm751, %v755, %v757
        %v761 = vsel %vm751, %v757, %v759
        %v762 = vrot.slane %v752, 6
        %v763 = vrot.slane %v753, 6
        %v764 = vrot.slane %v760, 6
        %v765 = vrot.slane %v761, 6
        %770 = vst [vmem:[#allocation2 + $0x80] sm:$0xc] %v762
        %771 = vst [vmem:[#allocation2 + $0x88] sm:$0xc] %v763
        %772 = vst [vmem:[#allocation2 + $0x90] sm:$0xc] %v764
        %773 = vst [vmem:[#allocation2 + $0x98] sm:$0xc] %v765
        %774 = vrot.lane.b32.xlu0 %v283, 110
        %v775 = vpop.permute.xlu0 %774
        %776 = vrot.lane.b32.xlu0 %v284, 110
        %v777 = vpop.permute.xlu0 %776
        %778 = vrot.lane.b32.xlu0 %v280, 110
        %v779 = vpop.permute.xlu0 %778
        %vm780 = vcmask 900096
        %v781 = vsel %vm780, %v775, %v777
        %v782 = vsel %vm780, %v777, %v779
        %783 = vrot.lane.b32.xlu0 %v287, 110
        %v784 = vpop.permute.xlu0 %783
        %785 = vrot.lane.b32.xlu0 %v288, 110
        %v786 = vpop.permute.xlu0 %785
        %787 = vrot.lane.b32.xlu0 %v305, 110
        %v788 = vpop.permute.xlu0 %787
        %v789 = vsel %vm780, %v784, %v786
        %v790 = vsel %vm780, %v786, %v788
        %v791 = vrot.slane %v781, 4
        %v792 = vrot.slane %v782, 4
        %v793 = vrot.slane %v789, 4
        %v794 = vrot.slane %v790, 4
        %799 = vst [vmem:[#allocation2 + $0x80] sm:$0x30] %v791
        %800 = vst [vmem:[#allocation2 + $0x88] sm:$0x30] %v792
        %801 = vst [vmem:[#allocation2 + $0x90] sm:$0x30] %v793
        %802 = vst [vmem:[#allocation2 + $0x98] sm:$0x30] %v794
        %803 = vrot.lane.b32.xlu0 %v283, 109
        %v804 = vpop.permute.xlu0 %803
        %805 = vrot.lane.b32.xlu0 %v284, 109
        %v806 = vpop.permute.xlu0 %805
        %807 = vrot.lane.b32.xlu0 %v280, 109
        %v808 = vpop.permute.xlu0 %807
        %vm809 = vcmask 891904
        %v810 = vsel %vm809, %v804, %v806
        %v811 = vsel %vm809, %v806, %v808
        %812 = vrot.lane.b32.xlu0 %v287, 109
        %v813 = vpop.permute.xlu0 %812
        %814 = vrot.lane.b32.xlu0 %v288, 109
        %v815 = vpop.permute.xlu0 %814
        %816 = vrot.lane.b32.xlu0 %v305, 109
        %v817 = vpop.permute.xlu0 %816
        %v818 = vsel %vm809, %v813, %v815
        %v819 = vsel %vm809, %v815, %v817
        %v820 = vrot.slane %v810, 2
        %v821 = vrot.slane %v811, 2
        %v822 = vrot.slane %v818, 2
        %v823 = vrot.slane %v819, 2
        %828 = vst [vmem:[#allocation2 + $0x80] sm:$0xc0] %v820
        %829 = vst [vmem:[#allocation2 + $0x88] sm:$0xc0] %v821
        %830 = vst [vmem:[#allocation2 + $0x90] sm:$0xc0] %v822
        %831 = vst [vmem:[#allocation2 + $0x98] sm:$0xc0] %v823
        %832 = vrot.lane.b32.xlu0 %v283, 108
        %v833 = vpop.permute.xlu0 %832
        %834 = vrot.lane.b32.xlu0 %v284, 108
        %v835 = vpop.permute.xlu0 %834
        %836 = vrot.lane.b32.xlu0 %v280, 108
        %v837 = vpop.permute.xlu0 %836
        %vm838 = vcmask 883712
        %v839 = vsel %vm838, %v833, %v835
        %v840 = vsel %vm838, %v835, %v837
        %843 = vrot.lane.b32.xlu0 %v287, 108
        %v844 = vpop.permute.xlu0 %843
        %845 = vrot.lane.b32.xlu0 %v288, 108
        %v846 = vpop.permute.xlu0 %845
        %847 = vrot.lane.b32.xlu0 %v305, 108
        %v848 = vpop.permute.xlu0 %847
        %v849 = vsel %vm838, %v844, %v846
        %v850 = vsel %vm838, %v846, %v848
        %853 = vst [vmem:[#allocation2 + $0xa0] sm:$0x3] %v839
        %854 = vst [vmem:[#allocation2 + $0xa8] sm:$0x3] %v840
        %855 = vst [vmem:[#allocation2 + $0xb0] sm:$0x3] %v849
        %856 = vst [vmem:[#allocation2 + $0xb8] sm:$0x3] %v850
        %857 = vrot.lane.b32.xlu0 %v283, 107
        %v858 = vpop.permute.xlu0 %857
        %859 = vrot.lane.b32.xlu0 %v284, 107
        %v860 = vpop.permute.xlu0 %859
        %861 = vrot.lane.b32.xlu0 %v280, 107
        %v862 = vpop.permute.xlu0 %861
        %vm863 = vcmask 875520
        %v864 = vsel %vm863, %v858, %v860
        %v865 = vsel %vm863, %v860, %v862
        %866 = vrot.lane.b32.xlu0 %v287, 107
        %v867 = vpop.permute.xlu0 %866
        %868 = vrot.lane.b32.xlu0 %v288, 107
        %v869 = vpop.permute.xlu0 %868
        %870 = vrot.lane.b32.xlu0 %v305, 107
        %v871 = vpop.permute.xlu0 %870
        %v872 = vsel %vm863, %v867, %v869
        %v873 = vsel %vm863, %v869, %v871
        %v874 = vrot.slane %v864, 6
        %v875 = vrot.slane %v865, 6
        %v876 = vrot.slane %v872, 6
        %v877 = vrot.slane %v873, 6
        %882 = vst [vmem:[#allocation2 + $0xa0] sm:$0xc] %v874
        %883 = vst [vmem:[#allocation2 + $0xa8] sm:$0xc] %v875
        %884 = vst [vmem:[#allocation2 + $0xb0] sm:$0xc] %v876
        %885 = vst [vmem:[#allocation2 + $0xb8] sm:$0xc] %v877
        %886 = vrot.lane.b32.xlu0 %v283, 106
        %v887 = vpop.permute.xlu0 %886
        %888 = vrot.lane.b32.xlu0 %v284, 106
        %v889 = vpop.permute.xlu0 %888
        %890 = vrot.lane.b32.xlu0 %v280, 106
        %v891 = vpop.permute.xlu0 %890
        %vm892 = vcmask 867328
        %v893 = vsel %vm892, %v887, %v889
        %v894 = vsel %vm892, %v889, %v891
        %895 = vrot.lane.b32.xlu0 %v287, 106
        %v896 = vpop.permute.xlu0 %895
        %897 = vrot.lane.b32.xlu0 %v288, 106
        %v898 = vpop.permute.xlu0 %897
        %899 = vrot.lane.b32.xlu0 %v305, 106
        %v900 = vpop.permute.xlu0 %899
        %v901 = vsel %vm892, %v896, %v898
        %v902 = vsel %vm892, %v898, %v900
        %v903 = vrot.slane %v893, 4
        %v904 = vrot.slane %v894, 4
        %v905 = vrot.slane %v901, 4
        %v906 = vrot.slane %v902, 4
        %911 = vst [vmem:[#allocation2 + $0xa0] sm:$0x30] %v903
        %912 = vst [vmem:[#allocation2 + $0xa8] sm:$0x30] %v904
        %913 = vst [vmem:[#allocation2 + $0xb0] sm:$0x30] %v905
        %914 = vst [vmem:[#allocation2 + $0xb8] sm:$0x30] %v906
        %915 = vrot.lane.b32.xlu0 %v283, 105
        %v916 = vpop.permute.xlu0 %915
        %917 = vrot.lane.b32.xlu0 %v284, 105
        %v918 = vpop.permute.xlu0 %917
        %919 = vrot.lane.b32.xlu0 %v280, 105
        %v920 = vpop.permute.xlu0 %919
        %vm921 = vcmask 859136
        %v922 = vsel %vm921, %v916, %v918
        %v923 = vsel %vm921, %v918, %v920
        %924 = vrot.lane.b32.xlu0 %v287, 105
        %v925 = vpop.permute.xlu0 %924
        %926 = vrot.lane.b32.xlu0 %v288, 105
        %v927 = vpop.permute.xlu0 %926
        %928 = vrot.lane.b32.xlu0 %v305, 105
        %v929 = vpop.permute.xlu0 %928
        %v930 = vsel %vm921, %v925, %v927
        %v931 = vsel %vm921, %v927, %v929
        %v932 = vrot.slane %v922, 2
        %v933 = vrot.slane %v923, 2
        %v934 = vrot.slane %v930, 2
        %v935 = vrot.slane %v931, 2
        %940 = vst [vmem:[#allocation2 + $0xa0] sm:$0xc0] %v932
        %941 = vst [vmem:[#allocation2 + $0xa8] sm:$0xc0] %v933
        %942 = vst [vmem:[#allocation2 + $0xb0] sm:$0xc0] %v934
        %943 = vst [vmem:[#allocation2 + $0xb8] sm:$0xc0] %v935
        %944 = vrot.lane.b32.xlu0 %v283, 104
        %v945 = vpop.permute.xlu0 %944
        %946 = vrot.lane.b32.xlu0 %v284, 104
        %v947 = vpop.permute.xlu0 %946
        %948 = vrot.lane.b32.xlu0 %v280, 104
        %v949 = vpop.permute.xlu0 %948
        %vm950 = vcmask 850944
        %v951 = vsel %vm950, %v945, %v947
        %v952 = vsel %vm950, %v947, %v949
        %955 = vrot.lane.b32.xlu0 %v287, 104
        %v956 = vpop.permute.xlu0 %955
        %957 = vrot.lane.b32.xlu0 %v288, 104
        %v958 = vpop.permute.xlu0 %957
        %959 = vrot.lane.b32.xlu0 %v305, 104
        %v960 = vpop.permute.xlu0 %959
        %v961 = vsel %vm950, %v956, %v958
        %v962 = vsel %vm950, %v958, %v960
        %965 = vst [vmem:[#allocation2 + $0xc0] sm:$0x3] %v951
        %966 = vst [vmem:[#allocation2 + $0xc8] sm:$0x3] %v952
        %967 = vst [vmem:[#allocation2 + $0xd0] sm:$0x3] %v961
        %968 = vst [vmem:[#allocation2 + $0xd8] sm:$0x3] %v962
        %969 = vrot.lane.b32.xlu0 %v283, 103
        %v970 = vpop.permute.xlu0 %969
        %971 = vrot.lane.b32.xlu0 %v284, 103
        %v972 = vpop.permute.xlu0 %971
        %973 = vrot.lane.b32.xlu0 %v280, 103
        %v974 = vpop.permute.xlu0 %973
        %vm975 = vcmask 842752
        %v976 = vsel %vm975, %v970, %v972
        %v977 = vsel %vm975, %v972, %v974
        %978 = vrot.lane.b32.xlu0 %v287, 103
        %v979 = vpop.permute.xlu0 %978
        %980 = vrot.lane.b32.xlu0 %v288, 103
        %v981 = vpop.permute.xlu0 %980
        %982 = vrot.lane.b32.xlu0 %v305, 103
        %v983 = vpop.permute.xlu0 %982
        %v984 = vsel %vm975, %v979, %v981
        %v985 = vsel %vm975, %v981, %v983
        %v986 = vrot.slane %v976, 6
        %v987 = vrot.slane %v977, 6
        %v988 = vrot.slane %v984, 6
        %v989 = vrot.slane %v985, 6
        %994 = vst [vmem:[#allocation2 + $0xc0] sm:$0xc] %v986
        %995 = vst [vmem:[#allocation2 + $0xc8] sm:$0xc] %v987
        %996 = vst [vmem:[#allocation2 + $0xd0] sm:$0xc] %v988
        %997 = vst [vmem:[#allocation2 + $0xd8] sm:$0xc] %v989
        %998 = vrot.lane.b32.xlu0 %v283, 102
        %v999 = vpop.permute.xlu0 %998
        %1000 = vrot.lane.b32.xlu0 %v284, 102
        %v1001 = vpop.permute.xlu0 %1000
        %1002 = vrot.lane.b32.xlu0 %v280, 102
        %v1003 = vpop.permute.xlu0 %1002
        %vm1004 = vcmask 834560
        %v1005 = vsel %vm1004, %v999, %v1001
        %v1006 = vsel %vm1004, %v1001, %v1003
        %1007 = vrot.lane.b32.xlu0 %v287, 102
        %v1008 = vpop.permute.xlu0 %1007
        %1009 = vrot.lane.b32.xlu0 %v288, 102
        %v1010 = vpop.permute.xlu0 %1009
        %1011 = vrot.lane.b32.xlu0 %v305, 102
        %v1012 = vpop.permute.xlu0 %1011
        %v1013 = vsel %vm1004, %v1008, %v1010
        %v1014 = vsel %vm1004, %v1010, %v1012
        %v1015 = vrot.slane %v1005, 4
        %v1016 = vrot.slane %v1006, 4
        %v1017 = vrot.slane %v1013, 4
        %v1018 = vrot.slane %v1014, 4
        %1023 = vst [vmem:[#allocation2 + $0xc0] sm:$0x30] %v1015
        %1024 = vst [vmem:[#allocation2 + $0xc8] sm:$0x30] %v1016
        %1025 = vst [vmem:[#allocation2 + $0xd0] sm:$0x30] %v1017
        %1026 = vst [vmem:[#allocation2 + $0xd8] sm:$0x30] %v1018
        %1027 = vrot.lane.b32.xlu0 %v283, 101
        %v1028 = vpop.permute.xlu0 %1027
        %1029 = vrot.lane.b32.xlu0 %v284, 101
        %v1030 = vpop.permute.xlu0 %1029
        %1031 = vrot.lane.b32.xlu0 %v280, 101
        %v1032 = vpop.permute.xlu0 %1031
        %vm1033 = vcmask 826368
        %v1034 = vsel %vm1033, %v1028, %v1030
        %v1035 = vsel %vm1033, %v1030, %v1032
        %1036 = vrot.lane.b32.xlu0 %v287, 101
        %v1037 = vpop.permute.xlu0 %1036
        %1038 = vrot.lane.b32.xlu0 %v288, 101
        %v1039 = vpop.permute.xlu0 %1038
        %1040 = vrot.lane.b32.xlu0 %v305, 101
        %v1041 = vpop.permute.xlu0 %1040
        %v1042 = vsel %vm1033, %v1037, %v1039
        %v1043 = vsel %vm1033, %v1039, %v1041
        %v1044 = vrot.slane %v1034, 2
        %v1045 = vrot.slane %v1035, 2
        %v1046 = vrot.slane %v1042, 2
        %v1047 = vrot.slane %v1043, 2
        %1052 = vst [vmem:[#allocation2 + $0xc0] sm:$0xc0] %v1044
        %1053 = vst [vmem:[#allocation2 + $0xc8] sm:$0xc0] %v1045
        %1054 = vst [vmem:[#allocation2 + $0xd0] sm:$0xc0] %v1046
        %1055 = vst [vmem:[#allocation2 + $0xd8] sm:$0xc0] %v1047
        %1056 = vrot.lane.b32.xlu0 %v283, 100
        %v1057 = vpop.permute.xlu0 %1056
        %1058 = vrot.lane.b32.xlu0 %v284, 100
        %v1059 = vpop.permute.xlu0 %1058
        %1060 = vrot.lane.b32.xlu0 %v280, 100
        %v1061 = vpop.permute.xlu0 %1060
        %vm1062 = vcmask 818176
        %v1063 = vsel %vm1062, %v1057, %v1059
        %v1064 = vsel %vm1062, %v1059, %v1061
        %1067 = vrot.lane.b32.xlu0 %v287, 100
        %v1068 = vpop.permute.xlu0 %1067
        %1069 = vrot.lane.b32.xlu0 %v288, 100
        %v1070 = vpop.permute.xlu0 %1069
        %1071 = vrot.lane.b32.xlu0 %v305, 100
        %v1072 = vpop.permute.xlu0 %1071
        %v1073 = vsel %vm1062, %v1068, %v1070
        %v1074 = vsel %vm1062, %v1070, %v1072
        %1077 = vst [vmem:[#allocation2 + $0xe0] sm:$0x3] %v1063
        %1078 = vst [vmem:[#allocation2 + $0xe8] sm:$0x3] %v1064
        %1079 = vst [vmem:[#allocation2 + $0xf0] sm:$0x3] %v1073
        %1080 = vst [vmem:[#allocation2 + $0xf8] sm:$0x3] %v1074
        %1081 = vrot.lane.b32.xlu0 %v283, 99
        %v1082 = vpop.permute.xlu0 %1081
        %1083 = vrot.lane.b32.xlu0 %v284, 99
        %v1084 = vpop.permute.xlu0 %1083
        %1085 = vrot.lane.b32.xlu0 %v280, 99
        %v1086 = vpop.permute.xlu0 %1085
        %vm1087 = vcmask 809984
        %v1088 = vsel %vm1087, %v1082, %v1084
        %v1089 = vsel %vm1087, %v1084, %v1086
        %1090 = vrot.lane.b32.xlu0 %v287, 99
        %v1091 = vpop.permute.xlu0 %1090
        %1092 = vrot.lane.b32.xlu0 %v288, 99
        %v1093 = vpop.permute.xlu0 %1092
        %1094 = vrot.lane.b32.xlu0 %v305, 99
        %v1095 = vpop.permute.xlu0 %1094
        %v1096 = vsel %vm1087, %v1091, %v1093
        %v1097 = vsel %vm1087, %v1093, %v1095
        %v1098 = vrot.slane %v1088, 6
        %v1099 = vrot.slane %v1089, 6
        %v1100 = vrot.slane %v1096, 6
        %v1101 = vrot.slane %v1097, 6
        %1106 = vst [vmem:[#allocation2 + $0xe0] sm:$0xc] %v1098
        %1107 = vst [vmem:[#allocation2 + $0xe8] sm:$0xc] %v1099
        %1108 = vst [vmem:[#allocation2 + $0xf0] sm:$0xc] %v1100
        %1109 = vst [vmem:[#allocation2 + $0xf8] sm:$0xc] %v1101
        %1110 = vrot.lane.b32.xlu0 %v283, 98
        %v1111 = vpop.permute.xlu0 %1110
        %1112 = vrot.lane.b32.xlu0 %v284, 98
        %v1113 = vpop.permute.xlu0 %1112
        %1114 = vrot.lane.b32.xlu0 %v280, 98
        %v1115 = vpop.permute.xlu0 %1114
        %vm1116 = vcmask 801792
        %v1117 = vsel %vm1116, %v1111, %v1113
        %v1118 = vsel %vm1116, %v1113, %v1115
        %1119 = vrot.lane.b32.xlu0 %v287, 98
        %v1120 = vpop.permute.xlu0 %1119
        %1121 = vrot.lane.b32.xlu0 %v288, 98
        %v1122 = vpop.permute.xlu0 %1121
        %1123 = vrot.lane.b32.xlu0 %v305, 98
        %v1124 = vpop.permute.xlu0 %1123
        %v1125 = vsel %vm1116, %v1120, %v1122
        %v1126 = vsel %vm1116, %v1122, %v1124
        %v1127 = vrot.slane %v1117, 4
        %v1128 = vrot.slane %v1118, 4
        %v1129 = vrot.slane %v1125, 4
        %v1130 = vrot.slane %v1126, 4
        %1135 = vst [vmem:[#allocation2 + $0xe0] sm:$0x30] %v1127
        %1136 = vst [vmem:[#allocation2 + $0xe8] sm:$0x30] %v1128
        %1137 = vst [vmem:[#allocation2 + $0xf0] sm:$0x30] %v1129
        %1138 = vst [vmem:[#allocation2 + $0xf8] sm:$0x30] %v1130
        %1139 = vrot.lane.b32.xlu0 %v283, 97
        %v1140 = vpop.permute.xlu0 %1139
        %1141 = vrot.lane.b32.xlu0 %v284, 97
        %v1142 = vpop.permute.xlu0 %1141
        %1143 = vrot.lane.b32.xlu0 %v280, 97
        %v1144 = vpop.permute.xlu0 %1143
        %vm1145 = vcmask 793600
        %v1146 = vsel %vm1145, %v1140, %v1142
        %v1147 = vsel %vm1145, %v1142, %v1144
        %1148 = vrot.lane.b32.xlu0 %v287, 97
        %v1149 = vpop.permute.xlu0 %1148
        %1150 = vrot.lane.b32.xlu0 %v288, 97
        %v1151 = vpop.permute.xlu0 %1150
        %1152 = vrot.lane.b32.xlu0 %v305, 97
        %v1153 = vpop.permute.xlu0 %1152
        %v1154 = vsel %vm1145, %v1149, %v1151
        %v1155 = vsel %vm1145, %v1151, %v1153
        %v1156 = vrot.slane %v1146, 2
        %v1157 = vrot.slane %v1147, 2
        %v1158 = vrot.slane %v1154, 2
        %v1159 = vrot.slane %v1155, 2
        %1164 = vst [vmem:[#allocation2 + $0xe0] sm:$0xc0] %v1156
        %1165 = vst [vmem:[#allocation2 + $0xe8] sm:$0xc0] %v1157
        %1166 = vst [vmem:[#allocation2 + $0xf0] sm:$0xc0] %v1158
        %1167 = vst [vmem:[#allocation2 + $0xf8] sm:$0xc0] %v1159
        %1168 = vrot.lane.b32.xlu0 %v283, 96
        %v1169 = vpop.permute.xlu0 %1168
        %1170 = vrot.lane.b32.xlu0 %v284, 96
        %v1171 = vpop.permute.xlu0 %1170
        %1172 = vrot.lane.b32.xlu0 %v280, 96
        %v1173 = vpop.permute.xlu0 %1172
        %vm1174 = vcmask 785408
        %v1175 = vsel %vm1174, %v1169, %v1171
        %v1176 = vsel %vm1174, %v1171, %v1173
        %1179 = vrot.lane.b32.xlu0 %v287, 96
        %v1180 = vpop.permute.xlu0 %1179
        %1181 = vrot.lane.b32.xlu0 %v288, 96
        %v1182 = vpop.permute.xlu0 %1181
        %1183 = vrot.lane.b32.xlu0 %v305, 96
        %v1184 = vpop.permute.xlu0 %1183
        %v1185 = vsel %vm1174, %v1180, %v1182
        %v1186 = vsel %vm1174, %v1182, %v1184
        %1189 = vst [vmem:[#allocation2 + $0x100] sm:$0x3] %v1175
        %1190 = vst [vmem:[#allocation2 + $0x108] sm:$0x3] %v1176
        %1191 = vst [vmem:[#allocation2 + $0x110] sm:$0x3] %v1185
        %1192 = vst [vmem:[#allocation2 + $0x118] sm:$0x3] %v1186
        %1193 = vrot.lane.b32.xlu0 %v283, 95
        %v1194 = vpop.permute.xlu0 %1193
        %1195 = vrot.lane.b32.xlu0 %v284, 95
        %v1196 = vpop.permute.xlu0 %1195
        %1197 = vrot.lane.b32.xlu0 %v280, 95
        %v1198 = vpop.permute.xlu0 %1197
        %vm1199 = vcmask 777216
        %v1200 = vsel %vm1199, %v1194, %v1196
        %v1201 = vsel %vm1199, %v1196, %v1198
        %1202 = vrot.lane.b32.xlu0 %v287, 95
        %v1203 = vpop.permute.xlu0 %1202
        %1204 = vrot.lane.b32.xlu0 %v288, 95
        %v1205 = vpop.permute.xlu0 %1204
        %1206 = vrot.lane.b32.xlu0 %v305, 95
        %v1207 = vpop.permute.xlu0 %1206
        %v1208 = vsel %vm1199, %v1203, %v1205
        %v1209 = vsel %vm1199, %v1205, %v1207
        %v1210 = vrot.slane %v1200, 6
        %v1211 = vrot.slane %v1201, 6
        %v1212 = vrot.slane %v1208, 6
        %v1213 = vrot.slane %v1209, 6
        %1218 = vst [vmem:[#allocation2 + $0x100] sm:$0xc] %v1210
        %1219 = vst [vmem:[#allocation2 + $0x108] sm:$0xc] %v1211
        %1220 = vst [vmem:[#allocation2 + $0x110] sm:$0xc] %v1212
        %1221 = vst [vmem:[#allocation2 + $0x118] sm:$0xc] %v1213
        %1222 = vrot.lane.b32.xlu0 %v283, 94
        %v1223 = vpop.permute.xlu0 %1222
        %1224 = vrot.lane.b32.xlu0 %v284, 94
        %v1225 = vpop.permute.xlu0 %1224
        %1226 = vrot.lane.b32.xlu0 %v280, 94
        %v1227 = vpop.permute.xlu0 %1226
        %vm1228 = vcmask 769024
        %v1229 = vsel %vm1228, %v1223, %v1225
        %v1230 = vsel %vm1228, %v1225, %v1227
        %1231 = vrot.lane.b32.xlu0 %v287, 94
        %v1232 = vpop.permute.xlu0 %1231
        %1233 = vrot.lane.b32.xlu0 %v288, 94
        %v1234 = vpop.permute.xlu0 %1233
        %1235 = vrot.lane.b32.xlu0 %v305, 94
        %v1236 = vpop.permute.xlu0 %1235
        %v1237 = vsel %vm1228, %v1232, %v1234
        %v1238 = vsel %vm1228, %v1234, %v1236
        %v1239 = vrot.slane %v1229, 4
        %v1240 = vrot.slane %v1230, 4
        %v1241 = vrot.slane %v1237, 4
        %v1242 = vrot.slane %v1238, 4
        %1247 = vst [vmem:[#allocation2 + $0x100] sm:$0x30] %v1239
        %1248 = vst [vmem:[#allocation2 + $0x108] sm:$0x30] %v1240
        %1249 = vst [vmem:[#allocation2 + $0x110] sm:$0x30] %v1241
        %1250 = vst [vmem:[#allocation2 + $0x118] sm:$0x30] %v1242
        %1251 = vrot.lane.b32.xlu0 %v283, 93
        %v1252 = vpop.permute.xlu0 %1251
        %1253 = vrot.lane.b32.xlu0 %v284, 93
        %v1254 = vpop.permute.xlu0 %1253
        %1255 = vrot.lane.b32.xlu0 %v280, 93
        %v1256 = vpop.permute.xlu0 %1255
        %vm1257 = vcmask 760832
        %v1258 = vsel %vm1257, %v1252, %v1254
        %v1259 = vsel %vm1257, %v1254, %v1256
        %1260 = vrot.lane.b32.xlu0 %v287, 93
        %v1261 = vpop.permute.xlu0 %1260
        %1262 = vrot.lane.b32.xlu0 %v288, 93
        %v1263 = vpop.permute.xlu0 %1262
        %1264 = vrot.lane.b32.xlu0 %v305, 93
        %v1265 = vpop.permute.xlu0 %1264
        %v1266 = vsel %vm1257, %v1261, %v1263
        %v1267 = vsel %vm1257, %v1263, %v1265
        %v1268 = vrot.slane %v1258, 2
        %v1269 = vrot.slane %v1259, 2
        %v1270 = vrot.slane %v1266, 2
        %v1271 = vrot.slane %v1267, 2
        %1276 = vst [vmem:[#allocation2 + $0x100] sm:$0xc0] %v1268
        %1277 = vst [vmem:[#allocation2 + $0x108] sm:$0xc0] %v1269
        %1278 = vst [vmem:[#allocation2 + $0x110] sm:$0xc0] %v1270
        %1279 = vst [vmem:[#allocation2 + $0x118] sm:$0xc0] %v1271
        %1280 = vrot.lane.b32.xlu0 %v283, 92
        %v1281 = vpop.permute.xlu0 %1280
        %1282 = vrot.lane.b32.xlu0 %v284, 92
        %v1283 = vpop.permute.xlu0 %1282
        %1284 = vrot.lane.b32.xlu0 %v280, 92
        %v1285 = vpop.permute.xlu0 %1284
        %vm1286 = vcmask 752640
        %v1287 = vsel %vm1286, %v1281, %v1283
        %v1288 = vsel %vm1286, %v1283, %v1285
        %1291 = vrot.lane.b32.xlu0 %v287, 92
        %v1292 = vpop.permute.xlu0 %1291
        %1293 = vrot.lane.b32.xlu0 %v288, 92
        %v1294 = vpop.permute.xlu0 %1293
        %1295 = vrot.lane.b32.xlu0 %v305, 92
        %v1296 = vpop.permute.xlu0 %1295
        %v1297 = vsel %vm1286, %v1292, %v1294
        %v1298 = vsel %vm1286, %v1294, %v1296
        %1301 = vst [vmem:[#allocation2 + $0x120] sm:$0x3] %v1287
        %1302 = vst [vmem:[#allocation2 + $0x128] sm:$0x3] %v1288
        %1303 = vst [vmem:[#allocation2 + $0x130] sm:$0x3] %v1297
        %1304 = vst [vmem:[#allocation2 + $0x138] sm:$0x3] %v1298
        %1305 = vrot.lane.b32.xlu0 %v283, 91
        %v1306 = vpop.permute.xlu0 %1305
        %1307 = vrot.lane.b32.xlu0 %v284, 91
        %v1308 = vpop.permute.xlu0 %1307
        %1309 = vrot.lane.b32.xlu0 %v280, 91
        %v1310 = vpop.permute.xlu0 %1309
        %vm1311 = vcmask 744448
        %v1312 = vsel %vm1311, %v1306, %v1308
        %v1313 = vsel %vm1311, %v1308, %v1310
        %1314 = vrot.lane.b32.xlu0 %v287, 91
        %v1315 = vpop.permute.xlu0 %1314
        %1316 = vrot.lane.b32.xlu0 %v288, 91
        %v1317 = vpop.permute.xlu0 %1316
        %1318 = vrot.lane.b32.xlu0 %v305, 91
        %v1319 = vpop.permute.xlu0 %1318
        %v1320 = vsel %vm1311, %v1315, %v1317
        %v1321 = vsel %vm1311, %v1317, %v1319
        %v1322 = vrot.slane %v1312, 6
        %v1323 = vrot.slane %v1313, 6
        %v1324 = vrot.slane %v1320, 6
        %v1325 = vrot.slane %v1321, 6
        %1330 = vst [vmem:[#allocation2 + $0x120] sm:$0xc] %v1322
        %1331 = vst [vmem:[#allocation2 + $0x128] sm:$0xc] %v1323
        %1332 = vst [vmem:[#allocation2 + $0x130] sm:$0xc] %v1324
        %1333 = vst [vmem:[#allocation2 + $0x138] sm:$0xc] %v1325
        %1334 = vrot.lane.b32.xlu0 %v283, 90
        %v1335 = vpop.permute.xlu0 %1334
        %1336 = vrot.lane.b32.xlu0 %v284, 90
        %v1337 = vpop.permute.xlu0 %1336
        %1338 = vrot.lane.b32.xlu0 %v280, 90
        %v1339 = vpop.permute.xlu0 %1338
        %vm1340 = vcmask 736256
        %v1341 = vsel %vm1340, %v1335, %v1337
        %v1342 = vsel %vm1340, %v1337, %v1339
        %1343 = vrot.lane.b32.xlu0 %v287, 90
        %v1344 = vpop.permute.xlu0 %1343
        %1345 = vrot.lane.b32.xlu0 %v288, 90
        %v1346 = vpop.permute.xlu0 %1345
        %1347 = vrot.lane.b32.xlu0 %v305, 90
        %v1348 = vpop.permute.xlu0 %1347
        %v1349 = vsel %vm1340, %v1344, %v1346
        %v1350 = vsel %vm1340, %v1346, %v1348
        %v1351 = vrot.slane %v1341, 4
        %v1352 = vrot.slane %v1342, 4
        %v1353 = vrot.slane %v1349, 4
        %v1354 = vrot.slane %v1350, 4
        %1359 = vst [vmem:[#allocation2 + $0x120] sm:$0x30] %v1351
        %1360 = vst [vmem:[#allocation2 + $0x128] sm:$0x30] %v1352
        %1361 = vst [vmem:[#allocation2 + $0x130] sm:$0x30] %v1353
        %1362 = vst [vmem:[#allocation2 + $0x138] sm:$0x30] %v1354
        %1363 = vrot.lane.b32.xlu0 %v283, 89
        %v1364 = vpop.permute.xlu0 %1363
        %1365 = vrot.lane.b32.xlu0 %v284, 89
        %v1366 = vpop.permute.xlu0 %1365
        %1367 = vrot.lane.b32.xlu0 %v280, 89
        %v1368 = vpop.permute.xlu0 %1367
        %vm1369 = vcmask 728064
        %v1370 = vsel %vm1369, %v1364, %v1366
        %v1371 = vsel %vm1369, %v1366, %v1368
        %1372 = vrot.lane.b32.xlu0 %v287, 89
        %v1373 = vpop.permute.xlu0 %1372
        %1374 = vrot.lane.b32.xlu0 %v288, 89
        %v1375 = vpop.permute.xlu0 %1374
        %1376 = vrot.lane.b32.xlu0 %v305, 89
        %v1377 = vpop.permute.xlu0 %1376
        %v1378 = vsel %vm1369, %v1373, %v1375
        %v1379 = vsel %vm1369, %v1375, %v1377
        %v1380 = vrot.slane %v1370, 2
        %v1381 = vrot.slane %v1371, 2
        %v1382 = vrot.slane %v1378, 2
        %v1383 = vrot.slane %v1379, 2
        %1388 = vst [vmem:[#allocation2 + $0x120] sm:$0xc0] %v1380
        %1389 = vst [vmem:[#allocation2 + $0x128] sm:$0xc0] %v1381
        %1390 = vst [vmem:[#allocation2 + $0x130] sm:$0xc0] %v1382
        %1391 = vst [vmem:[#allocation2 + $0x138] sm:$0xc0] %v1383
        %1392 = vrot.lane.b32.xlu0 %v283, 88
        %v1393 = vpop.permute.xlu0 %1392
        %1394 = vrot.lane.b32.xlu0 %v284, 88
        %v1395 = vpop.permute.xlu0 %1394
        %1396 = vrot.lane.b32.xlu0 %v280, 88
        %v1397 = vpop.permute.xlu0 %1396
        %vm1398 = vcmask 719872
        %v1399 = vsel %vm1398, %v1393, %v1395
        %v1400 = vsel %vm1398, %v1395, %v1397
        %1403 = vrot.lane.b32.xlu0 %v287, 88
        %v1404 = vpop.permute.xlu0 %1403
        %1405 = vrot.lane.b32.xlu0 %v288, 88
        %v1406 = vpop.permute.xlu0 %1405
        %1407 = vrot.lane.b32.xlu0 %v305, 88
        %v1408 = vpop.permute.xlu0 %1407
        %v1409 = vsel %vm1398, %v1404, %v1406
        %v1410 = vsel %vm1398, %v1406, %v1408
        %1413 = vst [vmem:[#allocation2 + $0x140] sm:$0x3] %v1399
        %1414 = vst [vmem:[#allocation2 + $0x148] sm:$0x3] %v1400
        %1415 = vst [vmem:[#allocation2 + $0x150] sm:$0x3] %v1409
        %1416 = vst [vmem:[#allocation2 + $0x158] sm:$0x3] %v1410
        %1417 = vrot.lane.b32.xlu0 %v283, 87
        %v1418 = vpop.permute.xlu0 %1417
        %1419 = vrot.lane.b32.xlu0 %v284, 87
        %v1420 = vpop.permute.xlu0 %1419
        %1421 = vrot.lane.b32.xlu0 %v280, 87
        %v1422 = vpop.permute.xlu0 %1421
        %vm1423 = vcmask 711680
        %v1424 = vsel %vm1423, %v1418, %v1420
        %v1425 = vsel %vm1423, %v1420, %v1422
        %1426 = vrot.lane.b32.xlu0 %v287, 87
        %v1427 = vpop.permute.xlu0 %1426
        %1428 = vrot.lane.b32.xlu0 %v288, 87
        %v1429 = vpop.permute.xlu0 %1428
        %1430 = vrot.lane.b32.xlu0 %v305, 87
        %v1431 = vpop.permute.xlu0 %1430
        %v1432 = vsel %vm1423, %v1427, %v1429
        %v1433 = vsel %vm1423, %v1429, %v1431
        %v1434 = vrot.slane %v1424, 6
        %v1435 = vrot.slane %v1425, 6
        %v1436 = vrot.slane %v1432, 6
        %v1437 = vrot.slane %v1433, 6
        %1442 = vst [vmem:[#allocation2 + $0x140] sm:$0xc] %v1434
        %1443 = vst [vmem:[#allocation2 + $0x148] sm:$0xc] %v1435
        %1444 = vst [vmem:[#allocation2 + $0x150] sm:$0xc] %v1436
        %1445 = vst [vmem:[#allocation2 + $0x158] sm:$0xc] %v1437
        %1446 = vrot.lane.b32.xlu0 %v283, 86
        %v1447 = vpop.permute.xlu0 %1446
        %1448 = vrot.lane.b32.xlu0 %v284, 86
        %v1449 = vpop.permute.xlu0 %1448
        %1450 = vrot.lane.b32.xlu0 %v280, 86
        %v1451 = vpop.permute.xlu0 %1450
        %vm1452 = vcmask 703488
        %v1453 = vsel %vm1452, %v1447, %v1449
        %v1454 = vsel %vm1452, %v1449, %v1451
        %1455 = vrot.lane.b32.xlu0 %v287, 86
        %v1456 = vpop.permute.xlu0 %1455
        %1457 = vrot.lane.b32.xlu0 %v288, 86
        %v1458 = vpop.permute.xlu0 %1457
        %1459 = vrot.lane.b32.xlu0 %v305, 86
        %v1460 = vpop.permute.xlu0 %1459
        %v1461 = vsel %vm1452, %v1456, %v1458
        %v1462 = vsel %vm1452, %v1458, %v1460
        %v1463 = vrot.slane %v1453, 4
        %v1464 = vrot.slane %v1454, 4
        %v1465 = vrot.slane %v1461, 4
        %v1466 = vrot.slane %v1462, 4
        %1471 = vst [vmem:[#allocation2 + $0x140] sm:$0x30] %v1463
        %1472 = vst [vmem:[#allocation2 + $0x148] sm:$0x30] %v1464
        %1473 = vst [vmem:[#allocation2 + $0x150] sm:$0x30] %v1465
        %1474 = vst [vmem:[#allocation2 + $0x158] sm:$0x30] %v1466
        %1475 = vrot.lane.b32.xlu0 %v283, 85
        %v1476 = vpop.permute.xlu0 %1475
        %1477 = vrot.lane.b32.xlu0 %v284, 85
        %v1478 = vpop.permute.xlu0 %1477
        %1479 = vrot.lane.b32.xlu0 %v280, 85
        %v1480 = vpop.permute.xlu0 %1479
        %vm1481 = vcmask 695296
        %v1482 = vsel %vm1481, %v1476, %v1478
        %v1483 = vsel %vm1481, %v1478, %v1480
        %1484 = vrot.lane.b32.xlu0 %v287, 85
        %v1485 = vpop.permute.xlu0 %1484
        %1486 = vrot.lane.b32.xlu0 %v288, 85
        %v1487 = vpop.permute.xlu0 %1486
        %1488 = vrot.lane.b32.xlu0 %v305, 85
        %v1489 = vpop.permute.xlu0 %1488
        %v1490 = vsel %vm1481, %v1485, %v1487
        %v1491 = vsel %vm1481, %v1487, %v1489
        %v1492 = vrot.slane %v1482, 2
        %v1493 = vrot.slane %v1483, 2
        %v1494 = vrot.slane %v1490, 2
        %v1495 = vrot.slane %v1491, 2
        %1500 = vst [vmem:[#allocation2 + $0x140] sm:$0xc0] %v1492
        %1501 = vst [vmem:[#allocation2 + $0x148] sm:$0xc0] %v1493
        %1502 = vst [vmem:[#allocation2 + $0x150] sm:$0xc0] %v1494
        %1503 = vst [vmem:[#allocation2 + $0x158] sm:$0xc0] %v1495
        %1504 = vrot.lane.b32.xlu0 %v283, 84
        %v1505 = vpop.permute.xlu0 %1504
        %1506 = vrot.lane.b32.xlu0 %v284, 84
        %v1507 = vpop.permute.xlu0 %1506
        %1508 = vrot.lane.b32.xlu0 %v280, 84
        %v1509 = vpop.permute.xlu0 %1508
        %vm1510 = vcmask 687104
        %v1511 = vsel %vm1510, %v1505, %v1507
        %v1512 = vsel %vm1510, %v1507, %v1509
        %1515 = vrot.lane.b32.xlu0 %v287, 84
        %v1516 = vpop.permute.xlu0 %1515
        %1517 = vrot.lane.b32.xlu0 %v288, 84
        %v1518 = vpop.permute.xlu0 %1517
        %1519 = vrot.lane.b32.xlu0 %v305, 84
        %v1520 = vpop.permute.xlu0 %1519
        %v1521 = vsel %vm1510, %v1516, %v1518
        %v1522 = vsel %vm1510, %v1518, %v1520
        %1525 = vst [vmem:[#allocation2 + $0x160] sm:$0x3] %v1511
        %1526 = vst [vmem:[#allocation2 + $0x168] sm:$0x3] %v1512
        %1527 = vst [vmem:[#allocation2 + $0x170] sm:$0x3] %v1521
        %1528 = vst [vmem:[#allocation2 + $0x178] sm:$0x3] %v1522
        %1529 = vrot.lane.b32.xlu0 %v283, 83
        %v1530 = vpop.permute.xlu0 %1529
        %1531 = vrot.lane.b32.xlu0 %v284, 83
        %v1532 = vpop.permute.xlu0 %1531
        %1533 = vrot.lane.b32.xlu0 %v280, 83
        %v1534 = vpop.permute.xlu0 %1533
        %vm1535 = vcmask 678912
        %v1536 = vsel %vm1535, %v1530, %v1532
        %v1537 = vsel %vm1535, %v1532, %v1534
        %1538 = vrot.lane.b32.xlu0 %v287, 83
        %v1539 = vpop.permute.xlu0 %1538
        %1540 = vrot.lane.b32.xlu0 %v288, 83
        %v1541 = vpop.permute.xlu0 %1540
        %1542 = vrot.lane.b32.xlu0 %v305, 83
        %v1543 = vpop.permute.xlu0 %1542
        %v1544 = vsel %vm1535, %v1539, %v1541
        %v1545 = vsel %vm1535, %v1541, %v1543
        %v1546 = vrot.slane %v1536, 6
        %v1547 = vrot.slane %v1537, 6
        %v1548 = vrot.slane %v1544, 6
        %v1549 = vrot.slane %v1545, 6
        %1554 = vst [vmem:[#allocation2 + $0x160] sm:$0xc] %v1546
        %1555 = vst [vmem:[#allocation2 + $0x168] sm:$0xc] %v1547
        %1556 = vst [vmem:[#allocation2 + $0x170] sm:$0xc] %v1548
        %1557 = vst [vmem:[#allocation2 + $0x178] sm:$0xc] %v1549
        %1558 = vrot.lane.b32.xlu0 %v283, 82
        %v1559 = vpop.permute.xlu0 %1558
        %1560 = vrot.lane.b32.xlu0 %v284, 82
        %v1561 = vpop.permute.xlu0 %1560
        %1562 = vrot.lane.b32.xlu0 %v280, 82
        %v1563 = vpop.permute.xlu0 %1562
        %vm1564 = vcmask 670720
        %v1565 = vsel %vm1564, %v1559, %v1561
        %v1566 = vsel %vm1564, %v1561, %v1563
        %1567 = vrot.lane.b32.xlu0 %v287, 82
        %v1568 = vpop.permute.xlu0 %1567
        %1569 = vrot.lane.b32.xlu0 %v288, 82
        %v1570 = vpop.permute.xlu0 %1569
        %1571 = vrot.lane.b32.xlu0 %v305, 82
        %v1572 = vpop.permute.xlu0 %1571
        %v1573 = vsel %vm1564, %v1568, %v1570
        %v1574 = vsel %vm1564, %v1570, %v1572
        %v1575 = vrot.slane %v1565, 4
        %v1576 = vrot.slane %v1566, 4
        %v1577 = vrot.slane %v1573, 4
        %v1578 = vrot.slane %v1574, 4
        %1583 = vst [vmem:[#allocation2 + $0x160] sm:$0x30] %v1575
        %1584 = vst [vmem:[#allocation2 + $0x168] sm:$0x30] %v1576
        %1585 = vst [vmem:[#allocation2 + $0x170] sm:$0x30] %v1577
        %1586 = vst [vmem:[#allocation2 + $0x178] sm:$0x30] %v1578
        %1587 = vrot.lane.b32.xlu0 %v283, 81
        %v1588 = vpop.permute.xlu0 %1587
        %1589 = vrot.lane.b32.xlu0 %v284, 81
        %v1590 = vpop.permute.xlu0 %1589
        %1591 = vrot.lane.b32.xlu0 %v280, 81
        %v1592 = vpop.permute.xlu0 %1591
        %vm1593 = vcmask 662528
        %v1594 = vsel %vm1593, %v1588, %v1590
        %v1595 = vsel %vm1593, %v1590, %v1592
        %1596 = vrot.lane.b32.xlu0 %v287, 81
        %v1597 = vpop.permute.xlu0 %1596
        %1598 = vrot.lane.b32.xlu0 %v288, 81
        %v1599 = vpop.permute.xlu0 %1598
        %1600 = vrot.lane.b32.xlu0 %v305, 81
        %v1601 = vpop.permute.xlu0 %1600
        %v1602 = vsel %vm1593, %v1597, %v1599
        %v1603 = vsel %vm1593, %v1599, %v1601
        %v1604 = vrot.slane %v1594, 2
        %v1605 = vrot.slane %v1595, 2
        %v1606 = vrot.slane %v1602, 2
        %v1607 = vrot.slane %v1603, 2
        %1612 = vst [vmem:[#allocation2 + $0x160] sm:$0xc0] %v1604
        %1613 = vst [vmem:[#allocation2 + $0x168] sm:$0xc0] %v1605
        %1614 = vst [vmem:[#allocation2 + $0x170] sm:$0xc0] %v1606
        %1615 = vst [vmem:[#allocation2 + $0x178] sm:$0xc0] %v1607
        %1616 = vrot.lane.b32.xlu0 %v283, 80
        %v1617 = vpop.permute.xlu0 %1616
        %1618 = vrot.lane.b32.xlu0 %v284, 80
        %v1619 = vpop.permute.xlu0 %1618
        %1620 = vrot.lane.b32.xlu0 %v280, 80
        %v1621 = vpop.permute.xlu0 %1620
        %vm1622 = vcmask 654336
        %v1623 = vsel %vm1622, %v1617, %v1619
        %v1624 = vsel %vm1622, %v1619, %v1621
        %1627 = vrot.lane.b32.xlu0 %v287, 80
        %v1628 = vpop.permute.xlu0 %1627
        %1629 = vrot.lane.b32.xlu0 %v288, 80
        %v1630 = vpop.permute.xlu0 %1629
        %1631 = vrot.lane.b32.xlu0 %v305, 80
        %v1632 = vpop.permute.xlu0 %1631
        %v1633 = vsel %vm1622, %v1628, %v1630
        %v1634 = vsel %vm1622, %v1630, %v1632
        %1637 = vst [vmem:[#allocation2 + $0x180] sm:$0x3] %v1623
        %1638 = vst [vmem:[#allocation2 + $0x188] sm:$0x3] %v1624
        %1639 = vst [vmem:[#allocation2 + $0x190] sm:$0x3] %v1633
        %1640 = vst [vmem:[#allocation2 + $0x198] sm:$0x3] %v1634
        %1641 = vrot.lane.b32.xlu0 %v283, 79
        %v1642 = vpop.permute.xlu0 %1641
        %1643 = vrot.lane.b32.xlu0 %v284, 79
        %v1644 = vpop.permute.xlu0 %1643
        %1645 = vrot.lane.b32.xlu0 %v280, 79
        %v1646 = vpop.permute.xlu0 %1645
        %vm1647 = vcmask 646144
        %v1648 = vsel %vm1647, %v1642, %v1644
        %v1649 = vsel %vm1647, %v1644, %v1646
        %1650 = vrot.lane.b32.xlu0 %v287, 79
        %v1651 = vpop.permute.xlu0 %1650
        %1652 = vrot.lane.b32.xlu0 %v288, 79
        %v1653 = vpop.permute.xlu0 %1652
        %1654 = vrot.lane.b32.xlu0 %v305, 79
        %v1655 = vpop.permute.xlu0 %1654
        %v1656 = vsel %vm1647, %v1651, %v1653
        %v1657 = vsel %vm1647, %v1653, %v1655
        %v1658 = vrot.slane %v1648, 6
        %v1659 = vrot.slane %v1649, 6
        %v1660 = vrot.slane %v1656, 6
        %v1661 = vrot.slane %v1657, 6
        %1666 = vst [vmem:[#allocation2 + $0x180] sm:$0xc] %v1658
        %1667 = vst [vmem:[#allocation2 + $0x188] sm:$0xc] %v1659
        %1668 = vst [vmem:[#allocation2 + $0x190] sm:$0xc] %v1660
        %1669 = vst [vmem:[#allocation2 + $0x198] sm:$0xc] %v1661
        %1670 = vrot.lane.b32.xlu0 %v283, 78
        %v1671 = vpop.permute.xlu0 %1670
        %1672 = vrot.lane.b32.xlu0 %v284, 78
        %v1673 = vpop.permute.xlu0 %1672
        %1674 = vrot.lane.b32.xlu0 %v280, 78
        %v1675 = vpop.permute.xlu0 %1674
        %vm1676 = vcmask 637952
        %v1677 = vsel %vm1676, %v1671, %v1673
        %v1678 = vsel %vm1676, %v1673, %v1675
        %1679 = vrot.lane.b32.xlu0 %v287, 78
        %v1680 = vpop.permute.xlu0 %1679
        %1681 = vrot.lane.b32.xlu0 %v288, 78
        %v1682 = vpop.permute.xlu0 %1681
        %1683 = vrot.lane.b32.xlu0 %v305, 78
        %v1684 = vpop.permute.xlu0 %1683
        %v1685 = vsel %vm1676, %v1680, %v1682
        %v1686 = vsel %vm1676, %v1682, %v1684
        %v1687 = vrot.slane %v1677, 4
        %v1688 = vrot.slane %v1678, 4
        %v1689 = vrot.slane %v1685, 4
        %v1690 = vrot.slane %v1686, 4
        %1695 = vst [vmem:[#allocation2 + $0x180] sm:$0x30] %v1687
        %1696 = vst [vmem:[#allocation2 + $0x188] sm:$0x30] %v1688
        %1697 = vst [vmem:[#allocation2 + $0x190] sm:$0x30] %v1689
        %1698 = vst [vmem:[#allocation2 + $0x198] sm:$0x30] %v1690
        %1699 = vrot.lane.b32.xlu0 %v283, 77
        %v1700 = vpop.permute.xlu0 %1699
        %1701 = vrot.lane.b32.xlu0 %v284, 77
        %v1702 = vpop.permute.xlu0 %1701
        %1703 = vrot.lane.b32.xlu0 %v280, 77
        %v1704 = vpop.permute.xlu0 %1703
        %vm1705 = vcmask 629760
        %v1706 = vsel %vm1705, %v1700, %v1702
        %v1707 = vsel %vm1705, %v1702, %v1704
        %1708 = vrot.lane.b32.xlu0 %v287, 77
        %v1709 = vpop.permute.xlu0 %1708
        %1710 = vrot.lane.b32.xlu0 %v288, 77
        %v1711 = vpop.permute.xlu0 %1710
        %1712 = vrot.lane.b32.xlu0 %v305, 77
        %v1713 = vpop.permute.xlu0 %1712
        %v1714 = vsel %vm1705, %v1709, %v1711
        %v1715 = vsel %vm1705, %v1711, %v1713
        %v1716 = vrot.slane %v1706, 2
        %v1717 = vrot.slane %v1707, 2
        %v1718 = vrot.slane %v1714, 2
        %v1719 = vrot.slane %v1715, 2
        %1724 = vst [vmem:[#allocation2 + $0x180] sm:$0xc0] %v1716
        %1725 = vst [vmem:[#allocation2 + $0x188] sm:$0xc0] %v1717
        %1726 = vst [vmem:[#allocation2 + $0x190] sm:$0xc0] %v1718
        %1727 = vst [vmem:[#allocation2 + $0x198] sm:$0xc0] %v1719
        %1728 = vrot.lane.b32.xlu0 %v283, 76
        %v1729 = vpop.permute.xlu0 %1728
        %1730 = vrot.lane.b32.xlu0 %v284, 76
        %v1731 = vpop.permute.xlu0 %1730
        %1732 = vrot.lane.b32.xlu0 %v280, 76
        %v1733 = vpop.permute.xlu0 %1732
        %vm1734 = vcmask 621568
        %v1735 = vsel %vm1734, %v1729, %v1731
        %v1736 = vsel %vm1734, %v1731, %v1733
        %1739 = vrot.lane.b32.xlu0 %v287, 76
        %v1740 = vpop.permute.xlu0 %1739
        %1741 = vrot.lane.b32.xlu0 %v288, 76
        %v1742 = vpop.permute.xlu0 %1741
        %1743 = vrot.lane.b32.xlu0 %v305, 76
        %v1744 = vpop.permute.xlu0 %1743
        %v1745 = vsel %vm1734, %v1740, %v1742
        %v1746 = vsel %vm1734, %v1742, %v1744
        %1749 = vst [vmem:[#allocation2 + $0x1a0] sm:$0x3] %v1735
        %1750 = vst [vmem:[#allocation2 + $0x1a8] sm:$0x3] %v1736
        %1751 = vst [vmem:[#allocation2 + $0x1b0] sm:$0x3] %v1745
        %1752 = vst [vmem:[#allocation2 + $0x1b8] sm:$0x3] %v1746
        %1753 = vrot.lane.b32.xlu0 %v283, 75
        %v1754 = vpop.permute.xlu0 %1753
        %1755 = vrot.lane.b32.xlu0 %v284, 75
        %v1756 = vpop.permute.xlu0 %1755
        %1757 = vrot.lane.b32.xlu0 %v280, 75
        %v1758 = vpop.permute.xlu0 %1757
        %vm1759 = vcmask 613376
        %v1760 = vsel %vm1759, %v1754, %v1756
        %v1761 = vsel %vm1759, %v1756, %v1758
        %1762 = vrot.lane.b32.xlu0 %v287, 75
        %v1763 = vpop.permute.xlu0 %1762
        %1764 = vrot.lane.b32.xlu0 %v288, 75
        %v1765 = vpop.permute.xlu0 %1764
        %1766 = vrot.lane.b32.xlu0 %v305, 75
        %v1767 = vpop.permute.xlu0 %1766
        %v1768 = vsel %vm1759, %v1763, %v1765
        %v1769 = vsel %vm1759, %v1765, %v1767
        %v1770 = vrot.slane %v1760, 6
        %v1771 = vrot.slane %v1761, 6
        %v1772 = vrot.slane %v1768, 6
        %v1773 = vrot.slane %v1769, 6
        %1778 = vst [vmem:[#allocation2 + $0x1a0] sm:$0xc] %v1770
        %1779 = vst [vmem:[#allocation2 + $0x1a8] sm:$0xc] %v1771
        %1780 = vst [vmem:[#allocation2 + $0x1b0] sm:$0xc] %v1772
        %1781 = vst [vmem:[#allocation2 + $0x1b8] sm:$0xc] %v1773
        %1782 = vrot.lane.b32.xlu0 %v283, 74
        %v1783 = vpop.permute.xlu0 %1782
        %1784 = vrot.lane.b32.xlu0 %v284, 74
        %v1785 = vpop.permute.xlu0 %1784
        %1786 = vrot.lane.b32.xlu0 %v280, 74
        %v1787 = vpop.permute.xlu0 %1786
        %vm1788 = vcmask 605184
        %v1789 = vsel %vm1788, %v1783, %v1785
        %v1790 = vsel %vm1788, %v1785, %v1787
        %1791 = vrot.lane.b32.xlu0 %v287, 74
        %v1792 = vpop.permute.xlu0 %1791
        %1793 = vrot.lane.b32.xlu0 %v288, 74
        %v1794 = vpop.permute.xlu0 %1793
        %1795 = vrot.lane.b32.xlu0 %v305, 74
        %v1796 = vpop.permute.xlu0 %1795
        %v1797 = vsel %vm1788, %v1792, %v1794
        %v1798 = vsel %vm1788, %v1794, %v1796
        %v1799 = vrot.slane %v1789, 4
        %v1800 = vrot.slane %v1790, 4
        %v1801 = vrot.slane %v1797, 4
        %v1802 = vrot.slane %v1798, 4
        %1807 = vst [vmem:[#allocation2 + $0x1a0] sm:$0x30] %v1799
        %1808 = vst [vmem:[#allocation2 + $0x1a8] sm:$0x30] %v1800
        %1809 = vst [vmem:[#allocation2 + $0x1b0] sm:$0x30] %v1801
        %1810 = vst [vmem:[#allocation2 + $0x1b8] sm:$0x30] %v1802
        %1811 = vrot.lane.b32.xlu0 %v283, 73
        %v1812 = vpop.permute.xlu0 %1811
        %1813 = vrot.lane.b32.xlu0 %v284, 73
        %v1814 = vpop.permute.xlu0 %1813
        %1815 = vrot.lane.b32.xlu0 %v280, 73
        %v1816 = vpop.permute.xlu0 %1815
        %vm1817 = vcmask 596992
        %v1818 = vsel %vm1817, %v1812, %v1814
        %v1819 = vsel %vm1817, %v1814, %v1816
        %1820 = vrot.lane.b32.xlu0 %v287, 73
        %v1821 = vpop.permute.xlu0 %1820
        %1822 = vrot.lane.b32.xlu0 %v288, 73
        %v1823 = vpop.permute.xlu0 %1822
        %1824 = vrot.lane.b32.xlu0 %v305, 73
        %v1825 = vpop.permute.xlu0 %1824
        %v1826 = vsel %vm1817, %v1821, %v1823
        %v1827 = vsel %vm1817, %v1823, %v1825
        %v1828 = vrot.slane %v1818, 2
        %v1829 = vrot.slane %v1819, 2
        %v1830 = vrot.slane %v1826, 2
        %v1831 = vrot.slane %v1827, 2
        %1836 = vst [vmem:[#allocation2 + $0x1a0] sm:$0xc0] %v1828
        %1837 = vst [vmem:[#allocation2 + $0x1a8] sm:$0xc0] %v1829
        %1838 = vst [vmem:[#allocation2 + $0x1b0] sm:$0xc0] %v1830
        %1839 = vst [vmem:[#allocation2 + $0x1b8] sm:$0xc0] %v1831
        %1840 = vrot.lane.b32.xlu0 %v283, 72
        %v1841 = vpop.permute.xlu0 %1840
        %1842 = vrot.lane.b32.xlu0 %v284, 72
        %v1843 = vpop.permute.xlu0 %1842
        %1844 = vrot.lane.b32.xlu0 %v280, 72
        %v1845 = vpop.permute.xlu0 %1844
        %vm1846 = vcmask 588800
        %v1847 = vsel %vm1846, %v1841, %v1843
        %v1848 = vsel %vm1846, %v1843, %v1845
        %1851 = vrot.lane.b32.xlu0 %v287, 72
        %v1852 = vpop.permute.xlu0 %1851
        %1853 = vrot.lane.b32.xlu0 %v288, 72
        %v1854 = vpop.permute.xlu0 %1853
        %1855 = vrot.lane.b32.xlu0 %v305, 72
        %v1856 = vpop.permute.xlu0 %1855
        %v1857 = vsel %vm1846, %v1852, %v1854
        %v1858 = vsel %vm1846, %v1854, %v1856
        %1861 = vst [vmem:[#allocation2 + $0x1c0] sm:$0x3] %v1847
        %1862 = vst [vmem:[#allocation2 + $0x1c8] sm:$0x3] %v1848
        %1863 = vst [vmem:[#allocation2 + $0x1d0] sm:$0x3] %v1857
        %1864 = vst [vmem:[#allocation2 + $0x1d8] sm:$0x3] %v1858
        %1865 = vrot.lane.b32.xlu0 %v283, 71
        %v1866 = vpop.permute.xlu0 %1865
        %1867 = vrot.lane.b32.xlu0 %v284, 71
        %v1868 = vpop.permute.xlu0 %1867
        %1869 = vrot.lane.b32.xlu0 %v280, 71
        %v1870 = vpop.permute.xlu0 %1869
        %vm1871 = vcmask 580608
        %v1872 = vsel %vm1871, %v1866, %v1868
        %v1873 = vsel %vm1871, %v1868, %v1870
        %1874 = vrot.lane.b32.xlu0 %v287, 71
        %v1875 = vpop.permute.xlu0 %1874
        %1876 = vrot.lane.b32.xlu0 %v288, 71
        %v1877 = vpop.permute.xlu0 %1876
        %1878 = vrot.lane.b32.xlu0 %v305, 71
        %v1879 = vpop.permute.xlu0 %1878
        %v1880 = vsel %vm1871, %v1875, %v1877
        %v1881 = vsel %vm1871, %v1877, %v1879
        %v1882 = vrot.slane %v1872, 6
        %v1883 = vrot.slane %v1873, 6
        %v1884 = vrot.slane %v1880, 6
        %v1885 = vrot.slane %v1881, 6
        %1890 = vst [vmem:[#allocation2 + $0x1c0] sm:$0xc] %v1882
        %1891 = vst [vmem:[#allocation2 + $0x1c8] sm:$0xc] %v1883
        %1892 = vst [vmem:[#allocation2 + $0x1d0] sm:$0xc] %v1884
        %1893 = vst [vmem:[#allocation2 + $0x1d8] sm:$0xc] %v1885
        %1894 = vrot.lane.b32.xlu0 %v283, 70
        %v1895 = vpop.permute.xlu0 %1894
        %1896 = vrot.lane.b32.xlu0 %v284, 70
        %v1897 = vpop.permute.xlu0 %1896
        %1898 = vrot.lane.b32.xlu0 %v280, 70
        %v1899 = vpop.permute.xlu0 %1898
        %vm1900 = vcmask 572416
        %v1901 = vsel %vm1900, %v1895, %v1897
        %v1902 = vsel %vm1900, %v1897, %v1899
        %1903 = vrot.lane.b32.xlu0 %v287, 70
        %v1904 = vpop.permute.xlu0 %1903
        %1905 = vrot.lane.b32.xlu0 %v288, 70
        %v1906 = vpop.permute.xlu0 %1905
        %1907 = vrot.lane.b32.xlu0 %v305, 70
        %v1908 = vpop.permute.xlu0 %1907
        %v1909 = vsel %vm1900, %v1904, %v1906
        %v1910 = vsel %vm1900, %v1906, %v1908
        %v1911 = vrot.slane %v1901, 4
        %v1912 = vrot.slane %v1902, 4
        %v1913 = vrot.slane %v1909, 4
        %v1914 = vrot.slane %v1910, 4
        %1919 = vst [vmem:[#allocation2 + $0x1c0] sm:$0x30] %v1911
        %1920 = vst [vmem:[#allocation2 + $0x1c8] sm:$0x30] %v1912
        %1921 = vst [vmem:[#allocation2 + $0x1d0] sm:$0x30] %v1913
        %1922 = vst [vmem:[#allocation2 + $0x1d8] sm:$0x30] %v1914
        %1923 = vrot.lane.b32.xlu0 %v283, 69
        %v1924 = vpop.permute.xlu0 %1923
        %1925 = vrot.lane.b32.xlu0 %v284, 69
        %v1926 = vpop.permute.xlu0 %1925
        %1927 = vrot.lane.b32.xlu0 %v280, 69
        %v1928 = vpop.permute.xlu0 %1927
        %vm1929 = vcmask 564224
        %v1930 = vsel %vm1929, %v1924, %v1926
        %v1931 = vsel %vm1929, %v1926, %v1928
        %1932 = vrot.lane.b32.xlu0 %v287, 69
        %v1933 = vpop.permute.xlu0 %1932
        %1934 = vrot.lane.b32.xlu0 %v288, 69
        %v1935 = vpop.permute.xlu0 %1934
        %1936 = vrot.lane.b32.xlu0 %v305, 69
        %v1937 = vpop.permute.xlu0 %1936
        %v1938 = vsel %vm1929, %v1933, %v1935
        %v1939 = vsel %vm1929, %v1935, %v1937
        %v1940 = vrot.slane %v1930, 2
        %v1941 = vrot.slane %v1931, 2
        %v1942 = vrot.slane %v1938, 2
        %v1943 = vrot.slane %v1939, 2
        %1948 = vst [vmem:[#allocation2 + $0x1c0] sm:$0xc0] %v1940
        %1949 = vst [vmem:[#allocation2 + $0x1c8] sm:$0xc0] %v1941
        %1950 = vst [vmem:[#allocation2 + $0x1d0] sm:$0xc0] %v1942
        %1951 = vst [vmem:[#allocation2 + $0x1d8] sm:$0xc0] %v1943
        %1952 = vrot.lane.b32.xlu0 %v283, 68
        %v1953 = vpop.permute.xlu0 %1952
        %1954 = vrot.lane.b32.xlu0 %v284, 68
        %v1955 = vpop.permute.xlu0 %1954
        %1956 = vrot.lane.b32.xlu0 %v280, 68
        %v1957 = vpop.permute.xlu0 %1956
        %vm1958 = vcmask 556032
        %v1959 = vsel %vm1958, %v1953, %v1955
        %v1960 = vsel %vm1958, %v1955, %v1957
        %1963 = vrot.lane.b32.xlu0 %v287, 68
        %v1964 = vpop.permute.xlu0 %1963
        %1965 = vrot.lane.b32.xlu0 %v288, 68
        %v1966 = vpop.permute.xlu0 %1965
        %1967 = vrot.lane.b32.xlu0 %v305, 68
        %v1968 = vpop.permute.xlu0 %1967
        %v1969 = vsel %vm1958, %v1964, %v1966
        %v1970 = vsel %vm1958, %v1966, %v1968
        %1973 = vst [vmem:[#allocation2 + $0x1e0] sm:$0x3] %v1959
        %1974 = vst [vmem:[#allocation2 + $0x1e8] sm:$0x3] %v1960
        %1975 = vst [vmem:[#allocation2 + $0x1f0] sm:$0x3] %v1969
        %1976 = vst [vmem:[#allocation2 + $0x1f8] sm:$0x3] %v1970
        %1977 = vrot.lane.b32.xlu0 %v283, 67
        %v1978 = vpop.permute.xlu0 %1977
        %1979 = vrot.lane.b32.xlu0 %v284, 67
        %v1980 = vpop.permute.xlu0 %1979
        %1981 = vrot.lane.b32.xlu0 %v280, 67
        %v1982 = vpop.permute.xlu0 %1981
        %vm1983 = vcmask 547840
        %v1984 = vsel %vm1983, %v1978, %v1980
        %v1985 = vsel %vm1983, %v1980, %v1982
        %1986 = vrot.lane.b32.xlu0 %v287, 67
        %v1987 = vpop.permute.xlu0 %1986
        %1988 = vrot.lane.b32.xlu0 %v288, 67
        %v1989 = vpop.permute.xlu0 %1988
        %1990 = vrot.lane.b32.xlu0 %v305, 67
        %v1991 = vpop.permute.xlu0 %1990
        %v1992 = vsel %vm1983, %v1987, %v1989
        %v1993 = vsel %vm1983, %v1989, %v1991
        %v1994 = vrot.slane %v1984, 6
        %v1995 = vrot.slane %v1985, 6
        %v1996 = vrot.slane %v1992, 6
        %v1997 = vrot.slane %v1993, 6
        %2002 = vst [vmem:[#allocation2 + $0x1e0] sm:$0xc] %v1994
        %2003 = vst [vmem:[#allocation2 + $0x1e8] sm:$0xc] %v1995
        %2004 = vst [vmem:[#allocation2 + $0x1f0] sm:$0xc] %v1996
        %2005 = vst [vmem:[#allocation2 + $0x1f8] sm:$0xc] %v1997
        %2006 = vrot.lane.b32.xlu0 %v283, 66
        %v2007 = vpop.permute.xlu0 %2006
        %2008 = vrot.lane.b32.xlu0 %v284, 66
        %v2009 = vpop.permute.xlu0 %2008
        %2010 = vrot.lane.b32.xlu0 %v280, 66
        %v2011 = vpop.permute.xlu0 %2010
        %vm2012 = vcmask 539648
        %v2013 = vsel %vm2012, %v2007, %v2009
        %v2014 = vsel %vm2012, %v2009, %v2011
        %2015 = vrot.lane.b32.xlu0 %v287, 66
        %v2016 = vpop.permute.xlu0 %2015
        %2017 = vrot.lane.b32.xlu0 %v288, 66
        %v2018 = vpop.permute.xlu0 %2017
        %2019 = vrot.lane.b32.xlu0 %v305, 66
        %v2020 = vpop.permute.xlu0 %2019
        %v2021 = vsel %vm2012, %v2016, %v2018
        %v2022 = vsel %vm2012, %v2018, %v2020
        %v2023 = vrot.slane %v2013, 4
        %v2024 = vrot.slane %v2014, 4
        %v2025 = vrot.slane %v2021, 4
        %v2026 = vrot.slane %v2022, 4
        %2031 = vst [vmem:[#allocation2 + $0x1e0] sm:$0x30] %v2023
        %2032 = vst [vmem:[#allocation2 + $0x1e8] sm:$0x30] %v2024
        %2033 = vst [vmem:[#allocation2 + $0x1f0] sm:$0x30] %v2025
        %2034 = vst [vmem:[#allocation2 + $0x1f8] sm:$0x30] %v2026
        %2035 = vrot.lane.b32.xlu0 %v283, 65
        %v2036 = vpop.permute.xlu0 %2035
        %2037 = vrot.lane.b32.xlu0 %v284, 65
        %v2038 = vpop.permute.xlu0 %2037
        %2039 = vrot.lane.b32.xlu0 %v280, 65
        %v2040 = vpop.permute.xlu0 %2039
        %vm2041 = vcmask 531456
        %v2042 = vsel %vm2041, %v2036, %v2038
        %v2043 = vsel %vm2041, %v2038, %v2040
        %2044 = vrot.lane.b32.xlu0 %v287, 65
        %v2045 = vpop.permute.xlu0 %2044
        %2046 = vrot.lane.b32.xlu0 %v288, 65
        %v2047 = vpop.permute.xlu0 %2046
        %2048 = vrot.lane.b32.xlu0 %v305, 65
        %v2049 = vpop.permute.xlu0 %2048
        %v2050 = vsel %vm2041, %v2045, %v2047
        %v2051 = vsel %vm2041, %v2047, %v2049
        %v2052 = vrot.slane %v2042, 2
        %v2053 = vrot.slane %v2043, 2
        %v2054 = vrot.slane %v2050, 2
        %v2055 = vrot.slane %v2051, 2
        %2060 = vst [vmem:[#allocation2 + $0x1e0] sm:$0xc0] %v2052
        %2061 = vst [vmem:[#allocation2 + $0x1e8] sm:$0xc0] %v2053
        %2062 = vst [vmem:[#allocation2 + $0x1f0] sm:$0xc0] %v2054
        %2063 = vst [vmem:[#allocation2 + $0x1f8] sm:$0xc0] %v2055
        %v2064 = vld [vmem:[#allocation4] sm:$0xff]
        %v2065 = vld [vmem:[#allocation4 + $0x8] sm:$0xff]
        %v2066 = vld [vmem:[#allocation2] sm:$0xff]
        %v2067 = vld [vmem:[#allocation2 + $0x8] sm:$0xff]
        %v2068 = vld [vmem:[#allocation2 + $0x10] sm:$0xff]
        %v2069 = vld [vmem:[#allocation2 + $0x18] sm:$0xff]
        %v2070 = vld [vmem:[#allocation2 + $0x20] sm:$0xff]
        %v2071 = vld [vmem:[#allocation2 + $0x28] sm:$0xff]
        %v2072 = vld [vmem:[#allocation2 + $0x30] sm:$0xff]
        %v2073 = vld [vmem:[#allocation2 + $0x38] sm:$0xff]
        %v2074 = vld [vmem:[#allocation2 + $0x40] sm:$0xff]
        %v2075 = vld [vmem:[#allocation2 + $0x48] sm:$0xff]
        %v2076 = vld [vmem:[#allocation2 + $0x50] sm:$0xff]
        %v2077 = vld [vmem:[#allocation2 + $0x58] sm:$0xff]
        %v2078 = vld [vmem:[#allocation2 + $0x60] sm:$0xff]
        %v2079 = vld [vmem:[#allocation2 + $0x68] sm:$0xff]
        %v2080 = vld [vmem:[#allocation2 + $0x70] sm:$0xff]
        %v2081 = vld [vmem:[#allocation2 + $0x78] sm:$0xff]
        %v2082 = vld [vmem:[#allocation2 + $0x80] sm:$0xff]
        %v2083 = vld [vmem:[#allocation2 + $0x88] sm:$0xff]
        %v2084 = vld [vmem:[#allocation2 + $0x90] sm:$0xff]
        %v2085 = vld [vmem:[#allocation2 + $0x98] sm:$0xff]
        %v2086 = vld [vmem:[#allocation2 + $0xa0] sm:$0xff]
        %v2087 = vld [vmem:[#allocation2 + $0xa8] sm:$0xff]
        %v2088 = vld [vmem:[#allocation2 + $0xb0] sm:$0xff]
        %v2089 = vld [vmem:[#allocation2 + $0xb8] sm:$0xff]
        %v2090 = vld [vmem:[#allocation2 + $0xc0] sm:$0xff]
        %v2091 = vld [vmem:[#allocation2 + $0xc8] sm:$0xff]
        %v2092 = vld [vmem:[#allocation2 + $0xd0] sm:$0xff]
        %v2093 = vld [vmem:[#allocation2 + $0xd8] sm:$0xff]
        %v2094 = vld [vmem:[#allocation2 + $0xe0] sm:$0xff]
        %v2095 = vld [vmem:[#allocation2 + $0xe8] sm:$0xff]
        %v2096 = vld [vmem:[#allocation2 + $0xf0] sm:$0xff]
        %v2097 = vld [vmem:[#allocation2 + $0xf8] sm:$0xff]
        %v2098 = vld [vmem:[#allocation2 + $0x100] sm:$0xff]
        %v2099 = vld [vmem:[#allocation2 + $0x108] sm:$0xff]
        %v2100 = vld [vmem:[#allocation2 + $0x110] sm:$0xff]
        %v2101 = vld [vmem:[#allocation2 + $0x118] sm:$0xff]
        %v2102 = vld [vmem:[#allocation2 + $0x120] sm:$0xff]
        %v2103 = vld [vmem:[#allocation2 + $0x128] sm:$0xff]
        %v2104 = vld [vmem:[#allocation2 + $0x130] sm:$0xff]
        %v2105 = vld [vmem:[#allocation2 + $0x138] sm:$0xff]
        %v2106 = vld [vmem:[#allocation2 + $0x140] sm:$0xff]
        %v2107 = vld [vmem:[#allocation2 + $0x148] sm:$0xff]
        %v2108 = vld [vmem:[#allocation2 + $0x150] sm:$0xff]
        %v2109 = vld [vmem:[#allocation2 + $0x158] sm:$0xff]
        %v2110 = vld [vmem:[#allocation2 + $0x160] sm:$0xff]
        %v2111 = vld [vmem:[#allocation2 + $0x168] sm:$0xff]
        %v2112 = vld [vmem:[#allocation2 + $0x170] sm:$0xff]
        %v2113 = vld [vmem:[#allocation2 + $0x178] sm:$0xff]
        %v2114 = vld [vmem:[#allocation2 + $0x180] sm:$0xff]
        %v2115 = vld [vmem:[#allocation2 + $0x188] sm:$0xff]
        %v2116 = vld [vmem:[#allocation2 + $0x190] sm:$0xff]
        %v2117 = vld [vmem:[#allocation2 + $0x198] sm:$0xff]
        %v2118 = vld [vmem:[#allocation2 + $0x1a0] sm:$0xff]
        %v2119 = vld [vmem:[#allocation2 + $0x1a8] sm:$0xff]
        %v2120 = vld [vmem:[#allocation2 + $0x1b0] sm:$0xff]
        %v2121 = vld [vmem:[#allocation2 + $0x1b8] sm:$0xff]
        %v2122 = vld [vmem:[#allocation2 + $0x1c0] sm:$0xff]
        %v2123 = vld [vmem:[#allocation2 + $0x1c8] sm:$0xff]
        %v2124 = vld [vmem:[#allocation2 + $0x1d0] sm:$0xff]
        %v2125 = vld [vmem:[#allocation2 + $0x1d8] sm:$0xff]
        %v2126 = vld [vmem:[#allocation2 + $0x1e0] sm:$0xff]
        %v2127 = vld [vmem:[#allocation2 + $0x1e8] sm:$0xff]
        %v2128 = vld [vmem:[#allocation2 + $0x1f0] sm:$0xff]
        %v2129 = vld [vmem:[#allocation2 + $0x1f8] sm:$0xff]
        %2130 = vmatpush.msra.mxu0 %v2126
        %2131 = vmatpush.msra.mxu0 %v2122
        %2132 = vmatpush.msra.mxu0 %v2118
        %2133 = vmatpush.msra.mxu0 %v2114
        %2134 = vmatpush.msra.mxu0 %v2110
        %2135 = vmatpush.msra.mxu0 %v2106
        %2136 = vmatpush.msra.mxu0 %v2102
        %2137 = vmatpush.msra.mxu0 %v2098
        %2138 = vmatpush.msra.mxu0 %v2094
        %2139 = vmatpush.msra.mxu0 %v2090
        %2140 = vmatpush.msra.mxu0 %v2086
        %2141 = vmatpush.msra.mxu0 %v2082
        %2142 = vmatpush.msra.mxu0 %v2078
        %2143 = vmatpush.msra.mxu0 %v2074
        %2144 = vmatpush.msra.mxu0 %v2070
        %2145 = vmatpush.msra.mxu0 %v2066
        %2146 = vmatmul.f32.gmra.mxu0 %v2064
        %v2147 = vpop.f32.mrf.mxu0
        %v2148 = vadd.f32 0.0, %v2147
        %2149 = vmatmul.f32.gmra.mxu0 %v2065
        %v2150 = vpop.f32.mrf.mxu0
        %v2151 = vadd.f32 0.0, %v2150
        %2152 = vdwg.mxu0
        %2153 = vmatpush.msra.mxu0 %v2127
        %2154 = vmatpush.msra.mxu0 %v2123
        %2155 = vmatpush.msra.mxu0 %v2119
        %2156 = vmatpush.msra.mxu0 %v2115
        %2157 = vmatpush.msra.mxu0 %v2111
        %2158 = vmatpush.msra.mxu0 %v2107
        %2159 = vmatpush.msra.mxu0 %v2103
        %2160 = vmatpush.msra.mxu0 %v2099
        %2161 = vmatpush.msra.mxu0 %v2095
        %2162 = vmatpush.msra.mxu0 %v2091
        %2163 = vmatpush.msra.mxu0 %v2087
        %2164 = vmatpush.msra.mxu0 %v2083
        %2165 = vmatpush.msra.mxu0 %v2079
        %2166 = vmatpush.msra.mxu0 %v2075
        %2167 = vmatpush.msra.mxu0 %v2071
        %2168 = vmatpush.msra.mxu0 %v2067
        %2169 = vmatmul.f32.gmra.mxu0 %v2064
        %v2170 = vpop.f32.mrf.mxu0
        %v2171 = vadd.f32 0.0, %v2170
        %2172 = vmatmul.f32.gmra.mxu0 %v2065
        %v2173 = vpop.f32.mrf.mxu0
        %v2174 = vadd.f32 0.0, %v2173
        %2175 = vdwg.mxu0
        %2176 = vmatpush.msra.mxu0 %v2128
        %2177 = vmatpush.msra.mxu0 %v2124
        %2178 = vmatpush.msra.mxu0 %v2120
        %2179 = vmatpush.msra.mxu0 %v2116
        %2180 = vmatpush.msra.mxu0 %v2112
        %2181 = vmatpush.msra.mxu0 %v2108
        %2182 = vmatpush.msra.mxu0 %v2104
        %2183 = vmatpush.msra.mxu0 %v2100
        %2184 = vmatpush.msra.mxu0 %v2096
        %2185 = vmatpush.msra.mxu0 %v2092
        %2186 = vmatpush.msra.mxu0 %v2088
        %2187 = vmatpush.msra.mxu0 %v2084
        %2188 = vmatpush.msra.mxu0 %v2080
        %2189 = vmatpush.msra.mxu0 %v2076
        %2190 = vmatpush.msra.mxu0 %v2072
        %2191 = vmatpush.msra.mxu0 %v2068
        %2192 = vmatmul.f32.gmra.mxu0 %v2064
        %v2193 = vpop.f32.mrf.mxu0
        %v2194 = vadd.f32 0.0, %v2193
        %2195 = vmatmul.f32.gmra.mxu0 %v2065
        %v2196 = vpop.f32.mrf.mxu0
        %v2197 = vadd.f32 0.0, %v2196
        %2198 = vdwg.mxu0
        %2199 = vmatpush.msra.mxu0 %v2129
        %2200 = vmatpush.msra.mxu0 %v2125
        %2201 = vmatpush.msra.mxu0 %v2121
        %2202 = vmatpush.msra.mxu0 %v2117
        %2203 = vmatpush.msra.mxu0 %v2113
        %2204 = vmatpush.msra.mxu0 %v2109
        %2205 = vmatpush.msra.mxu0 %v2105
        %2206 = vmatpush.msra.mxu0 %v2101
        %2207 = vmatpush.msra.mxu0 %v2097
        %2208 = vmatpush.msra.mxu0 %v2093
        %2209 = vmatpush.msra.mxu0 %v2089
        %2210 = vmatpush.msra.mxu0 %v2085
        %2211 = vmatpush.msra.mxu0 %v2081
        %2212 = vmatpush.msra.mxu0 %v2077
        %2213 = vmatpush.msra.mxu0 %v2073
        %2214 = vmatpush.msra.mxu0 %v2069
        %2215 = vmatmul.f32.gmra.mxu0 %v2064
        %v2216 = vpop.f32.mrf.mxu0
        %v2217 = vadd.f32 0.0, %v2216
        %2218 = vmatmul.f32.gmra.mxu0 %v2065
        %v2219 = vpop.f32.mrf.mxu0
        %v2220 = vadd.f32 0.0, %v2219
        %2221 = vdwg.mxu0
        %v2222 = vmax.f32 %v2148, 0.0
        %v2223 = vmax.f32 %v2171, 0.0
        %v2224 = vmax.f32 %v2194, 0.0
        %v2225 = vmax.f32 %v2217, 0.0
        %v2226 = vmax.f32 %v2151, 0.0
        %v2227 = vmax.f32 %v2174, 0.0
        %v2228 = vmax.f32 %v2197, 0.0
        %v2229 = vmax.f32 %v2220, 0.0
        %v2230 = vmul.f32 %v2222, 100.0
        %v2231 = vmul.f32 %v2223, 100.0
        %v2232 = vmul.f32 %v2224, 100.0
        %v2233 = vmul.f32 %v2225, 100.0
        %v2234 = vmul.f32 %v2226, 100.0
        %v2235 = vmul.f32 %v2227, 100.0
        %v2236 = vmul.f32 %v2228, 100.0
        %v2237 = vmul.f32 %v2229, 100.0
        %v2238 = vadd.f32 %v2230, 1.0
        %v2239 = vlog2.pop %v2238
        %v2240 = vmul.f32 %v2239, 0.6931472
        %v2241 = vmul.f32 -0.5, %v2230
        %v2242 = vadd.f32 %v2241, 1.0
        %v2243 = vmul.f32 %v2242, %v2230
        %v2244 = vand.u32 2147483647, %v2230
        %vm2245 = vcmp.lt.f32.partialorder %v2244, 0.0004427343
        %v2246 = vsel %vm2245, %v2243, %v2240
        %v2247 = vadd.f32 %v2231, 1.0
        %v2248 = vlog2.pop %v2247
        %v2249 = vmul.f32 %v2248, 0.6931472
        %v2250 = vmul.f32 -0.5, %v2231
        %v2251 = vadd.f32 %v2250, 1.0
        %v2252 = vmul.f32 %v2251, %v2231
        %v2253 = vand.u32 2147483647, %v2231
        %vm2254 = vcmp.lt.f32.partialorder %v2253, 0.0004427343
        %v2255 = vsel %vm2254, %v2252, %v2249
        %v2256 = vadd.f32 %v2232, 1.0
        %v2257 = vlog2.pop %v2256
        %v2258 = vmul.f32 %v2257, 0.6931472
        %v2259 = vmul.f32 -0.5, %v2232
        %v2260 = vadd.f32 %v2259, 1.0
        %v2261 = vmul.f32 %v2260, %v2232
        %v2262 = vand.u32 2147483647, %v2232
        %vm2263 = vcmp.lt.f32.partialorder %v2262, 0.0004427343
        %v2264 = vsel %vm2263, %v2261, %v2258
        %v2265 = vadd.f32 %v2233, 1.0
        %v2266 = vlog2.pop %v2265
        %v2267 = vmul.f32 %v2266, 0.6931472
        %v2268 = vmul.f32 -0.5, %v2233
        %v2269 = vadd.f32 %v2268, 1.0
        %v2270 = vmul.f32 %v2269, %v2233
        %v2271 = vand.u32 2147483647, %v2233
        %vm2272 = vcmp.lt.f32.partialorder %v2271, 0.0004427343
        %v2273 = vsel %vm2272, %v2270, %v2267
        %v2274 = vadd.f32 %v2234, 1.0
        %v2275 = vlog2.pop %v2274
        %v2276 = vmul.f32 %v2275, 0.6931472
        %v2277 = vmul.f32 -0.5, %v2234
        %v2278 = vadd.f32 %v2277, 1.0
        %v2279 = vmul.f32 %v2278, %v2234
        %v2280 = vand.u32 2147483647, %v2234
        %vm2281 = vcmp.lt.f32.partialorder %v2280, 0.0004427343
        %v2282 = vsel %vm2281, %v2279, %v2276
        %v2283 = vadd.f32 %v2235, 1.0
        %v2284 = vlog2.pop %v2283
        %v2285 = vmul.f32 %v2284, 0.6931472
        %v2286 = vmul.f32 -0.5, %v2235
        %v2287 = vadd.f32 %v2286, 1.0
        %v2288 = vmul.f32 %v2287, %v2235
        %v2289 = vand.u32 2147483647, %v2235
        %vm2290 = vcmp.lt.f32.partialorder %v2289, 0.0004427343
        %v2291 = vsel %vm2290, %v2288, %v2285
        %v2292 = vadd.f32 %v2236, 1.0
        %v2293 = vlog2.pop %v2292
        %v2294 = vmul.f32 %v2293, 0.6931472
        %v2295 = vmul.f32 -0.5, %v2236
        %v2296 = vadd.f32 %v2295, 1.0
        %v2297 = vmul.f32 %v2296, %v2236
        %v2298 = vand.u32 2147483647, %v2236
        %vm2299 = vcmp.lt.f32.partialorder %v2298, 0.0004427343
        %v2300 = vsel %vm2299, %v2297, %v2294
        %v2301 = vadd.f32 %v2237, 1.0
        %v2302 = vlog2.pop %v2301
        %v2303 = vmul.f32 %v2302, 0.6931472
        %v2304 = vmul.f32 -0.5, %v2237
        %v2305 = vadd.f32 %v2304, 1.0
        %v2306 = vmul.f32 %v2305, %v2237
        %v2307 = vand.u32 2147483647, %v2237
        %vm2308 = vcmp.lt.f32.partialorder %v2307, 0.0004427343
        %v2309 = vsel %vm2308, %v2306, %v2303
        %v2310 = vld [vmem:[#allocation3] sm:$0xff]
        %v2311 = vld [vmem:[#allocation3 + $0x8] sm:$0xff]
        %v2312 = vmul.f32 %v2246, %v2264
        %v2313 = vmul.f32 %v2255, %v2273
        %v2314 = vmul.f32 %v2282, %v2300
        %v2315 = vmul.f32 %v2291, %v2309
        %v2316 = vadd.f32 %v2312, %v2313
        %v2317 = vadd.f32 %v2314, %v2315
        %v2318 = vadd.f32 %v2310, %v2316
        %v2319 = vadd.f32 %v2311, %v2317
        %2320 = vst [vmem:[#allocation3] sm:$0xff] %v2318
        %2321 = vst [vmem:[#allocation3 + $0x8] sm:$0xff] %v2319
        %v2322 = vld [vmem:[#allocation3 + $0x10] sm:$0xff]
        %v2323 = vld [vmem:[#allocation3 + $0x18] sm:$0xff]
        %v2324 = vmul.f32 %v2246, %v2246
        %v2325 = vmul.f32 %v2255, %v2255
        %v2326 = vmul.f32 %v2282, %v2282
        %v2327 = vmul.f32 %v2291, %v2291
        %v2328 = vadd.f32 %v2324, %v2325
        %v2329 = vadd.f32 %v2326, %v2327
        %v2330 = vadd.f32 %v2322, %v2328
        %v2331 = vadd.f32 %v2323, %v2329
        %2332 = vst [vmem:[#allocation3 + $0x10] sm:$0xff] %v2330
        %2333 = vst [vmem:[#allocation3 + $0x18] sm:$0xff] %v2331
        %v2334 = vld [vmem:[#allocation3 + $0x20] sm:$0xff]
        %v2335 = vld [vmem:[#allocation3 + $0x28] sm:$0xff]
        %v2336 = vmul.f32 %v2264, %v2264
        %v2337 = vmul.f32 %v2273, %v2273
        %v2338 = vmul.f32 %v2300, %v2300
        %v2339 = vmul.f32 %v2309, %v2309
        %v2340 = vadd.f32 %v2336, %v2337
        %v2341 = vadd.f32 %v2338, %v2339
        %v2342 = vadd.f32 %v2334, %v2340
        %v2343 = vadd.f32 %v2335, %v2341
        %2344 = vst [vmem:[#allocation3 + $0x20] sm:$0xff] %v2342
        %2345 = vst [vmem:[#allocation3 + $0x28] sm:$0xff] %v2343
        // Predicated region
        $region49: #{tpu_custom_call.1} parent=31 // pred_check
          %p2346 = pneg %p269
        $region50: #{tpu_custom_call.1} parent=31 // pred_check_branch
          %2348 = sbr.rel (%p2346) target = $region52
        $region51: #{tpu_custom_call.1} parent=31 // pred_region
          %v2349 = vld [vmem:[#allocation3] sm:$0xff]
          %v2350 = vld [vmem:[#allocation3 + $0x8] sm:$0xff]
          %v2351 = vadd.f32 %v2349, %v2350
          %2352 = vadd.xlane.f32.xlu0 %v2351
          %v2353 = vpop.xlane.xlu0 %2352
          %v2354 = vrot.slane %v2353, 4
          %v2355 = vadd.f32 %v2353, %v2354
          %v2356 = vrot.slane %v2355, 2
          %v2357 = vadd.f32 %v2355, %v2356
          %v2358 = vrot.slane %v2357, 1
          %v2359 = vadd.f32 %v2357, %v2358
          %s2360 = vtos %v2359
          %v2361 = vld [vmem:[#allocation3 + $0x10] sm:$0xff]
          %v2362 = vld [vmem:[#allocation3 + $0x18] sm:$0xff]
          %v2363 = vadd.f32 %v2361, %v2362
          %2364 = vadd.xlane.f32.xlu0 %v2363
          %v2365 = vpop.xlane.xlu0 %2364
          %v2366 = vrot.slane %v2365, 4
          %v2367 = vadd.f32 %v2365, %v2366
          %v2368 = vrot.slane %v2367, 2
          %v2369 = vadd.f32 %v2367, %v2368
          %v2370 = vrot.slane %v2369, 1
          %v2371 = vadd.f32 %v2369, %v2370
          %s2372 = vtos %v2371
          %v2373 = vld [vmem:[#allocation3 + $0x20] sm:$0xff]
          %v2374 = vld [vmem:[#allocation3 + $0x28] sm:$0xff]
          %v2375 = vadd.f32 %v2373, %v2374
          %2376 = vadd.xlane.f32.xlu0 %v2375
          %v2377 = vpop.xlane.xlu0 %2376
          %v2378 = vrot.slane %v2377, 4
          %v2379 = vadd.f32 %v2377, %v2378
          %v2380 = vrot.slane %v2379, 2
          %v2381 = vadd.f32 %v2379, %v2380
          %v2382 = vrot.slane %v2381, 1
          %v2383 = vadd.f32 %v2381, %v2382
          %s2384 = vtos %v2383
          %v2385 = vlaneseq
          %v2386 = vand.u32 %v2385, 127
          %vm2387 = vcmp.eq.s32.totalorder %v2386, 0
          %vm2388 = vcmp.eq.s32.totalorder %v2386, 1
          %vm2389 = vcmp.eq.s32.totalorder %v2386, 2
          %v2390 = vstv %s2384
          %v2391 = vsel %vm2389, %v2390, 0.0
          %v2392 = vstv %s2372
          %v2393 = vsel %vm2388, %v2392, %v2391
          %v2394 = vstv %s2360
          %v2395 = vsel %vm2387, %v2394, %v2393
          %2396 = vst [vmem:[%s265] sm:$0xff] %v2395
        $region52: #{tpu_custom_call.1} parent=31 // pred_fallthru
          _
        %s2397 = sand.u32 %s120, 1
        %s2398 = scalar_lea.sflag [#allocation6], %s2397
        %s2399 = sand.u32 %s120, 1
        %s2400 = smul.addr %s2399, 8
        %s2401 = scalar_lea.vmem [#allocation10], %s2400
        // Predicated region
        $region53: #{tpu_custom_call.1} parent=31 // pred_check
          %p2402 = pneg %p130
        $region54: #{tpu_custom_call.1} parent=31 // pred_check_branch
          %2404 = sbr.rel (%p2402) target = $region56
        $region55: #{tpu_custom_call.1} parent=31 // pred_region
          %2406 = vsyncadd %s2398, 0
          %s2407 = smul.addr %s25, 8
          %s2408 = scalar_lea.hbm %s3, %s2407
          %s2410 = sshll.u32 %s2401, 4
          %s2411 = int_to_ptr.vmem [resolvable:$true] %s2410
          %s2412 = sshll.u32 %s2408, 4
          %s2413 = int_to_ptr.hbm [resolvable:$true] %s2412
          %2415 = dma.vmem_to_hbm [thread:$0]  %s2411, 128, %s2413, %s2398
        $region56: #{tpu_custom_call.1} parent=31 // pred_fallthru
          _
      $region32: #{tpu_custom_call.1} parent=5 // pred_fallthru
        _
      %p2416 = scmp.le.s32.totalorder 2, %s16
      // Predicated region
      $region57: #{tpu_custom_call.1} parent=5 // pred_check
        %p2417 = pneg %p2416
      $region58: #{tpu_custom_call.1} parent=5 // pred_check_branch
        %2419 = sbr.rel (%p2417) target = $region60
      $region59: #{tpu_custom_call.1} parent=5 // pred_region
        %s2420 = ssub.s32 %s16, 2
        // Predicated region
        $region61: #{tpu_custom_call.1} parent=59 // pred_check
          %p2421 = pneg %p136
        $region62: #{tpu_custom_call.1} parent=59 // pred_check_branch
          %2423 = sbr.rel (%p2421) target = $region64
        $region63: #{tpu_custom_call.1} parent=59 // pred_region
          %s2424 = sand.u32 %s121, 1
          %s2425 = scalar_lea.sflag [#allocation6], %s2424
          %s2426 = sand.u32 %s121, 1
          %s2427 = smul.addr %s2426, 8
          %s2428 = scalar_lea.vmem [#allocation10], %s2427
          %2430 = dma.done %s2425, 128
        $region64: #{tpu_custom_call.1} parent=59 // pred_fallthru
          _
      $region60: #{tpu_custom_call.1} parent=5 // pred_fallthru
        _
    $region6: #{tpu_custom_call.1} parent=1 // loop_footer
      %s20 = sadd.s32 1, %s16
    $region7: #{tpu_custom_call.1} parent=1 // loop_footer_branch
      %15 = sbr.rel target = $region3
    $region8: #{tpu_custom_call.1} parent=1 // loop_exit
      _
    %2431 = vsyncpa [#allocation5], 1
    %s2432 = scalar_lea.sflag [#allocation5], 1
    %2433 = vsyncpa %s2432, 1
    %2434 = vsyncpa [#allocation8], 1
    %s2435 = scalar_lea.sflag [#allocation8], 1
    %2436 = vsyncpa %s2435, 1
    %2437 = vsyncpa [#allocation6], 1
    %s2438 = scalar_lea.sflag [#allocation6], 1
    %2439 = vsyncpa %s2438, 1

</llo_original>
